<compile_context>
chip_gen: v6e
topology: v6e:2x2x1
jax: 0.10.0
libtpu: 0.0.40
codegen_flags: <defaults>
</compile_context>

<pallas_src>
import functools
import math

import jax
import jax.numpy as jnp
from jax.experimental import pallas as pl
from jax.experimental.pallas import tpu as pltpu

_NEG_SELF = -5e4   # reformer-pytorch TOKEN_SELF_ATTN_VALUE (shared-QK self mask)
_LN_EPS = 1e-5


# --------------------------------------------------------------------------
# small f32 helpers (used inside kernels)
# --------------------------------------------------------------------------
def _gelu(x):
    # exact (erf-based) GELU, matching torch.nn.functional.gelu default
    return 0.5 * x * (1.0 + jax.lax.erf(x * (1.0 / math.sqrt(2.0))))


def _apply_act(x, act):
    if act == "gelu":
        return _gelu(x)
    if act == "relu":
        return jnp.maximum(x, 0.0)
    return x


def _layernorm(x, g, b):
    mu = jnp.mean(x, axis=-1, keepdims=True)
    d = x - mu
    var = jnp.mean(d * d, axis=-1, keepdims=True)
    return d * jax.lax.rsqrt(var + _LN_EPS) * g + b


# --------------------------------------------------------------------------
# Fused Conv2d + activation + MaxPool2d kernel
# --------------------------------------------------------------------------
def _conv_act_pool_kernel(p_ref, w_ref, b_ref, o_ref, *, n_pool, act):
    """p_ref: (PP, K, TM) bf16 patch matrices (one per pooling offset),
       w_ref: (Cout, K) bf16,  b_ref: (Cout, 1) f32,  o_ref: (Cout, TM) f32."""
    w = w_ref[...]
    b = b_ref[...]
    acc = None
    for i in range(n_pool):
        y = jnp.dot(w, p_ref[i], preferred_element_type=jnp.float32) + b
        y = _apply_act(y, act)                       # act before pool (as in PyTorch)
        acc = y if acc is None else jnp.maximum(acc, y)
    o_ref[...] = acc.astype(o_ref.dtype)


def conv_act_pool(x, w, b, conv_stride, pool_k, pool_s, act):
    """x: (N, Cin, H, W) f32, w: (Cout, Cin, kh, kw) (PyTorch layout), b: (Cout,).
       Returns maxpool(act(conv2d(x))) in NCHW, f32."""
    N, Cin, H, W = x.shape
    Cout, _, kh, kw = w.shape
    Hc = (H - kh) // conv_stride + 1
    Wc = (W - kw) // conv_stride + 1
    Hp = (Hc - pool_k) // pool_s + 1
    Wp = (Wc - pool_k) // pool_s + 1
    K = Cin * kh * kw
    M = N * Hp * Wp
    PP = pool_k * pool_k
    step = conv_stride * pool_s

    # One im2col patch matrix per pooling offset (di, dj); K ordering is
    # channel-major, kernel-row/col minor == PyTorch weight.reshape(Cout, K).
    pmats = []
    for di in range(pool_k):
        for dj in range(pool_k):
            planes = []
            for ki in range(kh):
                for kj in range(kw):
                    r0 = conv_stride * di + ki
                    c0 = conv_stride * dj + kj
                    planes.append(
                        x[:, :, r0:r0 + step * Hp:step, c0:c0 + step * Wp:step])
            pk = jnp.stack(planes, axis=2)                  # (N, Cin, kh*kw, Hp, Wp)
            pk = pk.transpose(1, 2, 0, 3, 4).reshape(K, M)  # (K, N*Hp*Wp)
            pmats.append(pk)
    patches = jnp.stack(pmats, axis=0).astype(jnp.bfloat16)  # (PP, K, M)
    wmat = w.reshape(Cout, K).astype(jnp.bfloat16)
    bcol = b.reshape(Cout, 1).astype(jnp.float32)

    # Tile the lane-dense spatial dim with 128-aligned blocks.
    if M > 512:
        grid_m = pl.cdiv(M, 512)
        TM = ((pl.cdiv(M, grid_m) + 127) // 128) * 128
        M_pad = TM * grid_m
        patches = jnp.pad(patches, ((0, 0), (0, 0), (0, M_pad - M)))
    else:
        TM, grid_m, M_pad = M, 1, M

    out = pl.pallas_call(
        functools.partial(_conv_act_pool_kernel, n_pool=PP, act=act),
        out_shape=jax.ShapeDtypeStruct((Cout, M_pad), jnp.float32),
        grid=(grid_m,),
        in_specs=[
            pl.BlockSpec((PP, K, TM), lambda i: (0, 0, i)),
            pl.BlockSpec((Cout, K), lambda i: (0, 0)),
            pl.BlockSpec((Cout, 1), lambda i: (0, 0)),
        ],
        out_specs=pl.BlockSpec((Cout, TM), lambda i: (0, i)),
        compiler_params=pltpu.CompilerParams(
            dimension_semantics=("parallel",)),
    )(patches, wmat, bcol)

    return out[:, :M].reshape(Cout, N, Hp, Wp).transpose(1, 0, 2, 3)  # NCHW


# --------------------------------------------------------------------------
# Fused Reformer reversible layer kernel
#   y1 = x1 + to_out(shared_qk_attention(LN1(x2)))
#   y2 = x2 + W2(gelu(W1(LN2(y1)) + b1)) + b2
# --------------------------------------------------------------------------
def _reformer_layer_kernel(x1_ref, x2_ref, ln1g_ref, ln1b_ref,
                           wqk_ref, wv_ref, wo_ref, bo_ref,
                           ln2g_ref, ln2b_ref, w1_ref, b1_ref, w2_ref, b2_ref,
                           y1_ref, y2_ref, *, heads):
    x1 = x1_ref[0].astype(jnp.float32)            # (S, D)
    x2 = x2_ref[0].astype(jnp.float32)
    S, D = x2.shape
    dh = D // heads
    scale = dh ** -0.5

    # ----- attention branch
    a = _layernorm(x2, ln1g_ref[...], ln1b_ref[...])
    a_b = a.astype(jnp.bfloat16)

    row = jax.lax.broadcasted_iota(jnp.int32, (S, S), 0)
    col = jax.lax.broadcasted_iota(jnp.int32, (S, S), 1)
    self_mask = row == col

    att = bo_ref[...]                              # (1, D) f32, to_out bias
    for h in range(heads):
        q_h = jnp.dot(a_b, wqk_ref[h], preferred_element_type=jnp.float32)  # (S, dh)
        v_h = jnp.dot(a_b, wv_ref[h], preferred_element_type=jnp.float32)
        # shared-QK: keys are the L2-normalised qk projection (F.normalize, eps=1e-12)
        sumsq = jnp.sum(q_h * q_h, axis=-1, keepdims=True)
        k_h = q_h * jax.lax.rsqrt(jnp.maximum(sumsq, 1e-24))
        dots = jnp.dot(q_h, k_h.T, preferred_element_type=jnp.float32) * scale
        dots = jnp.where(self_mask, _NEG_SELF, dots)          # mask self-attention
        m = jnp.max(dots, axis=-1, keepdims=True)
        p = jnp.exp(dots - m)
        p = p * pl.reciprocal(jnp.sum(p, axis=-1, keepdims=True), approx=True)
        o_h = jnp.dot(p, v_h, preferred_element_type=jnp.float32)           # (S, dh)
        att = att + jnp.dot(o_h.astype(jnp.bfloat16), wo_ref[h],
                            preferred_element_type=jnp.float32)
    y1 = x1 + att

    # ----- feed-forward branch
    f = _layernorm(y1, ln2g_ref[...], ln2b_ref[...])
    hid = jnp.dot(f.astype(jnp.bfloat16), w1_ref[...],
                  preferred_element_type=jnp.float32) + b1_ref[...]
    hid = _gelu(hid)
    ff = jnp.dot(hid.astype(jnp.bfloat16), w2_ref[...],
                 preferred_element_type=jnp.float32) + b2_ref[...]
    y2 = x2 + ff

    y1_ref[0] = y1.astype(y1_ref.dtype)
    y2_ref[0] = y2.astype(y2_ref.dtype)


def _full_spec(shape):
    zeros = (0,) * len(shape)
    return pl.BlockSpec(shape, lambda b: zeros)


def reformer_layer(x1, x2, lp, heads):
    B, S, D = x1.shape
    dh = D // heads
    Dff = lp["W1"].shape[1]

    # pre-split per-head weights so the kernel never slices along lanes
    wqk_h = lp["Wqk"].reshape(D, heads, dh).transpose(1, 0, 2).astype(jnp.bfloat16)
    wv_h = lp["Wv"].reshape(D, heads, dh).transpose(1, 0, 2).astype(jnp.bfloat16)
    wo_h = lp["Wo"].reshape(heads, dh, D).astype(jnp.bfloat16)

    seq_spec = pl.BlockSpec((1, S, D), lambda b: (b, 0, 0))
    y1, y2 = pl.pallas_call(
        functools.partial(_reformer_layer_kernel, heads=heads),
        out_shape=(jax.ShapeDtypeStruct((B, S, D), x1.dtype),
                   jax.ShapeDtypeStruct((B, S, D), x1.dtype)),
        grid=(B,),
        in_specs=[
            seq_spec, seq_spec,
            _full_spec((1, D)), _full_spec((1, D)),
            _full_spec((heads, D, dh)), _full_spec((heads, D, dh)),
            _full_spec((heads, dh, D)), _full_spec((1, D)),
            _full_spec((1, D)), _full_spec((1, D)),
            _full_spec((D, Dff)), _full_spec((1, Dff)),
            _full_spec((Dff, D)), _full_spec((1, D)),
        ],
        out_specs=(seq_spec, seq_spec),
        compiler_params=pltpu.CompilerParams(
            dimension_semantics=("parallel",)),
    )(x1, x2,
      lp["ln1_g"].reshape(1, D), lp["ln1_b"].reshape(1, D),
      wqk_h, wv_h, wo_h, lp["bo"].reshape(1, D),
      lp["ln2_g"].reshape(1, D), lp["ln2_b"].reshape(1, D),
      lp["W1"].astype(jnp.bfloat16), lp["b1"].reshape(1, Dff),
      lp["W2"].astype(jnp.bfloat16), lp["b2"].reshape(1, D))
    return y1, y2


def reformer_forward(layers, x, heads):
    # ReversibleSequence: x -> (x, x); per block y1 = x1 + Attn(LN1(x2)),
    # y2 = x2 + FF(LN2(y1)); output = mean of the two streams.
    x1, x2 = x, x
    for lp in layers:
        x1, x2 = reformer_layer(x1, x2, lp, heads)
    return 0.5 * (x1 + x2)


# --------------------------------------------------------------------------
# Full model forward
# --------------------------------------------------------------------------
def covidetector_forward(params, x, cfg):
    act = "gelu" if cfg["hidden_act"] == "gelu" else "relu"
    x = conv_act_pool(x, params["conv1_w"], params["conv1_b"],
                      cfg["conv1_stride"], cfg["pool1_kern"], cfg["pool1_stride"], act)
    x = conv_act_pool(x, params["conv2_w"], params["conv2_b"],
                      cfg["conv2_stride"], cfg["pool2_kern"], cfg["pool2_stride"], act)
    x = conv_act_pool(x, params["conv3_w"], params["conv3_b"],
                      cfg["conv3_stride"], cfg["pool3_kern"], cfg["pool3_stride"], act)

    B, C, Hh, Ww = x.shape
    seq = x.transpose(0, 2, 3, 1).reshape(B, Hh * Ww, C)
    seq = reformer_forward(params["reformer"], seq, heads=cfg["reformer_heads"])
    x = seq.reshape(B, Hh, Ww, C).transpose(0, 3, 1, 2)

    x = conv_act_pool(x, params["conv4_w"], params["conv4_b"],
                      cfg["conv4_stride"], cfg["pool4_kern"], cfg["pool4_stride"], act)
    x = conv_act_pool(x, params["conv5_w"], params["conv5_b"],
                      cfg["conv5_stride"], cfg["pool5_kern"], cfg["pool5_stride"], act)

    B, C, Hh, Ww = x.shape
    flat = x.reshape(B, C * Hh * Ww)
    # final (B,4)@(4,num_classes): sub-vreg sized -> plain jnp, no pallas_call.
    return flat @ params["lin_w"] + params["lin_b"]


# --------------------------------------------------------------------------
# Deterministic synthetic parameter initialisation
# --------------------------------------------------------------------------
def init_params(key, cfg):
    keys = jax.random.split(key, 64)
    idx = iter(range(64))

    def nrm(shape, scale=0.02):
        return (scale * jax.random.normal(keys[next(idx)], shape)).astype(jnp.float32)

    D = cfg["conv3_out_ch"]
    p = {
        "conv1_w": nrm((cfg["conv1_out_ch"], cfg["conv1_in_ch"], cfg["conv1_kern"], cfg["conv1_kern"])),
        "conv1_b": nrm((cfg["conv1_out_ch"],)),
        "conv2_w": nrm((cfg["conv2_out_ch"], cfg["conv1_out_ch"], cfg["conv2_kern"], cfg["conv2_kern"])),
        "conv2_b": nrm((cfg["conv2_out_ch"],)),
        "conv3_w": nrm((cfg["conv3_out_ch"], cfg["conv2_out_ch"], cfg["conv3_kern"], cfg["conv3_kern"])),
        "conv3_b": nrm((cfg["conv3_out_ch"],)),
        "conv4_w": nrm((cfg["conv2_out_ch"], cfg["conv3_out_ch"], cfg["conv4_kern"], cfg["conv4_kern"])),
        "conv4_b": nrm((cfg["conv2_out_ch"],)),
        "conv5_w": nrm((cfg["conv1_in_ch"], cfg["conv2_out_ch"], cfg["conv5_kern"], cfg["conv5_kern"])),
        "conv5_b": nrm((cfg["conv1_in_ch"],)),
        "lin_w": nrm((cfg["final_linear"], cfg["max_samples"])),
        "lin_b": nrm((cfg["max_samples"],)),
    }
    layers = []
    for _ in range(cfg["reformer_depth"]):
        layers.append({
            "ln1_g": jnp.ones((D,), jnp.float32),
            "ln1_b": jnp.zeros((D,), jnp.float32),
            "Wqk": nrm((D, D)),
            "Wv": nrm((D, D)),
            "Wo": nrm((D, D)),
            "bo": jnp.zeros((D,), jnp.float32),
            "ln2_g": jnp.ones((D,), jnp.float32),
            "ln2_b": jnp.zeros((D,), jnp.float32),
            "W1": nrm((D, 4 * D)),
            "b1": jnp.zeros((4 * D,), jnp.float32),
            "W2": nrm((4 * D, D)),
            "b2": jnp.zeros((D,), jnp.float32),
        })
    p["reformer"] = layers
    return p


if __name__ == "__main__":
    cfg = dict(
        max_samples=3, hidden_act="gelu",
        conv1_in_ch=4, conv1_out_ch=8, conv1_kern=3, conv1_stride=1,
        pool1_kern=2, pool1_stride=2,
        conv2_out_ch=16, conv2_kern=3, conv2_stride=1,
        pool2_kern=2, pool2_stride=2,
        conv3_out_ch=32, conv3_kern=3, conv3_stride=1,
        pool3_kern=2, pool3_stride=2,
        reformer_attn_chunks=1, reformer_bucket_size=4, reformer_causal=False,
        reformer_depth=1, reformer_ff_chunks=1, reformer_heads=2,
        reformer_lsh_dropout=0.0, reformer_max_seq_len=16, reformer_n_hashes=1,
        reformer_num_mem_kv=0, reformer_use_full_attn=True,
        conv4_kern=3, conv4_stride=1, pool4_kern=2, pool4_stride=2,
        conv5_kern=1, conv5_stride=1, pool5_kern=1, pool5_stride=1,
        final_linear=4,
    )
    key = jax.random.PRNGKey(0)
    pkey, xkey = jax.random.split(key)
    params = init_params(pkey, cfg)
    # input spectrogram-like tensor, NCHW
    x = jax.random.normal(xkey, (2, cfg["conv1_in_ch"], 48, 48), dtype=jnp.float32)

    fwd = jax.jit(functools.partial(covidetector_forward, cfg=cfg))
    logits = jax.block_until_ready(fwd(params, x))
    assert logits.shape == (2, cfg["max_samples"]), logits.shape
    assert bool(jnp.all(jnp.isfinite(logits)))
    print("KERNEL_OK")
</pallas_src>

<mosaic_0001>
module attributes {stable_mosaic.version = 11 : i64} {
  func.func @_conv_act_pool_kernel(%arg0: i32, %arg1: memref<4x36x384xbf16, #tpu.memory_space<vmem>>, %arg2: memref<8x36xbf16, #tpu.memory_space<vmem>>, %arg3: memref<8x1xf32, #tpu.memory_space<vmem>>, %arg4: memref<8x384xf32, #tpu.memory_space<vmem>>) attributes {dimension_semantics = [#tpu.dimension_semantics<parallel>], iteration_bounds = array<i64: 3>, scalar_prefetch = 0 : i64, scratch_operands = 0 : i64, tpu.core_type = #tpu.core_type<tc>, window_params = [{transform_indices = @transform_0, window_bounds = array<i64: 4, 36, 384>}, {pipeline_mode = #tpu.pipeline_mode<synchronous>, transform_indices = @transform_1, window_bounds = array<i64: 8, 36>}, {pipeline_mode = #tpu.pipeline_mode<synchronous>, transform_indices = @transform_2, window_bounds = array<i64: 8, 1>}, {transform_indices = @transform_3, window_bounds = array<i64: 8, 384>}]} {
    %c0 = arith.constant 0 : index
    %c0_0 = arith.constant 0 : index
    %0 = vector.load %arg2[%c0, %c0_0] : memref<8x36xbf16, #tpu.memory_space<vmem>>, vector<8x36xbf16>
    %c0_1 = arith.constant 0 : index
    %c0_2 = arith.constant 0 : index
    %1 = vector.load %arg3[%c0_1, %c0_2] : memref<8x1xf32, #tpu.memory_space<vmem>>, vector<8x1xf32>
    %c0_3 = arith.constant 0 : index
    %c0_4 = arith.constant 0 : index
    %c0_5 = arith.constant 0 : index
    %2 = vector.load %arg1[%c0_3, %c0_4, %c0_5] : memref<4x36x384xbf16, #tpu.memory_space<vmem>>, vector<1x36x384xbf16>
    %3 = vector.shape_cast %2 : vector<1x36x384xbf16> to vector<36x384xbf16>
    %cst = arith.constant dense<0.000000e+00> : vector<8x384xf32>
    %4 = tpu.matmul %0, %3, %cst {dimension_numbers = #tpu.dot_dimension_numbers<[1], [0], [0], [1], [0, 0, 1, 1], [], []>} : vector<8x36xbf16>, vector<36x384xbf16>, vector<8x384xf32> -> vector<8x384xf32>
    %5 = vector.broadcast %1 : vector<8x1xf32> to vector<8x384xf32>
    %6 = arith.addf %4, %5 : vector<8x384xf32>
    %cst_6 = arith.constant 5.000000e-01 : f32
    %7 = vector.broadcast %cst_6 : f32 to vector<8x384xf32>
    %8 = arith.mulf %7, %6 : vector<8x384xf32>
    %cst_7 = arith.constant 0.707106769 : f32
    %9 = vector.broadcast %cst_7 : f32 to vector<8x384xf32>
    %10 = arith.mulf %6, %9 : vector<8x384xf32>
    %11 = math.erf %10 : vector<8x384xf32>
    %cst_8 = arith.constant 1.000000e+00 : f32
    %12 = vector.broadcast %cst_8 : f32 to vector<8x384xf32>
    %13 = arith.addf %12, %11 : vector<8x384xf32>
    %14 = arith.mulf %8, %13 : vector<8x384xf32>
    %c1 = arith.constant 1 : index
    %c0_9 = arith.constant 0 : index
    %c0_10 = arith.constant 0 : index
    %15 = vector.load %arg1[%c1, %c0_9, %c0_10] : memref<4x36x384xbf16, #tpu.memory_space<vmem>>, vector<1x36x384xbf16>
    %16 = vector.shape_cast %15 : vector<1x36x384xbf16> to vector<36x384xbf16>
    %cst_11 = arith.constant dense<0.000000e+00> : vector<8x384xf32>
    %17 = tpu.matmul %0, %16, %cst_11 {dimension_numbers = #tpu.dot_dimension_numbers<[1], [0], [0], [1], [0, 0, 1, 1], [], []>} : vector<8x36xbf16>, vector<36x384xbf16>, vector<8x384xf32> -> vector<8x384xf32>
    %18 = vector.broadcast %1 : vector<8x1xf32> to vector<8x384xf32>
    %19 = arith.addf %17, %18 : vector<8x384xf32>
    %cst_12 = arith.constant 5.000000e-01 : f32
    %20 = vector.broadcast %cst_12 : f32 to vector<8x384xf32>
    %21 = arith.mulf %20, %19 : vector<8x384xf32>
    %cst_13 = arith.constant 0.707106769 : f32
    %22 = vector.broadcast %cst_13 : f32 to vector<8x384xf32>
    %23 = arith.mulf %19, %22 : vector<8x384xf32>
    %24 = math.erf %23 : vector<8x384xf32>
    %cst_14 = arith.constant 1.000000e+00 : f32
    %25 = vector.broadcast %cst_14 : f32 to vector<8x384xf32>
    %26 = arith.addf %25, %24 : vector<8x384xf32>
    %27 = arith.mulf %21, %26 : vector<8x384xf32>
    %28 = arith.maximumf %14, %27 : vector<8x384xf32>
    %c2 = arith.constant 2 : index
    %c0_15 = arith.constant 0 : index
    %c0_16 = arith.constant 0 : index
    %29 = vector.load %arg1[%c2, %c0_15, %c0_16] : memref<4x36x384xbf16, #tpu.memory_space<vmem>>, vector<1x36x384xbf16>
    %30 = vector.shape_cast %29 : vector<1x36x384xbf16> to vector<36x384xbf16>
    %cst_17 = arith.constant dense<0.000000e+00> : vector<8x384xf32>
    %31 = tpu.matmul %0, %30, %cst_17 {dimension_numbers = #tpu.dot_dimension_numbers<[1], [0], [0], [1], [0, 0, 1, 1], [], []>} : vector<8x36xbf16>, vector<36x384xbf16>, vector<8x384xf32> -> vector<8x384xf32>
    %32 = vector.broadcast %1 : vector<8x1xf32> to vector<8x384xf32>
    %33 = arith.addf %31, %32 : vector<8x384xf32>
    %cst_18 = arith.constant 5.000000e-01 : f32
    %34 = vector.broadcast %cst_18 : f32 to vector<8x384xf32>
    %35 = arith.mulf %34, %33 : vector<8x384xf32>
    %cst_19 = arith.constant 0.707106769 : f32
    %36 = vector.broadcast %cst_19 : f32 to vector<8x384xf32>
    %37 = arith.mulf %33, %36 : vector<8x384xf32>
    %38 = math.erf %37 : vector<8x384xf32>
    %cst_20 = arith.constant 1.000000e+00 : f32
    %39 = vector.broadcast %cst_20 : f32 to vector<8x384xf32>
    %40 = arith.addf %39, %38 : vector<8x384xf32>
    %41 = arith.mulf %35, %40 : vector<8x384xf32>
    %42 = arith.maximumf %28, %41 : vector<8x384xf32>
    %c3 = arith.constant 3 : index
    %c0_21 = arith.constant 0 : index
    %c0_22 = arith.constant 0 : index
    %43 = vector.load %arg1[%c3, %c0_21, %c0_22] : memref<4x36x384xbf16, #tpu.memory_space<vmem>>, vector<1x36x384xbf16>
    %44 = vector.shape_cast %43 : vector<1x36x384xbf16> to vector<36x384xbf16>
    %cst_23 = arith.constant dense<0.000000e+00> : vector<8x384xf32>
    %45 = tpu.matmul %0, %44, %cst_23 {dimension_numbers = #tpu.dot_dimension_numbers<[1], [0], [0], [1], [0, 0, 1, 1], [], []>} : vector<8x36xbf16>, vector<36x384xbf16>, vector<8x384xf32> -> vector<8x384xf32>
    %46 = vector.broadcast %1 : vector<8x1xf32> to vector<8x384xf32>
    %47 = arith.addf %45, %46 : vector<8x384xf32>
    %cst_24 = arith.constant 5.000000e-01 : f32
    %48 = vector.broadcast %cst_24 : f32 to vector<8x384xf32>
    %49 = arith.mulf %48, %47 : vector<8x384xf32>
    %cst_25 = arith.constant 0.707106769 : f32
    %50 = vector.broadcast %cst_25 : f32 to vector<8x384xf32>
    %51 = arith.mulf %47, %50 : vector<8x384xf32>
    %52 = math.erf %51 : vector<8x384xf32>
    %cst_26 = arith.constant 1.000000e+00 : f32
    %53 = vector.broadcast %cst_26 : f32 to vector<8x384xf32>
    %54 = arith.addf %53, %52 : vector<8x384xf32>
    %55 = arith.mulf %49, %54 : vector<8x384xf32>
    %56 = arith.maximumf %42, %55 : vector<8x384xf32>
    %c0_27 = arith.constant 0 : index
    %c0_28 = arith.constant 0 : index
    %57 = vector.load %arg4[%c0_27, %c0_28] : memref<8x384xf32, #tpu.memory_space<vmem>>, vector<8x384xf32>
    tpu.vector_store %arg4[%c0_27, %c0_28], %56 {strides = array<i32>} : memref<8x384xf32, #tpu.memory_space<vmem>>, vector<8x384xf32>,
    return
  }
  func.func @transform_0(%arg0: i32) -> (i32, i32, i32) {
    %c0_i32 = arith.constant 0 : i32
    %c0_i32_0 = arith.constant 0 : i32
    %c0_i32_1 = arith.constant 0 : i32
    return %c0_i32, %c0_i32_0, %arg0 : i32, i32, i32
  }
  func.func @transform_1(%arg0: i32) -> (i32, i32) {
    %c0_i32 = arith.constant 0 : i32
    %c0_i32_0 = arith.constant 0 : i32
    %c0_i32_1 = arith.constant 0 : i32
    return %c0_i32, %c0_i32_0 : i32, i32
  }
  func.func @transform_2(%arg0: i32) -> (i32, i32) {
    %c0_i32 = arith.constant 0 : i32
    %c0_i32_0 = arith.constant 0 : i32
    %c0_i32_1 = arith.constant 0 : i32
    return %c0_i32, %c0_i32_0 : i32, i32
  }
  func.func @transform_3(%arg0: i32) -> (i32, i32) {
    %c0_i32 = arith.constant 0 : i32
    %c0_i32_0 = arith.constant 0 : i32
    return %c0_i32, %arg0 : i32, i32
  }
}

module attributes {stable_mosaic.version = 11 : i64} {
  func.func @_conv_act_pool_kernel(%arg0: i32, %arg1: memref<4x72x200xbf16, #tpu.memory_space<vmem>>, %arg2: memref<16x72xbf16, #tpu.memory_space<vmem>>, %arg3: memref<16x1xf32, #tpu.memory_space<vmem>>, %arg4: memref<16x200xf32, #tpu.memory_space<vmem>>) attributes {dimension_semantics = [#tpu.dimension_semantics<parallel>], iteration_bounds = array<i64: 1>, scalar_prefetch = 0 : i64, scratch_operands = 0 : i64, tpu.core_type = #tpu.core_type<tc>, window_params = [{transform_indices = @transform_0, window_bounds = array<i64: 4, 72, 200>}, {pipeline_mode = #tpu.pipeline_mode<synchronous>, transform_indices = @transform_1, window_bounds = array<i64: 16, 72>}, {pipeline_mode = #tpu.pipeline_mode<synchronous>, transform_indices = @transform_2, window_bounds = array<i64: 16, 1>}, {transform_indices = @transform_3, window_bounds = array<i64: 16, 200>}]} {
    %c0 = arith.constant 0 : index
    %c0_0 = arith.constant 0 : index
    %0 = vector.load %arg2[%c0, %c0_0] : memref<16x72xbf16, #tpu.memory_space<vmem>>, vector<16x72xbf16>
    %c0_1 = arith.constant 0 : index
    %c0_2 = arith.constant 0 : index
    %1 = vector.load %arg3[%c0_1, %c0_2] : memref<16x1xf32, #tpu.memory_space<vmem>>, vector<16x1xf32>
    %c0_3 = arith.constant 0 : index
    %c0_4 = arith.constant 0 : index
    %c0_5 = arith.constant 0 : index
    %2 = vector.load %arg1[%c0_3, %c0_4, %c0_5] : memref<4x72x200xbf16, #tpu.memory_space<vmem>>, vector<1x72x200xbf16>
    %3 = vector.shape_cast %2 : vector<1x72x200xbf16> to vector<72x200xbf16>
    %cst = arith.constant dense<0.000000e+00> : vector<16x200xf32>
    %4 = tpu.matmul %0, %3, %cst {dimension_numbers = #tpu.dot_dimension_numbers<[1], [0], [0], [1], [0, 0, 1, 1], [], []>} : vector<16x72xbf16>, vector<72x200xbf16>, vector<16x200xf32> -> vector<16x200xf32>
    %5 = vector.broadcast %1 : vector<16x1xf32> to vector<16x200xf32>
    %6 = arith.addf %4, %5 : vector<16x200xf32>
    %cst_6 = arith.constant 5.000000e-01 : f32
    %7 = vector.broadcast %cst_6 : f32 to vector<16x200xf32>
    %8 = arith.mulf %7, %6 : vector<16x200xf32>
    %cst_7 = arith.constant 0.707106769 : f32
    %9 = vector.broadcast %cst_7 : f32 to vector<16x200xf32>
    %10 = arith.mulf %6, %9 : vector<16x200xf32>
    %11 = math.erf %10 : vector<16x200xf32>
    %cst_8 = arith.constant 1.000000e+00 : f32
    %12 = vector.broadcast %cst_8 : f32 to vector<16x200xf32>
    %13 = arith.addf %12, %11 : vector<16x200xf32>
    %14 = arith.mulf %8, %13 : vector<16x200xf32>
    %c1 = arith.constant 1 : index
    %c0_9 = arith.constant 0 : index
    %c0_10 = arith.constant 0 : index
    %15 = vector.load %arg1[%c1, %c0_9, %c0_10] : memref<4x72x200xbf16, #tpu.memory_space<vmem>>, vector<1x72x200xbf16>
    %16 = vector.shape_cast %15 : vector<1x72x200xbf16> to vector<72x200xbf16>
    %cst_11 = arith.constant dense<0.000000e+00> : vector<16x200xf32>
    %17 = tpu.matmul %0, %16, %cst_11 {dimension_numbers = #tpu.dot_dimension_numbers<[1], [0], [0], [1], [0, 0, 1, 1], [], []>} : vector<16x72xbf16>, vector<72x200xbf16>, vector<16x200xf32> -> vector<16x200xf32>
    %18 = vector.broadcast %1 : vector<16x1xf32> to vector<16x200xf32>
    %19 = arith.addf %17, %18 : vector<16x200xf32>
    %cst_12 = arith.constant 5.000000e-01 : f32
    %20 = vector.broadcast %cst_12 : f32 to vector<16x200xf32>
    %21 = arith.mulf %20, %19 : vector<16x200xf32>
    %cst_13 = arith.constant 0.707106769 : f32
    %22 = vector.broadcast %cst_13 : f32 to vector<16x200xf32>
    %23 = arith.mulf %19, %22 : vector<16x200xf32>
    %24 = math.erf %23 : vector<16x200xf32>
    %cst_14 = arith.constant 1.000000e+00 : f32
    %25 = vector.broadcast %cst_14 : f32 to vector<16x200xf32>
    %26 = arith.addf %25, %24 : vector<16x200xf32>
    %27 = arith.mulf %21, %26 : vector<16x200xf32>
    %28 = arith.maximumf %14, %27 : vector<16x200xf32>
    %c2 = arith.constant 2 : index
    %c0_15 = arith.constant 0 : index
    %c0_16 = arith.constant 0 : index
    %29 = vector.load %arg1[%c2, %c0_15, %c0_16] : memref<4x72x200xbf16, #tpu.memory_space<vmem>>, vector<1x72x200xbf16>
    %30 = vector.shape_cast %29 : vector<1x72x200xbf16> to vector<72x200xbf16>
    %cst_17 = arith.constant dense<0.000000e+00> : vector<16x200xf32>
    %31 = tpu.matmul %0, %30, %cst_17 {dimension_numbers = #tpu.dot_dimension_numbers<[1], [0], [0], [1], [0, 0, 1, 1], [], []>} : vector<16x72xbf16>, vector<72x200xbf16>, vector<16x200xf32> -> vector<16x200xf32>
    %32 = vector.broadcast %1 : vector<16x1xf32> to vector<16x200xf32>
    %33 = arith.addf %31, %32 : vector<16x200xf32>
    %cst_18 = arith.constant 5.000000e-01 : f32
    %34 = vector.broadcast %cst_18 : f32 to vector<16x200xf32>
    %35 = arith.mulf %34, %33 : vector<16x200xf32>
    %cst_19 = arith.constant 0.707106769 : f32
    %36 = vector.broadcast %cst_19 : f32 to vector<16x200xf32>
    %37 = arith.mulf %33, %36 : vector<16x200xf32>
    %38 = math.erf %37 : vector<16x200xf32>
    %cst_20 = arith.constant 1.000000e+00 : f32
    %39 = vector.broadcast %cst_20 : f32 to vector<16x200xf32>
    %40 = arith.addf %39, %38 : vector<16x200xf32>
    %41 = arith.mulf %35, %40 : vector<16x200xf32>
    %42 = arith.maximumf %28, %41 : vector<16x200xf32>
    %c3 = arith.constant 3 : index
    %c0_21 = arith.constant 0 : index
    %c0_22 = arith.constant 0 : index
    %43 = vector.load %arg1[%c3, %c0_21, %c0_22] : memref<4x72x200xbf16, #tpu.memory_space<vmem>>, vector<1x72x200xbf16>
    %44 = vector.shape_cast %43 : vector<1x72x200xbf16> to vector<72x200xbf16>
    %cst_23 = arith.constant dense<0.000000e+00> : vector<16x200xf32>
    %45 = tpu.matmul %0, %44, %cst_23 {dimension_numbers = #tpu.dot_dimension_numbers<[1], [0], [0], [1], [0, 0, 1, 1], [], []>} : vector<16x72xbf16>, vector<72x200xbf16>, vector<16x200xf32> -> vector<16x200xf32>
    %46 = vector.broadcast %1 : vector<16x1xf32> to vector<16x200xf32>
    %47 = arith.addf %45, %46 : vector<16x200xf32>
    %cst_24 = arith.constant 5.000000e-01 : f32
    %48 = vector.broadcast %cst_24 : f32 to vector<16x200xf32>
    %49 = arith.mulf %48, %47 : vector<16x200xf32>
    %cst_25 = arith.constant 0.707106769 : f32
    %50 = vector.broadcast %cst_25 : f32 to vector<16x200xf32>
    %51 = arith.mulf %47, %50 : vector<16x200xf32>
    %52 = math.erf %51 : vector<16x200xf32>
    %cst_26 = arith.constant 1.000000e+00 : f32
    %53 = vector.broadcast %cst_26 : f32 to vector<16x200xf32>
    %54 = arith.addf %53, %52 : vector<16x200xf32>
    %55 = arith.mulf %49, %54 : vector<16x200xf32>
    %56 = arith.maximumf %42, %55 : vector<16x200xf32>
    %c0_27 = arith.constant 0 : index
    %c0_28 = arith.constant 0 : index
    %57 = vector.load %arg4[%c0_27, %c0_28] : memref<16x200xf32, #tpu.memory_space<vmem>>, vector<16x200xf32>
    tpu.vector_store %arg4[%c0_27, %c0_28], %56 {strides = array<i32>} : memref<16x200xf32, #tpu.memory_space<vmem>>, vector<16x200xf32>,
    return
  }
  func.func @transform_0(%arg0: i32) -> (i32, i32, i32) {
    %c0_i32 = arith.constant 0 : i32
    %c0_i32_0 = arith.constant 0 : i32
    %c0_i32_1 = arith.constant 0 : i32
    return %c0_i32, %c0_i32_0, %arg0 : i32, i32, i32
  }
  func.func @transform_1(%arg0: i32) -> (i32, i32) {
    %c0_i32 = arith.constant 0 : i32
    %c0_i32_0 = arith.constant 0 : i32
    %c0_i32_1 = arith.constant 0 : i32
    return %c0_i32, %c0_i32_0 : i32, i32
  }
  func.func @transform_2(%arg0: i32) -> (i32, i32) {
    %c0_i32 = arith.constant 0 : i32
    %c0_i32_0 = arith.constant 0 : i32
    %c0_i32_1 = arith.constant 0 : i32
    return %c0_i32, %c0_i32_0 : i32, i32
  }
  func.func @transform_3(%arg0: i32) -> (i32, i32) {
    %c0_i32 = arith.constant 0 : i32
    %c0_i32_0 = arith.constant 0 : i32
    return %c0_i32, %arg0 : i32, i32
  }
}

module attributes {stable_mosaic.version = 11 : i64} {
  func.func @_conv_act_pool_kernel(%arg0: i32, %arg1: memref<4x144x32xbf16, #tpu.memory_space<vmem>>, %arg2: memref<32x144xbf16, #tpu.memory_space<vmem>>, %arg3: memref<32x1xf32, #tpu.memory_space<vmem>>, %arg4: memref<32x32xf32, #tpu.memory_space<vmem>>) attributes {dimension_semantics = [#tpu.dimension_semantics<parallel>], iteration_bounds = array<i64: 1>, scalar_prefetch = 0 : i64, scratch_operands = 0 : i64, tpu.core_type = #tpu.core_type<tc>, window_params = [{transform_indices = @transform_0, window_bounds = array<i64: 4, 144, 32>}, {pipeline_mode = #tpu.pipeline_mode<synchronous>, transform_indices = @transform_1, window_bounds = array<i64: 32, 144>}, {pipeline_mode = #tpu.pipeline_mode<synchronous>, transform_indices = @transform_2, window_bounds = array<i64: 32, 1>}, {transform_indices = @transform_3, window_bounds = array<i64: 32, 32>}]} {
    %c0 = arith.constant 0 : index
    %c0_0 = arith.constant 0 : index
    %0 = vector.load %arg2[%c0, %c0_0] : memref<32x144xbf16, #tpu.memory_space<vmem>>, vector<32x144xbf16>
    %c0_1 = arith.constant 0 : index
    %c0_2 = arith.constant 0 : index
    %1 = vector.load %arg3[%c0_1, %c0_2] : memref<32x1xf32, #tpu.memory_space<vmem>>, vector<32x1xf32>
    %c0_3 = arith.constant 0 : index
    %c0_4 = arith.constant 0 : index
    %c0_5 = arith.constant 0 : index
    %2 = vector.load %arg1[%c0_3, %c0_4, %c0_5] : memref<4x144x32xbf16, #tpu.memory_space<vmem>>, vector<1x144x32xbf16>
    %3 = vector.shape_cast %2 : vector<1x144x32xbf16> to vector<144x32xbf16>
    %cst = arith.constant dense<0.000000e+00> : vector<32x32xf32>
    %4 = tpu.matmul %0, %3, %cst {dimension_numbers = #tpu.dot_dimension_numbers<[1], [0], [0], [1], [0, 0, 1, 1], [], []>} : vector<32x144xbf16>, vector<144x32xbf16>, vector<32x32xf32> -> vector<32x32xf32>
    %5 = vector.broadcast %1 : vector<32x1xf32> to vector<32x32xf32>
    %6 = arith.addf %4, %5 : vector<32x32xf32>
    %cst_6 = arith.constant 5.000000e-01 : f32
    %7 = vector.broadcast %cst_6 : f32 to vector<32x32xf32>
    %8 = arith.mulf %7, %6 : vector<32x32xf32>
    %cst_7 = arith.constant 0.707106769 : f32
    %9 = vector.broadcast %cst_7 : f32 to vector<32x32xf32>
    %10 = arith.mulf %6, %9 : vector<32x32xf32>
    %11 = math.erf %10 : vector<32x32xf32>
    %cst_8 = arith.constant 1.000000e+00 : f32
    %12 = vector.broadcast %cst_8 : f32 to vector<32x32xf32>
    %13 = arith.addf %12, %11 : vector<32x32xf32>
    %14 = arith.mulf %8, %13 : vector<32x32xf32>
    %c1 = arith.constant 1 : index
    %c0_9 = arith.constant 0 : index
    %c0_10 = arith.constant 0 : index
    %15 = vector.load %arg1[%c1, %c0_9, %c0_10] : memref<4x144x32xbf16, #tpu.memory_space<vmem>>, vector<1x144x32xbf16>
    %16 = vector.shape_cast %15 : vector<1x144x32xbf16> to vector<144x32xbf16>
    %cst_11 = arith.constant dense<0.000000e+00> : vector<32x32xf32>
    %17 = tpu.matmul %0, %16, %cst_11 {dimension_numbers = #tpu.dot_dimension_numbers<[1], [0], [0], [1], [0, 0, 1, 1], [], []>} : vector<32x144xbf16>, vector<144x32xbf16>, vector<32x32xf32> -> vector<32x32xf32>
    %18 = vector.broadcast %1 : vector<32x1xf32> to vector<32x32xf32>
    %19 = arith.addf %17, %18 : vector<32x32xf32>
    %cst_12 = arith.constant 5.000000e-01 : f32
    %20 = vector.broadcast %cst_12 : f32 to vector<32x32xf32>
    %21 = arith.mulf %20, %19 : vector<32x32xf32>
    %cst_13 = arith.constant 0.707106769 : f32
    %22 = vector.broadcast %cst_13 : f32 to vector<32x32xf32>
    %23 = arith.mulf %19, %22 : vector<32x32xf32>
    %24 = math.erf %23 : vector<32x32xf32>
    %cst_14 = arith.constant 1.000000e+00 : f32
    %25 = vector.broadcast %cst_14 : f32 to vector<32x32xf32>
    %26 = arith.addf %25, %24 : vector<32x32xf32>
    %27 = arith.mulf %21, %26 : vector<32x32xf32>
    %28 = arith.maximumf %14, %27 : vector<32x32xf32>
    %c2 = arith.constant 2 : index
    %c0_15 = arith.constant 0 : index
    %c0_16 = arith.constant 0 : index
    %29 = vector.load %arg1[%c2, %c0_15, %c0_16] : memref<4x144x32xbf16, #tpu.memory_space<vmem>>, vector<1x144x32xbf16>
    %30 = vector.shape_cast %29 : vector<1x144x32xbf16> to vector<144x32xbf16>
    %cst_17 = arith.constant dense<0.000000e+00> : vector<32x32xf32>
    %31 = tpu.matmul %0, %30, %cst_17 {dimension_numbers = #tpu.dot_dimension_numbers<[1], [0], [0], [1], [0, 0, 1, 1], [], []>} : vector<32x144xbf16>, vector<144x32xbf16>, vector<32x32xf32> -> vector<32x32xf32>
    %32 = vector.broadcast %1 : vector<32x1xf32> to vector<32x32xf32>
    %33 = arith.addf %31, %32 : vector<32x32xf32>
    %cst_18 = arith.constant 5.000000e-01 : f32
    %34 = vector.broadcast %cst_18 : f32 to vector<32x32xf32>
    %35 = arith.mulf %34, %33 : vector<32x32xf32>
    %cst_19 = arith.constant 0.707106769 : f32
    %36 = vector.broadcast %cst_19 : f32 to vector<32x32xf32>
    %37 = arith.mulf %33, %36 : vector<32x32xf32>
    %38 = math.erf %37 : vector<32x32xf32>
    %cst_20 = arith.constant 1.000000e+00 : f32
    %39 = vector.broadcast %cst_20 : f32 to vector<32x32xf32>
    %40 = arith.addf %39, %38 : vector<32x32xf32>
    %41 = arith.mulf %35, %40 : vector<32x32xf32>
    %42 = arith.maximumf %28, %41 : vector<32x32xf32>
    %c3 = arith.constant 3 : index
    %c0_21 = arith.constant 0 : index
    %c0_22 = arith.constant 0 : index
    %43 = vector.load %arg1[%c3, %c0_21, %c0_22] : memref<4x144x32xbf16, #tpu.memory_space<vmem>>, vector<1x144x32xbf16>
    %44 = vector.shape_cast %43 : vector<1x144x32xbf16> to vector<144x32xbf16>
    %cst_23 = arith.constant dense<0.000000e+00> : vector<32x32xf32>
    %45 = tpu.matmul %0, %44, %cst_23 {dimension_numbers = #tpu.dot_dimension_numbers<[1], [0], [0], [1], [0, 0, 1, 1], [], []>} : vector<32x144xbf16>, vector<144x32xbf16>, vector<32x32xf32> -> vector<32x32xf32>
    %46 = vector.broadcast %1 : vector<32x1xf32> to vector<32x32xf32>
    %47 = arith.addf %45, %46 : vector<32x32xf32>
    %cst_24 = arith.constant 5.000000e-01 : f32
    %48 = vector.broadcast %cst_24 : f32 to vector<32x32xf32>
    %49 = arith.mulf %48, %47 : vector<32x32xf32>
    %cst_25 = arith.constant 0.707106769 : f32
    %50 = vector.broadcast %cst_25 : f32 to vector<32x32xf32>
    %51 = arith.mulf %47, %50 : vector<32x32xf32>
    %52 = math.erf %51 : vector<32x32xf32>
    %cst_26 = arith.constant 1.000000e+00 : f32
    %53 = vector.broadcast %cst_26 : f32 to vector<32x32xf32>
    %54 = arith.addf %53, %52 : vector<32x32xf32>
    %55 = arith.mulf %49, %54 : vector<32x32xf32>
    %56 = arith.maximumf %42, %55 : vector<32x32xf32>
    %c0_27 = arith.constant 0 : index
    %c0_28 = arith.constant 0 : index
    %57 = vector.load %arg4[%c0_27, %c0_28] : memref<32x32xf32, #tpu.memory_space<vmem>>, vector<32x32xf32>
    tpu.vector_store %arg4[%c0_27, %c0_28], %56 {strides = array<i32>} : memref<32x32xf32, #tpu.memory_space<vmem>>, vector<32x32xf32>,
    return
  }
  func.func @transform_0(%arg0: i32) -> (i32, i32, i32) {
    %c0_i32 = arith.constant 0 : i32
    %c0_i32_0 = arith.constant 0 : i32
    %c0_i32_1 = arith.constant 0 : i32
    return %c0_i32, %c0_i32_0, %arg0 : i32, i32, i32
  }
  func.func @transform_1(%arg0: i32) -> (i32, i32) {
    %c0_i32 = arith.constant 0 : i32
    %c0_i32_0 = arith.constant 0 : i32
    %c0_i32_1 = arith.constant 0 : i32
    return %c0_i32, %c0_i32_0 : i32, i32
  }
  func.func @transform_2(%arg0: i32) -> (i32, i32) {
    %c0_i32 = arith.constant 0 : i32
    %c0_i32_0 = arith.constant 0 : i32
    %c0_i32_1 = arith.constant 0 : i32
    return %c0_i32, %c0_i32_0 : i32, i32
  }
  func.func @transform_3(%arg0: i32) -> (i32, i32) {
    %c0_i32 = arith.constant 0 : i32
    %c0_i32_0 = arith.constant 0 : i32
    return %c0_i32, %arg0 : i32, i32
  }
}

module attributes {stable_mosaic.version = 11 : i64} {
  func.func @_reformer_layer_kernel(%arg0: i32, %arg1: memref<1x16x32xf32, #tpu.memory_space<vmem>>, %arg2: memref<1x16x32xf32, #tpu.memory_space<vmem>>, %arg3: memref<1x32xf32, #tpu.memory_space<vmem>>, %arg4: memref<1x32xf32, #tpu.memory_space<vmem>>, %arg5: memref<2x32x16xbf16, #tpu.memory_space<vmem>>, %arg6: memref<2x32x16xbf16, #tpu.memory_space<vmem>>, %arg7: memref<2x16x32xbf16, #tpu.memory_space<vmem>>, %arg8: memref<1x32xf32, #tpu.memory_space<vmem>>, %arg9: memref<1x32xf32, #tpu.memory_space<vmem>>, %arg10: memref<1x32xf32, #tpu.memory_space<vmem>>, %arg11: memref<32x128xbf16, #tpu.memory_space<vmem>>, %arg12: memref<1x128xf32, #tpu.memory_space<vmem>>, %arg13: memref<128x32xbf16, #tpu.memory_space<vmem>>, %arg14: memref<1x32xf32, #tpu.memory_space<vmem>>, %arg15: memref<1x16x32xf32, #tpu.memory_space<vmem>>, %arg16: memref<1x16x32xf32, #tpu.memory_space<vmem>>) attributes {dimension_semantics = [#tpu.dimension_semantics<parallel>], iteration_bounds = array<i64: 2>, scalar_prefetch = 0 : i64, scratch_operands = 0 : i64, tpu.core_type = #tpu.core_type<tc>, window_params = [{transform_indices = @transform_0, window_bounds = array<i64: 1, 16, 32>}, {transform_indices = @transform_1, window_bounds = array<i64: 1, 16, 32>}, {pipeline_mode = #tpu.pipeline_mode<synchronous>, transform_indices = @transform_2, window_bounds = array<i64: 1, 32>}, {pipeline_mode = #tpu.pipeline_mode<synchronous>, transform_indices = @transform_3, window_bounds = array<i64: 1, 32>}, {pipeline_mode = #tpu.pipeline_mode<synchronous>, transform_indices = @transform_4, window_bounds = array<i64: 2, 32, 16>}, {pipeline_mode = #tpu.pipeline_mode<synchronous>, transform_indices = @transform_5, window_bounds = array<i64: 2, 32, 16>}, {pipeline_mode = #tpu.pipeline_mode<synchronous>, transform_indices = @transform_6, window_bounds = array<i64: 2, 16, 32>}, {pipeline_mode = #tpu.pipeline_mode<synchronous>, transform_indices = @transform_7, window_bounds = array<i64: 1, 32>}, {pipeline_mode = #tpu.pipeline_mode<synchronous>, transform_indices = @transform_8, window_bounds = array<i64: 1, 32>}, {pipeline_mode = #tpu.pipeline_mode<synchronous>, transform_indices = @transform_9, window_bounds = array<i64: 1, 32>}, {pipeline_mode = #tpu.pipeline_mode<synchronous>, transform_indices = @transform_10, window_bounds = array<i64: 32, 128>}, {pipeline_mode = #tpu.pipeline_mode<synchronous>, transform_indices = @transform_11, window_bounds = array<i64: 1, 128>}, {pipeline_mode = #tpu.pipeline_mode<synchronous>, transform_indices = @transform_12, window_bounds = array<i64: 128, 32>}, {pipeline_mode = #tpu.pipeline_mode<synchronous>, transform_indices = @transform_13, window_bounds = array<i64: 1, 32>}, {transform_indices = @transform_14, window_bounds = array<i64: 1, 16, 32>}, {transform_indices = @transform_15, window_bounds = array<i64: 1, 16, 32>}]} {
    %c0 = arith.constant 0 : index
    %c0_0 = arith.constant 0 : index
    %c0_1 = arith.constant 0 : index
    %0 = vector.load %arg1[%c0, %c0_0, %c0_1] : memref<1x16x32xf32, #tpu.memory_space<vmem>>, vector<1x16x32xf32>
    %1 = vector.shape_cast %0 : vector<1x16x32xf32> to vector<16x32xf32>
    %c0_2 = arith.constant 0 : index
    %c0_3 = arith.constant 0 : index
    %c0_4 = arith.constant 0 : index
    %2 = vector.load %arg2[%c0_2, %c0_3, %c0_4] : memref<1x16x32xf32, #tpu.memory_space<vmem>>, vector<1x16x32xf32>
    %3 = vector.shape_cast %2 : vector<1x16x32xf32> to vector<16x32xf32>
    %c0_5 = arith.constant 0 : index
    %c0_6 = arith.constant 0 : index
    %4 = vector.load %arg3[%c0_5, %c0_6] : memref<1x32xf32, #tpu.memory_space<vmem>>, vector<1x32xf32>
    %c0_7 = arith.constant 0 : index
    %c0_8 = arith.constant 0 : index
    %5 = vector.load %arg4[%c0_7, %c0_8] : memref<1x32xf32, #tpu.memory_space<vmem>>, vector<1x32xf32>
    %cst = arith.constant dense<0.000000e+00> : vector<16xf32>
    %6 = vector.multi_reduction <add>, %3, %cst [1] : vector<16x32xf32> to vector<16xf32>
    %7 = vector.shape_cast %6 : vector<16xf32> to vector<16x1xf32>
    %cst_9 = arith.constant 3.200000e+01 : f32
    %8 = vector.broadcast %cst_9 : f32 to vector<16x1xf32>
    %9 = arith.divf %7, %8 : vector<16x1xf32>
    %10 = vector.broadcast %9 : vector<16x1xf32> to vector<16x32xf32>
    %11 = arith.subf %3, %10 : vector<16x32xf32>
    %12 = arith.mulf %11, %11 : vector<16x32xf32>
    %cst_10 = arith.constant dense<0.000000e+00> : vector<16xf32>
    %13 = vector.multi_reduction <add>, %12, %cst_10 [1] : vector<16x32xf32> to vector<16xf32>
    %14 = vector.shape_cast %13 : vector<16xf32> to vector<16x1xf32>
    %cst_11 = arith.constant 3.200000e+01 : f32
    %15 = vector.broadcast %cst_11 : f32 to vector<16x1xf32>
    %16 = arith.divf %14, %15 : vector<16x1xf32>
    %cst_12 = arith.constant 9.99999974E-6 : f32
    %17 = vector.broadcast %cst_12 : f32 to vector<16x1xf32>
    %18 = arith.addf %16, %17 : vector<16x1xf32>
    %19 = math.rsqrt %18 : vector<16x1xf32>
    %20 = vector.broadcast %19 : vector<16x1xf32> to vector<16x32xf32>
    %21 = arith.mulf %11, %20 : vector<16x32xf32>
    %22 = vector.broadcast %4 : vector<1x32xf32> to vector<16x32xf32>
    %23 = arith.mulf %21, %22 : vector<16x32xf32>
    %24 = vector.broadcast %5 : vector<1x32xf32> to vector<16x32xf32>
    %25 = arith.addf %23, %24 : vector<16x32xf32>
    %26 = arith.truncf %25 : vector<16x32xf32> to vector<16x32xbf16>
    %27 = tpu.iota {dimensions = array<i32: 0>} : vector<16x16xi32>
    %28 = tpu.iota {dimensions = array<i32: 1>} : vector<16x16xi32>
    %29 = arith.cmpi eq, %27, %28 : vector<16x16xi32>
    %c0_13 = arith.constant 0 : index
    %c0_14 = arith.constant 0 : index
    %30 = vector.load %arg8[%c0_13, %c0_14] : memref<1x32xf32, #tpu.memory_space<vmem>>, vector<1x32xf32>
    %c0_15 = arith.constant 0 : index
    %c0_16 = arith.constant 0 : index
    %c0_17 = arith.constant 0 : index
    %31 = vector.load %arg5[%c0_15, %c0_16, %c0_17] : memref<2x32x16xbf16, #tpu.memory_space<vmem>>, vector<1x32x16xbf16>
    %32 = vector.shape_cast %31 : vector<1x32x16xbf16> to vector<32x16xbf16>
    %cst_18 = arith.constant dense<0.000000e+00> : vector<16x16xf32>
    %33 = tpu.matmul %26, %32, %cst_18 {dimension_numbers = #tpu.dot_dimension_numbers<[1], [0], [0], [1], [0, 0, 1, 1], [], []>} : vector<16x32xbf16>, vector<32x16xbf16>, vector<16x16xf32> -> vector<16x16xf32>
    %c0_19 = arith.constant 0 : index
    %c0_20 = arith.constant 0 : index
    %c0_21 = arith.constant 0 : index
    %34 = vector.load %arg6[%c0_19, %c0_20, %c0_21] : memref<2x32x16xbf16, #tpu.memory_space<vmem>>, vector<1x32x16xbf16>
    %35 = vector.shape_cast %34 : vector<1x32x16xbf16> to vector<32x16xbf16>
    %cst_22 = arith.constant dense<0.000000e+00> : vector<16x16xf32>
    %36 = tpu.matmul %26, %35, %cst_22 {dimension_numbers = #tpu.dot_dimension_numbers<[1], [0], [0], [1], [0, 0, 1, 1], [], []>} : vector<16x32xbf16>, vector<32x16xbf16>, vector<16x16xf32> -> vector<16x16xf32>
    %37 = arith.mulf %33, %33 : vector<16x16xf32>
    %cst_23 = arith.constant dense<0.000000e+00> : vector<16xf32>
    %38 = vector.multi_reduction <add>, %37, %cst_23 [1] : vector<16x16xf32> to vector<16xf32>
    %39 = vector.shape_cast %38 : vector<16xf32> to vector<16x1xf32>
    %cst_24 = arith.constant 1.000000e-24 : f32
    %40 = vector.broadcast %cst_24 : f32 to vector<16x1xf32>
    %41 = arith.maximumf %39, %40 : vector<16x1xf32>
    %42 = math.rsqrt %41 : vector<16x1xf32>
    %43 = vector.broadcast %42 : vector<16x1xf32> to vector<16x16xf32>
    %44 = arith.mulf %33, %43 : vector<16x16xf32>
    %45 = tpu.transpose %44, [1, 0] : vector<16x16xf32> -> vector<16x16xf32>
    %cst_25 = arith.constant dense<0.000000e+00> : vector<16x16xf32>
    %46 = tpu.matmul %33, %45, %cst_25 {dimension_numbers = #tpu.dot_dimension_numbers<[1], [0], [0], [1], [0, 0, 1, 1], [], []>} : vector<16x16xf32>, vector<16x16xf32>, vector<16x16xf32> -> vector<16x16xf32>
    %cst_26 = arith.constant 2.500000e-01 : f32
    %47 = vector.broadcast %cst_26 : f32 to vector<16x16xf32>
    %48 = arith.mulf %46, %47 : vector<16x16xf32>
    %cst_27 = arith.constant -5.000000e+04 : f32
    %49 = vector.broadcast %cst_27 : f32 to vector<16x16xf32>
    %50 = arith.select %29, %49, %48 : vector<16x16xi1>, vector<16x16xf32>
    %cst_28 = arith.constant dense<0xFF800000> : vector<16xf32>
    %51 = vector.multi_reduction <maximumf>, %50, %cst_28 [1] : vector<16x16xf32> to vector<16xf32>
    %52 = vector.shape_cast %51 : vector<16xf32> to vector<16x1xf32>
    %53 = vector.broadcast %52 : vector<16x1xf32> to vector<16x16xf32>
    %54 = arith.subf %50, %53 : vector<16x16xf32>
    %55 = math.exp %54 : vector<16x16xf32>
    %cst_29 = arith.constant dense<0.000000e+00> : vector<16xf32>
    %56 = vector.multi_reduction <add>, %55, %cst_29 [1] : vector<16x16xf32> to vector<16xf32>
    %57 = vector.shape_cast %56 : vector<16xf32> to vector<16x1xf32>
    %58 = tpu.reciprocal %57 {approx = true} : vector<16x1xf32> -> vector<16x1xf32>
    %59 = vector.broadcast %58 : vector<16x1xf32> to vector<16x16xf32>
    %60 = arith.mulf %55, %59 : vector<16x16xf32>
    %cst_30 = arith.constant dense<0.000000e+00> : vector<16x16xf32>
    %61 = tpu.matmul %60, %36, %cst_30 {dimension_numbers = #tpu.dot_dimension_numbers<[1], [0], [0], [1], [0, 0, 1, 1], [], []>} : vector<16x16xf32>, vector<16x16xf32>, vector<16x16xf32> -> vector<16x16xf32>
    %62 = arith.truncf %61 : vector<16x16xf32> to vector<16x16xbf16>
    %c0_31 = arith.constant 0 : index
    %c0_32 = arith.constant 0 : index
    %c0_33 = arith.constant 0 : index
    %63 = vector.load %arg7[%c0_31, %c0_32, %c0_33] : memref<2x16x32xbf16, #tpu.memory_space<vmem>>, vector<1x16x32xbf16>
    %64 = vector.shape_cast %63 : vector<1x16x32xbf16> to vector<16x32xbf16>
    %cst_34 = arith.constant dense<0.000000e+00> : vector<16x32xf32>
    %65 = tpu.matmul %62, %64, %cst_34 {dimension_numbers = #tpu.dot_dimension_numbers<[1], [0], [0], [1], [0, 0, 1, 1], [], []>} : vector<16x16xbf16>, vector<16x32xbf16>, vector<16x32xf32> -> vector<16x32xf32>
    %66 = vector.broadcast %30 : vector<1x32xf32> to vector<16x32xf32>
    %67 = arith.addf %66, %65 : vector<16x32xf32>
    %c1 = arith.constant 1 : index
    %c0_35 = arith.constant 0 : index
    %c0_36 = arith.constant 0 : index
    %68 = vector.load %arg5[%c1, %c0_35, %c0_36] : memref<2x32x16xbf16, #tpu.memory_space<vmem>>, vector<1x32x16xbf16>
    %69 = vector.shape_cast %68 : vector<1x32x16xbf16> to vector<32x16xbf16>
    %cst_37 = arith.constant dense<0.000000e+00> : vector<16x16xf32>
    %70 = tpu.matmul %26, %69, %cst_37 {dimension_numbers = #tpu.dot_dimension_numbers<[1], [0], [0], [1], [0, 0, 1, 1], [], []>} : vector<16x32xbf16>, vector<32x16xbf16>, vector<16x16xf32> -> vector<16x16xf32>
    %c1_38 = arith.constant 1 : index
    %c0_39 = arith.constant 0 : index
    %c0_40 = arith.constant 0 : index
    %71 = vector.load %arg6[%c1_38, %c0_39, %c0_40] : memref<2x32x16xbf16, #tpu.memory_space<vmem>>, vector<1x32x16xbf16>
    %72 = vector.shape_cast %71 : vector<1x32x16xbf16> to vector<32x16xbf16>
    %cst_41 = arith.constant dense<0.000000e+00> : vector<16x16xf32>
    %73 = tpu.matmul %26, %72, %cst_41 {dimension_numbers = #tpu.dot_dimension_numbers<[1], [0], [0], [1], [0, 0, 1, 1], [], []>} : vector<16x32xbf16>, vector<32x16xbf16>, vector<16x16xf32> -> vector<16x16xf32>
    %74 = arith.mulf %70, %70 : vector<16x16xf32>
    %cst_42 = arith.constant dense<0.000000e+00> : vector<16xf32>
    %75 = vector.multi_reduction <add>, %74, %cst_42 [1] : vector<16x16xf32> to vector<16xf32>
    %76 = vector.shape_cast %75 : vector<16xf32> to vector<16x1xf32>
    %cst_43 = arith.constant 1.000000e-24 : f32
    %77 = vector.broadcast %cst_43 : f32 to vector<16x1xf32>
    %78 = arith.maximumf %76, %77 : vector<16x1xf32>
    %79 = math.rsqrt %78 : vector<16x1xf32>
    %80 = vector.broadcast %79 : vector<16x1xf32> to vector<16x16xf32>
    %81 = arith.mulf %70, %80 : vector<16x16xf32>
    %82 = tpu.transpose %81, [1, 0] : vector<16x16xf32> -> vector<16x16xf32>
    %cst_44 = arith.constant dense<0.000000e+00> : vector<16x16xf32>
    %83 = tpu.matmul %70, %82, %cst_44 {dimension_numbers = #tpu.dot_dimension_numbers<[1], [0], [0], [1], [0, 0, 1, 1], [], []>} : vector<16x16xf32>, vector<16x16xf32>, vector<16x16xf32> -> vector<16x16xf32>
    %cst_45 = arith.constant 2.500000e-01 : f32
    %84 = vector.broadcast %cst_45 : f32 to vector<16x16xf32>
    %85 = arith.mulf %83, %84 : vector<16x16xf32>
    %cst_46 = arith.constant -5.000000e+04 : f32
    %86 = vector.broadcast %cst_46 : f32 to vector<16x16xf32>
    %87 = arith.select %29, %86, %85 : vector<16x16xi1>, vector<16x16xf32>
    %cst_47 = arith.constant dense<0xFF800000> : vector<16xf32>
    %88 = vector.multi_reduction <maximumf>, %87, %cst_47 [1] : vector<16x16xf32> to vector<16xf32>
    %89 = vector.shape_cast %88 : vector<16xf32> to vector<16x1xf32>
    %90 = vector.broadcast %89 : vector<16x1xf32> to vector<16x16xf32>
    %91 = arith.subf %87, %90 : vector<16x16xf32>
    %92 = math.exp %91 : vector<16x16xf32>
    %cst_48 = arith.constant dense<0.000000e+00> : vector<16xf32>
    %93 = vector.multi_reduction <add>, %92, %cst_48 [1] : vector<16x16xf32> to vector<16xf32>
    %94 = vector.shape_cast %93 : vector<16xf32> to vector<16x1xf32>
    %95 = tpu.reciprocal %94 {approx = true} : vector<16x1xf32> -> vector<16x1xf32>
    %96 = vector.broadcast %95 : vector<16x1xf32> to vector<16x16xf32>
    %97 = arith.mulf %92, %96 : vector<16x16xf32>
    %cst_49 = arith.constant dense<0.000000e+00> : vector<16x16xf32>
    %98 = tpu.matmul %97, %73, %cst_49 {dimension_numbers = #tpu.dot_dimension_numbers<[1], [0], [0], [1], [0, 0, 1, 1], [], []>} : vector<16x16xf32>, vector<16x16xf32>, vector<16x16xf32> -> vector<16x16xf32>
    %99 = arith.truncf %98 : vector<16x16xf32> to vector<16x16xbf16>
    %c1_50 = arith.constant 1 : index
    %c0_51 = arith.constant 0 : index
    %c0_52 = arith.constant 0 : index
    %100 = vector.load %arg7[%c1_50, %c0_51, %c0_52] : memref<2x16x32xbf16, #tpu.memory_space<vmem>>, vector<1x16x32xbf16>
    %101 = vector.shape_cast %100 : vector<1x16x32xbf16> to vector<16x32xbf16>
    %cst_53 = arith.constant dense<0.000000e+00> : vector<16x32xf32>
    %102 = tpu.matmul %99, %101, %cst_53 {dimension_numbers = #tpu.dot_dimension_numbers<[1], [0], [0], [1], [0, 0, 1, 1], [], []>} : vector<16x16xbf16>, vector<16x32xbf16>, vector<16x32xf32> -> vector<16x32xf32>
    %103 = arith.addf %67, %102 : vector<16x32xf32>
    %104 = arith.addf %1, %103 : vector<16x32xf32>
    %c0_54 = arith.constant 0 : index
    %c0_55 = arith.constant 0 : index
    %105 = vector.load %arg9[%c0_54, %c0_55] : memref<1x32xf32, #tpu.memory_space<vmem>>, vector<1x32xf32>
    %c0_56 = arith.constant 0 : index
    %c0_57 = arith.constant 0 : index
    %106 = vector.load %arg10[%c0_56, %c0_57] : memref<1x32xf32, #tpu.memory_space<vmem>>, vector<1x32xf32>
    %cst_58 = arith.constant dense<0.000000e+00> : vector<16xf32>
    %107 = vector.multi_reduction <add>, %104, %cst_58 [1] : vector<16x32xf32> to vector<16xf32>
    %108 = vector.shape_cast %107 : vector<16xf32> to vector<16x1xf32>
    %cst_59 = arith.constant 3.200000e+01 : f32
    %109 = vector.broadcast %cst_59 : f32 to vector<16x1xf32>
    %110 = arith.divf %108, %109 : vector<16x1xf32>
    %111 = vector.broadcast %110 : vector<16x1xf32> to vector<16x32xf32>
    %112 = arith.subf %104, %111 : vector<16x32xf32>
    %113 = arith.mulf %112, %112 : vector<16x32xf32>
    %cst_60 = arith.constant dense<0.000000e+00> : vector<16xf32>
    %114 = vector.multi_reduction <add>, %113, %cst_60 [1] : vector<16x32xf32> to vector<16xf32>
    %115 = vector.shape_cast %114 : vector<16xf32> to vector<16x1xf32>
    %cst_61 = arith.constant 3.200000e+01 : f32
    %116 = vector.broadcast %cst_61 : f32 to vector<16x1xf32>
    %117 = arith.divf %115, %116 : vector<16x1xf32>
    %cst_62 = arith.constant 9.99999974E-6 : f32
    %118 = vector.broadcast %cst_62 : f32 to vector<16x1xf32>
    %119 = arith.addf %117, %118 : vector<16x1xf32>
    %120 = math.rsqrt %119 : vector<16x1xf32>
    %121 = vector.broadcast %120 : vector<16x1xf32> to vector<16x32xf32>
    %122 = arith.mulf %112, %121 : vector<16x32xf32>
    %123 = vector.broadcast %105 : vector<1x32xf32> to vector<16x32xf32>
    %124 = arith.mulf %122, %123 : vector<16x32xf32>
    %125 = vector.broadcast %106 : vector<1x32xf32> to vector<16x32xf32>
    %126 = arith.addf %124, %125 : vector<16x32xf32>
    %127 = arith.truncf %126 : vector<16x32xf32> to vector<16x32xbf16>
    %c0_63 = arith.constant 0 : index
    %c0_64 = arith.constant 0 : index
    %128 = vector.load %arg11[%c0_63, %c0_64] : memref<32x128xbf16, #tpu.memory_space<vmem>>, vector<32x128xbf16>
    %cst_65 = arith.constant dense<0.000000e+00> : vector<16x128xf32>
    %129 = tpu.matmul %127, %128, %cst_65 {dimension_numbers = #tpu.dot_dimension_numbers<[1], [0], [0], [1], [0, 0, 1, 1], [], []>} : vector<16x32xbf16>, vector<32x128xbf16>, vector<16x128xf32> -> vector<16x128xf32>
    %c0_66 = arith.constant 0 : index
    %c0_67 = arith.constant 0 : index
    %130 = vector.load %arg12[%c0_66, %c0_67] : memref<1x128xf32, #tpu.memory_space<vmem>>, vector<1x128xf32>
    %131 = vector.broadcast %130 : vector<1x128xf32> to vector<16x128xf32>
    %132 = arith.addf %129, %131 : vector<16x128xf32>
    %cst_68 = arith.constant 5.000000e-01 : f32
    %133 = vector.broadcast %cst_68 : f32 to vector<16x128xf32>
    %134 = arith.mulf %133, %132 : vector<16x128xf32>
    %cst_69 = arith.constant 0.707106769 : f32
    %135 = vector.broadcast %cst_69 : f32 to vector<16x128xf32>
    %136 = arith.mulf %132, %135 : vector<16x128xf32>
    %137 = math.erf %136 : vector<16x128xf32>
    %cst_70 = arith.constant 1.000000e+00 : f32
    %138 = vector.broadcast %cst_70 : f32 to vector<16x128xf32>
    %139 = arith.addf %138, %137 : vector<16x128xf32>
    %140 = arith.mulf %134, %139 : vector<16x128xf32>
    %141 = arith.truncf %140 : vector<16x128xf32> to vector<16x128xbf16>
    %c0_71 = arith.constant 0 : index
    %c0_72 = arith.constant 0 : index
    %142 = vector.load %arg13[%c0_71, %c0_72] : memref<128x32xbf16, #tpu.memory_space<vmem>>, vector<128x32xbf16>
    %cst_73 = arith.constant dense<0.000000e+00> : vector<16x32xf32>
    %143 = tpu.matmul %141, %142, %cst_73 {dimension_numbers = #tpu.dot_dimension_numbers<[1], [0], [0], [1], [0, 0, 1, 1], [], []>} : vector<16x128xbf16>, vector<128x32xbf16>, vector<16x32xf32> -> vector<16x32xf32>
    %c0_74 = arith.constant 0 : index
    %c0_75 = arith.constant 0 : index
    %144 = vector.load %arg14[%c0_74, %c0_75] : memref<1x32xf32, #tpu.memory_space<vmem>>, vector<1x32xf32>
    %145 = vector.broadcast %144 : vector<1x32xf32> to vector<16x32xf32>
    %146 = arith.addf %143, %145 : vector<16x32xf32>
    %147 = arith.addf %3, %146 : vector<16x32xf32>
    %c0_76 = arith.constant 0 : index
    %c0_77 = arith.constant 0 : index
    %c0_78 = arith.constant 0 : index
    %148 = vector.load %arg15[%c0_76, %c0_77, %c0_78] : memref<1x16x32xf32, #tpu.memory_space<vmem>>, vector<1x16x32xf32>
    %149 = vector.shape_cast %148 : vector<1x16x32xf32> to vector<16x32xf32>
    %150 = vector.shape_cast %104 : vector<16x32xf32> to vector<1x16x32xf32>
    tpu.vector_store %arg15[%c0_76, %c0_77, %c0_78], %150 {strides = array<i32>} : memref<1x16x32xf32, #tpu.memory_space<vmem>>, vector<1x16x32xf32>,
    %c0_79 = arith.constant 0 : index
    %c0_80 = arith.constant 0 : index
    %c0_81 = arith.constant 0 : index
    %151 = vector.load %arg16[%c0_79, %c0_80, %c0_81] : memref<1x16x32xf32, #tpu.memory_space<vmem>>, vector<1x16x32xf32>
    %152 = vector.shape_cast %151 : vector<1x16x32xf32> to vector<16x32xf32>
    %153 = vector.shape_cast %147 : vector<16x32xf32> to vector<1x16x32xf32>
    tpu.vector_store %arg16[%c0_79, %c0_80, %c0_81], %153 {strides = array<i32>} : memref<1x16x32xf32, #tpu.memory_space<vmem>>, vector<1x16x32xf32>,
    return
  }
  func.func @transform_0(%arg0: i32) -> (i32, i32, i32) {
    %c0_i32 = arith.constant 0 : i32
    %c0_i32_0 = arith.constant 0 : i32
    %c0_i32_1 = arith.constant 0 : i32
    return %arg0, %c0_i32, %c0_i32_0 : i32, i32, i32
  }
  func.func @transform_1(%arg0: i32) -> (i32, i32, i32) {
    %c0_i32 = arith.constant 0 : i32
    %c0_i32_0 = arith.constant 0 : i32
    %c0_i32_1 = arith.constant 0 : i32
    return %arg0, %c0_i32, %c0_i32_0 : i32, i32, i32
  }
  func.func @transform_2(%arg0: i32) -> (i32, i32) {
    %c0_i32 = arith.constant 0 : i32
    %c0_i32_0 = arith.constant 0 : i32
    %c0_i32_1 = arith.constant 0 : i32
    return %c0_i32, %c0_i32_0 : i32, i32
  }
  func.func @transform_3(%arg0: i32) -> (i32, i32) {
    %c0_i32 = arith.constant 0 : i32
    %c0_i32_0 = arith.constant 0 : i32
    %c0_i32_1 = arith.constant 0 : i32
    return %c0_i32, %c0_i32_0 : i32, i32
  }
  func.func @transform_4(%arg0: i32) -> (i32, i32, i32) {
    %c0_i32 = arith.constant 0 : i32
    %c0_i32_0 = arith.constant 0 : i32
    %c0_i32_1 = arith.constant 0 : i32
    %c0_i32_2 = arith.constant 0 : i32
    return %c0_i32, %c0_i32_0, %c0_i32_1 : i32, i32, i32
  }
  func.func @transform_5(%arg0: i32) -> (i32, i32, i32) {
    %c0_i32 = arith.constant 0 : i32
    %c0_i32_0 = arith.constant 0 : i32
    %c0_i32_1 = arith.constant 0 : i32
    %c0_i32_2 = arith.constant 0 : i32
    return %c0_i32, %c0_i32_0, %c0_i32_1 : i32, i32, i32
  }
  func.func @transform_6(%arg0: i32) -> (i32, i32, i32) {
    %c0_i32 = arith.constant 0 : i32
    %c0_i32_0 = arith.constant 0 : i32
    %c0_i32_1 = arith.constant 0 : i32
    %c0_i32_2 = arith.constant 0 : i32
    return %c0_i32, %c0_i32_0, %c0_i32_1 : i32, i32, i32
  }
  func.func @transform_7(%arg0: i32) -> (i32, i32) {
    %c0_i32 = arith.constant 0 : i32
    %c0_i32_0 = arith.constant 0 : i32
    %c0_i32_1 = arith.constant 0 : i32
    return %c0_i32, %c0_i32_0 : i32, i32
  }
  func.func @transform_8(%arg0: i32) -> (i32, i32) {
    %c0_i32 = arith.constant 0 : i32
    %c0_i32_0 = arith.constant 0 : i32
    %c0_i32_1 = arith.constant 0 : i32
    return %c0_i32, %c0_i32_0 : i32, i32
  }
  func.func @transform_9(%arg0: i32) -> (i32, i32) {
    %c0_i32 = arith.constant 0 : i32
    %c0_i32_0 = arith.constant 0 : i32
    %c0_i32_1 = arith.constant 0 : i32
    return %c0_i32, %c0_i32_0 : i32, i32
  }
  func.func @transform_10(%arg0: i32) -> (i32, i32) {
    %c0_i32 = arith.constant 0 : i32
    %c0_i32_0 = arith.constant 0 : i32
    %c0_i32_1 = arith.constant 0 : i32
    return %c0_i32, %c0_i32_0 : i32, i32
  }
  func.func @transform_11(%arg0: i32) -> (i32, i32) {
    %c0_i32 = arith.constant 0 : i32
    %c0_i32_0 = arith.constant 0 : i32
    %c0_i32_1 = arith.constant 0 : i32
    return %c0_i32, %c0_i32_0 : i32, i32
  }
  func.func @transform_12(%arg0: i32) -> (i32, i32) {
    %c0_i32 = arith.constant 0 : i32
    %c0_i32_0 = arith.constant 0 : i32
    %c0_i32_1 = arith.constant 0 : i32
    return %c0_i32, %c0_i32_0 : i32, i32
  }
  func.func @transform_13(%arg0: i32) -> (i32, i32) {
    %c0_i32 = arith.constant 0 : i32
    %c0_i32_0 = arith.constant 0 : i32
    %c0_i32_1 = arith.constant 0 : i32
    return %c0_i32, %c0_i32_0 : i32, i32
  }
  func.func @transform_14(%arg0: i32) -> (i32, i32, i32) {
    %c0_i32 = arith.constant 0 : i32
    %c0_i32_0 = arith.constant 0 : i32
    %c0_i32_1 = arith.constant 0 : i32
    return %arg0, %c0_i32, %c0_i32_0 : i32, i32, i32
  }
  func.func @transform_15(%arg0: i32) -> (i32, i32, i32) {
    %c0_i32 = arith.constant 0 : i32
    %c0_i32_0 = arith.constant 0 : i32
    %c0_i32_1 = arith.constant 0 : i32
    return %arg0, %c0_i32, %c0_i32_0 : i32, i32, i32
  }
}

module attributes {stable_mosaic.version = 11 : i64} {
  func.func @_conv_act_pool_kernel(%arg0: i32, %arg1: memref<4x288x2xbf16, #tpu.memory_space<vmem>>, %arg2: memref<16x288xbf16, #tpu.memory_space<vmem>>, %arg3: memref<16x1xf32, #tpu.memory_space<vmem>>, %arg4: memref<16x2xf32, #tpu.memory_space<vmem>>) attributes {dimension_semantics = [#tpu.dimension_semantics<parallel>], iteration_bounds = array<i64: 1>, scalar_prefetch = 0 : i64, scratch_operands = 0 : i64, tpu.core_type = #tpu.core_type<tc>, window_params = [{transform_indices = @transform_0, window_bounds = array<i64: 4, 288, 2>}, {pipeline_mode = #tpu.pipeline_mode<synchronous>, transform_indices = @transform_1, window_bounds = array<i64: 16, 288>}, {pipeline_mode = #tpu.pipeline_mode<synchronous>, transform_indices = @transform_2, window_bounds = array<i64: 16, 1>}, {transform_indices = @transform_3, window_bounds = array<i64: 16, 2>}]} {
    %c0 = arith.constant 0 : index
    %c0_0 = arith.constant 0 : index
    %0 = vector.load %arg2[%c0, %c0_0] : memref<16x288xbf16, #tpu.memory_space<vmem>>, vector<16x288xbf16>
    %c0_1 = arith.constant 0 : index
    %c0_2 = arith.constant 0 : index
    %1 = vector.load %arg3[%c0_1, %c0_2] : memref<16x1xf32, #tpu.memory_space<vmem>>, vector<16x1xf32>
    %c0_3 = arith.constant 0 : index
    %c0_4 = arith.constant 0 : index
    %c0_5 = arith.constant 0 : index
    %2 = vector.load %arg1[%c0_3, %c0_4, %c0_5] : memref<4x288x2xbf16, #tpu.memory_space<vmem>>, vector<1x288x2xbf16>
    %3 = vector.shape_cast %2 : vector<1x288x2xbf16> to vector<288x2xbf16>
    %cst = arith.constant dense<0.000000e+00> : vector<16x2xf32>
    %4 = tpu.matmul %0, %3, %cst {dimension_numbers = #tpu.dot_dimension_numbers<[1], [0], [0], [1], [0, 0, 1, 1], [], []>} : vector<16x288xbf16>, vector<288x2xbf16>, vector<16x2xf32> -> vector<16x2xf32>
    %5 = vector.broadcast %1 : vector<16x1xf32> to vector<16x2xf32>
    %6 = arith.addf %4, %5 : vector<16x2xf32>
    %cst_6 = arith.constant 5.000000e-01 : f32
    %7 = vector.broadcast %cst_6 : f32 to vector<16x2xf32>
    %8 = arith.mulf %7, %6 : vector<16x2xf32>
    %cst_7 = arith.constant 0.707106769 : f32
    %9 = vector.broadcast %cst_7 : f32 to vector<16x2xf32>
    %10 = arith.mulf %6, %9 : vector<16x2xf32>
    %11 = math.erf %10 : vector<16x2xf32>
    %cst_8 = arith.constant 1.000000e+00 : f32
    %12 = vector.broadcast %cst_8 : f32 to vector<16x2xf32>
    %13 = arith.addf %12, %11 : vector<16x2xf32>
    %14 = arith.mulf %8, %13 : vector<16x2xf32>
    %c1 = arith.constant 1 : index
    %c0_9 = arith.constant 0 : index
    %c0_10 = arith.constant 0 : index
    %15 = vector.load %arg1[%c1, %c0_9, %c0_10] : memref<4x288x2xbf16, #tpu.memory_space<vmem>>, vector<1x288x2xbf16>
    %16 = vector.shape_cast %15 : vector<1x288x2xbf16> to vector<288x2xbf16>
    %cst_11 = arith.constant dense<0.000000e+00> : vector<16x2xf32>
    %17 = tpu.matmul %0, %16, %cst_11 {dimension_numbers = #tpu.dot_dimension_numbers<[1], [0], [0], [1], [0, 0, 1, 1], [], []>} : vector<16x288xbf16>, vector<288x2xbf16>, vector<16x2xf32> -> vector<16x2xf32>
    %18 = vector.broadcast %1 : vector<16x1xf32> to vector<16x2xf32>
    %19 = arith.addf %17, %18 : vector<16x2xf32>
    %cst_12 = arith.constant 5.000000e-01 : f32
    %20 = vector.broadcast %cst_12 : f32 to vector<16x2xf32>
    %21 = arith.mulf %20, %19 : vector<16x2xf32>
    %cst_13 = arith.constant 0.707106769 : f32
    %22 = vector.broadcast %cst_13 : f32 to vector<16x2xf32>
    %23 = arith.mulf %19, %22 : vector<16x2xf32>
    %24 = math.erf %23 : vector<16x2xf32>
    %cst_14 = arith.constant 1.000000e+00 : f32
    %25 = vector.broadcast %cst_14 : f32 to vector<16x2xf32>
    %26 = arith.addf %25, %24 : vector<16x2xf32>
    %27 = arith.mulf %21, %26 : vector<16x2xf32>
    %28 = arith.maximumf %14, %27 : vector<16x2xf32>
    %c2 = arith.constant 2 : index
    %c0_15 = arith.constant 0 : index
    %c0_16 = arith.constant 0 : index
    %29 = vector.load %arg1[%c2, %c0_15, %c0_16] : memref<4x288x2xbf16, #tpu.memory_space<vmem>>, vector<1x288x2xbf16>
    %30 = vector.shape_cast %29 : vector<1x288x2xbf16> to vector<288x2xbf16>
    %cst_17 = arith.constant dense<0.000000e+00> : vector<16x2xf32>
    %31 = tpu.matmul %0, %30, %cst_17 {dimension_numbers = #tpu.dot_dimension_numbers<[1], [0], [0], [1], [0, 0, 1, 1], [], []>} : vector<16x288xbf16>, vector<288x2xbf16>, vector<16x2xf32> -> vector<16x2xf32>
    %32 = vector.broadcast %1 : vector<16x1xf32> to vector<16x2xf32>
    %33 = arith.addf %31, %32 : vector<16x2xf32>
    %cst_18 = arith.constant 5.000000e-01 : f32
    %34 = vector.broadcast %cst_18 : f32 to vector<16x2xf32>
    %35 = arith.mulf %34, %33 : vector<16x2xf32>
    %cst_19 = arith.constant 0.707106769 : f32
    %36 = vector.broadcast %cst_19 : f32 to vector<16x2xf32>
    %37 = arith.mulf %33, %36 : vector<16x2xf32>
    %38 = math.erf %37 : vector<16x2xf32>
    %cst_20 = arith.constant 1.000000e+00 : f32
    %39 = vector.broadcast %cst_20 : f32 to vector<16x2xf32>
    %40 = arith.addf %39, %38 : vector<16x2xf32>
    %41 = arith.mulf %35, %40 : vector<16x2xf32>
    %42 = arith.maximumf %28, %41 : vector<16x2xf32>
    %c3 = arith.constant 3 : index
    %c0_21 = arith.constant 0 : index
    %c0_22 = arith.constant 0 : index
    %43 = vector.load %arg1[%c3, %c0_21, %c0_22] : memref<4x288x2xbf16, #tpu.memory_space<vmem>>, vector<1x288x2xbf16>
    %44 = vector.shape_cast %43 : vector<1x288x2xbf16> to vector<288x2xbf16>
    %cst_23 = arith.constant dense<0.000000e+00> : vector<16x2xf32>
    %45 = tpu.matmul %0, %44, %cst_23 {dimension_numbers = #tpu.dot_dimension_numbers<[1], [0], [0], [1], [0, 0, 1, 1], [], []>} : vector<16x288xbf16>, vector<288x2xbf16>, vector<16x2xf32> -> vector<16x2xf32>
    %46 = vector.broadcast %1 : vector<16x1xf32> to vector<16x2xf32>
    %47 = arith.addf %45, %46 : vector<16x2xf32>
    %cst_24 = arith.constant 5.000000e-01 : f32
    %48 = vector.broadcast %cst_24 : f32 to vector<16x2xf32>
    %49 = arith.mulf %48, %47 : vector<16x2xf32>
    %cst_25 = arith.constant 0.707106769 : f32
    %50 = vector.broadcast %cst_25 : f32 to vector<16x2xf32>
    %51 = arith.mulf %47, %50 : vector<16x2xf32>
    %52 = math.erf %51 : vector<16x2xf32>
    %cst_26 = arith.constant 1.000000e+00 : f32
    %53 = vector.broadcast %cst_26 : f32 to vector<16x2xf32>
    %54 = arith.addf %53, %52 : vector<16x2xf32>
    %55 = arith.mulf %49, %54 : vector<16x2xf32>
    %56 = arith.maximumf %42, %55 : vector<16x2xf32>
    %c0_27 = arith.constant 0 : index
    %c0_28 = arith.constant 0 : index
    %57 = vector.load %arg4[%c0_27, %c0_28] : memref<16x2xf32, #tpu.memory_space<vmem>>, vector<16x2xf32>
    tpu.vector_store %arg4[%c0_27, %c0_28], %56 {strides = array<i32>} : memref<16x2xf32, #tpu.memory_space<vmem>>, vector<16x2xf32>,
    return
  }
  func.func @transform_0(%arg0: i32) -> (i32, i32, i32) {
    %c0_i32 = arith.constant 0 : i32
    %c0_i32_0 = arith.constant 0 : i32
    %c0_i32_1 = arith.constant 0 : i32
    return %c0_i32, %c0_i32_0, %arg0 : i32, i32, i32
  }
  func.func @transform_1(%arg0: i32) -> (i32, i32) {
    %c0_i32 = arith.constant 0 : i32
    %c0_i32_0 = arith.constant 0 : i32
    %c0_i32_1 = arith.constant 0 : i32
    return %c0_i32, %c0_i32_0 : i32, i32
  }
  func.func @transform_2(%arg0: i32) -> (i32, i32) {
    %c0_i32 = arith.constant 0 : i32
    %c0_i32_0 = arith.constant 0 : i32
    %c0_i32_1 = arith.constant 0 : i32
    return %c0_i32, %c0_i32_0 : i32, i32
  }
  func.func @transform_3(%arg0: i32) -> (i32, i32) {
    %c0_i32 = arith.constant 0 : i32
    %c0_i32_0 = arith.constant 0 : i32
    return %c0_i32, %arg0 : i32, i32
  }
}

module attributes {stable_mosaic.version = 11 : i64} {
  func.func @_conv_act_pool_kernel(%arg0: i32, %arg1: memref<1x16x2xbf16, #tpu.memory_space<vmem>>, %arg2: memref<4x16xbf16, #tpu.memory_space<vmem>>, %arg3: memref<4x1xf32, #tpu.memory_space<vmem>>, %arg4: memref<4x2xf32, #tpu.memory_space<vmem>>) attributes {dimension_semantics = [#tpu.dimension_semantics<parallel>], iteration_bounds = array<i64: 1>, scalar_prefetch = 0 : i64, scratch_operands = 0 : i64, tpu.core_type = #tpu.core_type<tc>, window_params = [{transform_indices = @transform_0, window_bounds = array<i64: 1, 16, 2>}, {pipeline_mode = #tpu.pipeline_mode<synchronous>, transform_indices = @transform_1, window_bounds = array<i64: 4, 16>}, {pipeline_mode = #tpu.pipeline_mode<synchronous>, transform_indices = @transform_2, window_bounds = array<i64: 4, 1>}, {transform_indices = @transform_3, window_bounds = array<i64: 4, 2>}]} {
    %c0 = arith.constant 0 : index
    %c0_0 = arith.constant 0 : index
    %0 = vector.load %arg2[%c0, %c0_0] : memref<4x16xbf16, #tpu.memory_space<vmem>>, vector<4x16xbf16>
    %c0_1 = arith.constant 0 : index
    %c0_2 = arith.constant 0 : index
    %1 = vector.load %arg3[%c0_1, %c0_2] : memref<4x1xf32, #tpu.memory_space<vmem>>, vector<4x1xf32>
    %c0_3 = arith.constant 0 : index
    %c0_4 = arith.constant 0 : index
    %c0_5 = arith.constant 0 : index
    %2 = vector.load %arg1[%c0_3, %c0_4, %c0_5] : memref<1x16x2xbf16, #tpu.memory_space<vmem>>, vector<1x16x2xbf16>
    %3 = vector.shape_cast %2 : vector<1x16x2xbf16> to vector<16x2xbf16>
    %cst = arith.constant dense<0.000000e+00> : vector<4x2xf32>
    %4 = tpu.matmul %0, %3, %cst {dimension_numbers = #tpu.dot_dimension_numbers<[1], [0], [0], [1], [0, 0, 1, 1], [], []>} : vector<4x16xbf16>, vector<16x2xbf16>, vector<4x2xf32> -> vector<4x2xf32>
    %5 = vector.broadcast %1 : vector<4x1xf32> to vector<4x2xf32>
    %6 = arith.addf %4, %5 : vector<4x2xf32>
    %cst_6 = arith.constant 5.000000e-01 : f32
    %7 = vector.broadcast %cst_6 : f32 to vector<4x2xf32>
    %8 = arith.mulf %7, %6 : vector<4x2xf32>
    %cst_7 = arith.constant 0.707106769 : f32
    %9 = vector.broadcast %cst_7 : f32 to vector<4x2xf32>
    %10 = arith.mulf %6, %9 : vector<4x2xf32>
    %11 = math.erf %10 : vector<4x2xf32>
    %cst_8 = arith.constant 1.000000e+00 : f32
    %12 = vector.broadcast %cst_8 : f32 to vector<4x2xf32>
    %13 = arith.addf %12, %11 : vector<4x2xf32>
    %14 = arith.mulf %8, %13 : vector<4x2xf32>
    %c0_9 = arith.constant 0 : index
    %c0_10 = arith.constant 0 : index
    %15 = vector.load %arg4[%c0_9, %c0_10] : memref<4x2xf32, #tpu.memory_space<vmem>>, vector<4x2xf32>
    tpu.vector_store %arg4[%c0_9, %c0_10], %14 {strides = array<i32>} : memref<4x2xf32, #tpu.memory_space<vmem>>, vector<4x2xf32>,
    return
  }
  func.func @transform_0(%arg0: i32) -> (i32, i32, i32) {
    %c0_i32 = arith.constant 0 : i32
    %c0_i32_0 = arith.constant 0 : i32
    %c0_i32_1 = arith.constant 0 : i32
    return %c0_i32, %c0_i32_0, %arg0 : i32, i32, i32
  }
  func.func @transform_1(%arg0: i32) -> (i32, i32) {
    %c0_i32 = arith.constant 0 : i32
    %c0_i32_0 = arith.constant 0 : i32
    %c0_i32_1 = arith.constant 0 : i32
    return %c0_i32, %c0_i32_0 : i32, i32
  }
  func.func @transform_2(%arg0: i32) -> (i32, i32) {
    %c0_i32 = arith.constant 0 : i32
    %c0_i32_0 = arith.constant 0 : i32
    %c0_i32_1 = arith.constant 0 : i32
    return %c0_i32, %c0_i32_0 : i32, i32
  }
  func.func @transform_3(%arg0: i32) -> (i32, i32) {
    %c0_i32 = arith.constant 0 : i32
    %c0_i32_0 = arith.constant 0 : i32
    return %c0_i32, %arg0 : i32, i32
  }
}

</mosaic_0001>

<llo_original>
// kernel: covidetector_forward.6
$region0: #{covidetector_forward.6}
  #allocation0 [shape = 'u32[]', space=smem, size = 0x4, offset = 0x4, fixed_abs, tag = 'smem constant byte address 0x4 - core index']
  #allocation1 [shape = 'u32[144,128]{1,0:T(1,128)}', space=vmem, size = 0x12000, scoped, tag = 'internal scratch']
  %s0 = inlined_call_operand.vmem [shape: bf16[4,36,1152], index: 0, kind: input, shape index: {}]
  %s1 = inlined_call_operand.vmem [shape: bf16[8,36], index: 1, kind: input, shape index: {}]
  %s2 = inlined_call_operand.vmem [shape: f32[8,1], index: 2, kind: input, shape index: {}]
  %s3 = inlined_call_operand.vmem [shape: f32[8,1152], index: 3, kind: output, shape index: {}]
  %s4 = sld [smem:[#allocation0]]
  $region71: #{covidetector_forward.6} parent=0
    _
  %s6 = ssub.s32 1, %s4
  %s7 = scalar_select 0, %s6, %s4
  $region1: #{covidetector_forward.6} parent=0
    #allocation2 [shape = 'u8[245760]{0}', space=vmem, size = 0x3c000, scoped, tag = 'input window, operand 0']
    loop: start=0, step=1, limit=5
    $region2: #{covidetector_forward.6} parent=1 // loop_pre_header
      _
    $region3: #{covidetector_forward.6} parent=1 // loop_header
      %s9 = sphi 0, %s13
      %p10 = scmp.ge.s32.totalorder %s9, 5
      %s19 = sphi 0, %s21
      %s22 = sphi 0, %s19
      %s23 = sphi 0, %s22
      %s39 = sphi 0, %s23
      %s43 = sphi 0, %s43
      %s45 = sphi 0, %s43
      %s46 = sphi 0, %s45
      %s60 = sphi 0, %s46
      %s64 = sphi 0, %s64
      %s66 = sphi 0, %s64
      %s67 = sphi 0, %s66
      %s81 = sphi 0, %s67
      %s87 = sphi 0, %s89
      %s90 = sphi 0, %s87
      %s91 = sphi 0, %s90
      %s107 = sphi 0, %s91
    $region4: #{covidetector_forward.6} parent=1 // loop_header_branch
      %12 = sbr.rel (%p10) target = $region8
    $region5: #{covidetector_forward.6} parent=1 // loop_body
      %s14 = ssub.s32 %s9, 1
      %s15 = ssub.s32 %s9, 2
      %s16 = sadd.s32 %s9, 1
      %s17 = ssub.s32 %s9, %s16
      %p18 = scmp.eq.s32.totalorder %s17, 0
      %s20 = sadd.s32 %s19, 1
      %s21 = scalar_select %p18, %s19, %s20
      %p24 = pneg %p18
      %p25 = scmp.eq.s32.totalorder %s9, 2
      %p26 = por %p24, %p25
      %p27 = scmp.ne.s32.totalorder %s19, %s22
      %p28 = scmp.eq.s32.totalorder %s9, 0
      %p29 = por %p27, %p28
      %p30 = scmp.ne.s32.totalorder %s19, %s22
      %p31 = scmp.eq.s32.totalorder %s14, 2
      %p32 = por %p30, %p31
      %p33 = scmp.ne.s32.totalorder %s22, %s23
      %p34 = scmp.eq.s32.totalorder %s14, 0
      %p35 = por %p33, %p34
      %p36 = scmp.ne.s32.totalorder %s22, %s23
      %p37 = scmp.eq.s32.totalorder %s15, 2
      %p38 = por %p36, %p37
      %p40 = scmp.ne.s32.totalorder %s23, %s39
      %p41 = scmp.eq.s32.totalorder %s15, 0
      %p42 = por %p40, %p41
      %s44 = sadd.s32 %s43, 1
      %p47 = scmp.eq.s32.totalorder %s9, 2
      %p48 = scmp.ne.s32.totalorder %s43, %s45
      %p49 = scmp.eq.s32.totalorder %s9, 0
      %p50 = por %p48, %p49
      %p51 = scmp.ne.s32.totalorder %s43, %s45
      %p52 = scmp.eq.s32.totalorder %s14, 2
      %p53 = por %p51, %p52
      %p54 = scmp.ne.s32.totalorder %s45, %s46
      %p55 = scmp.eq.s32.totalorder %s14, 0
      %p56 = por %p54, %p55
      %p57 = scmp.ne.s32.totalorder %s45, %s46
      %p58 = scmp.eq.s32.totalorder %s15, 2
      %p59 = por %p57, %p58
      %p61 = scmp.ne.s32.totalorder %s46, %s60
      %p62 = scmp.eq.s32.totalorder %s15, 0
      %p63 = por %p61, %p62
      %s65 = sadd.s32 %s64, 1
      %p68 = scmp.eq.s32.totalorder %s9, 2
      %p69 = scmp.ne.s32.totalorder %s64, %s66
      %p70 = scmp.eq.s32.totalorder %s9, 0
      %p71 = por %p69, %p70
      %p72 = scmp.ne.s32.totalorder %s64, %s66
      %p73 = scmp.eq.s32.totalorder %s14, 2
      %p74 = por %p72, %p73
      %p75 = scmp.ne.s32.totalorder %s66, %s67
      %p76 = scmp.eq.s32.totalorder %s14, 0
      %p77 = por %p75, %p76
      %p78 = scmp.ne.s32.totalorder %s66, %s67
      %p79 = scmp.eq.s32.totalorder %s15, 2
      %p80 = por %p78, %p79
      %p82 = scmp.ne.s32.totalorder %s67, %s81
      %p83 = scmp.eq.s32.totalorder %s15, 0
      %p84 = por %p82, %p83
      %s85 = ssub.s32 %s9, %s16
      %p86 = scmp.eq.s32.totalorder %s85, 0
      %s88 = sadd.s32 %s87, 1
      %s89 = scalar_select %p86, %s87, %s88
      %p92 = pneg %p86
      %p93 = scmp.eq.s32.totalorder %s9, 2
      %p94 = por %p92, %p93
      %p95 = scmp.ne.s32.totalorder %s87, %s90
      %p96 = scmp.eq.s32.totalorder %s9, 0
      %p97 = por %p95, %p96
      %p98 = scmp.ne.s32.totalorder %s87, %s90
      %p99 = scmp.eq.s32.totalorder %s14, 2
      %p100 = por %p98, %p99
      %p101 = scmp.ne.s32.totalorder %s90, %s91
      %p102 = scmp.eq.s32.totalorder %s14, 0
      %p103 = por %p101, %p102
      %p104 = scmp.ne.s32.totalorder %s90, %s91
      %p105 = scmp.eq.s32.totalorder %s15, 2
      %p106 = por %p104, %p105
      %p108 = scmp.ne.s32.totalorder %s91, %s107
      %p109 = scmp.eq.s32.totalorder %s15, 0
      %p110 = por %p108, %p109
      %p111 = scmp.le.s32.totalorder 1, %s9
      %p112 = scmp.lt.s32.totalorder %s9, 4
      %p113 = pnand %p111, %p112
      %p114 = pneg %p113
      // Predicated region
      $region9: #{covidetector_forward.6} parent=5 // pred_check
        _
      $region10: #{covidetector_forward.6} parent=5 // pred_check_branch
        %116 = sbr.rel (%p113) target = $region12
      $region11: #{covidetector_forward.6} parent=5 // pred_region
        %s117 = ssub.s32 %s9, 1
        // Predicated region
        $region13: #{covidetector_forward.6} parent=11 // pred_check
          %p118 = pneg %p56
        $region14: #{covidetector_forward.6} parent=11 // pred_check_branch
          %120 = sbr.rel (%p118) target = $region16
        $region15: #{covidetector_forward.6} parent=11 // pred_region
          _
        $region16: #{covidetector_forward.6} parent=11 // pred_fallthru
          _
        // Predicated region
        $region17: #{covidetector_forward.6} parent=11 // pred_check
          %p121 = pneg %p77
        $region18: #{covidetector_forward.6} parent=11 // pred_check_branch
          %123 = sbr.rel (%p121) target = $region20
        $region19: #{covidetector_forward.6} parent=11 // pred_region
          _
        $region20: #{covidetector_forward.6} parent=11 // pred_fallthru
          _
      $region12: #{covidetector_forward.6} parent=5 // pred_fallthru
        _
      %p124 = scmp.lt.s32.totalorder %s9, 3
      // Predicated region
      $region21: #{covidetector_forward.6} parent=5 // pred_check
        %p125 = pneg %p124
      $region22: #{covidetector_forward.6} parent=5 // pred_check_branch
        %127 = sbr.rel (%p125) target = $region24
      $region23: #{covidetector_forward.6} parent=5 // pred_region
        // Predicated region
        $region25: #{covidetector_forward.6} parent=23 // pred_check
          %p128 = pneg %p29
        $region26: #{covidetector_forward.6} parent=23 // pred_check_branch
          %130 = sbr.rel (%p128) target = $region28
        $region27: #{covidetector_forward.6} parent=23 // pred_region
          %s131 = sand.u32 %s19, 1
          %s132 = sand.u32 %s19, 1
          %s133 = smul.addr %s132, 240
          %s134 = scalar_lea.vmem [#allocation2], %s133
          %s135 = smul.u32 3, %s9
          %s136 = smul.addr %s135, 4
          %s137 = scalar_lea.vmem %s0, %s136
          // Predicated region
          $region29: #{covidetector_forward.6} parent=27 // pred_check
            _
          $region30: #{covidetector_forward.6} parent=27 // pred_check_branch
            %139 = sbr.rel (0) target = $region32
          $region31: #{covidetector_forward.6} parent=27 // pred_region
            // Predicated region
            $region33: #{covidetector_forward.6} parent=31 // pred_check
              _
            $region34: #{covidetector_forward.6} parent=31 // pred_check_branch
              %141 = sbr.rel (0) target = $region36
            $region35: #{covidetector_forward.6} parent=31 // pred_region
              %s142 = scalar_lea.vmem %s137, 8
              %s143 = scalar_lea.vmem %s134, 8 [#allocation2]
              loop: start=0, step=1, limit=1
              $region37: #{covidetector_forward.6} parent=35 // loop_pre_header
                _
              $region38: #{covidetector_forward.6} parent=35 // loop_header
                %s145 = sphi 0, %s149
                %p146 = scmp.ge.s32.totalorder %s145, 1
                %s150 = sphi %s137, %s137
                %s151 = sphi %s134, %s134
              $region39: #{covidetector_forward.6} parent=35 // loop_header_branch
                %148 = sbr.rel (%p146) target = $region43
              $region40: #{covidetector_forward.6} parent=35 // loop_body
                %v152 = vld [vmem:[%s150] sm:$0xff]
                %153 = vst [vmem:[%s151] sm:$0xff] %v152
                %v154 = vld [vmem:[%s150 + $0x24] sm:$0xff]
                %155 = vst [vmem:[%s151 + $0xc] sm:$0xff] %v154
                %v156 = vld [vmem:[%s150 + $0x48] sm:$0xff]
                %157 = vst [vmem:[%s151 + $0x18] sm:$0xff] %v156
                %v158 = vld [vmem:[%s150 + $0x6c] sm:$0xff]
                %159 = vst [vmem:[%s151 + $0x24] sm:$0xff] %v158
                %v160 = vld [vmem:[%s150 + $0x90] sm:$0xff]
                %161 = vst [vmem:[%s151 + $0x30] sm:$0xff] %v160
                %v162 = vld [vmem:[%s150 + $0xb4] sm:$0xff]
                %163 = vst [vmem:[%s151 + $0x3c] sm:$0xff] %v162
                %v164 = vld [vmem:[%s150 + $0xd8] sm:$0xff]
                %165 = vst [vmem:[%s151 + $0x48] sm:$0xff] %v164
                %v166 = vld [vmem:[%s150 + $0xfc] sm:$0xff]
                %167 = vst [vmem:[%s151 + $0x54] sm:$0xff] %v166
                %v168 = vld [vmem:[%s150 + $0x120] sm:$0xff]
                %169 = vst [vmem:[%s151 + $0x60] sm:$0xff] %v168
                %v170 = vld [vmem:[%s150 + $0x144] sm:$0xff]
                %171 = vst [vmem:[%s151 + $0x6c] sm:$0xff] %v170
                %v172 = vld [vmem:[%s150 + $0x168] sm:$0xff]
                %173 = vst [vmem:[%s151 + $0x78] sm:$0xff] %v172
                %v174 = vld [vmem:[%s150 + $0x18c] sm:$0xff]
                %175 = vst [vmem:[%s151 + $0x84] sm:$0xff] %v174
                %v176 = vld [vmem:[%s150 + $0x1b0] sm:$0xff]
                %177 = vst [vmem:[%s151 + $0x90] sm:$0xff] %v176
                %v178 = vld [vmem:[%s150 + $0x1d4] sm:$0xff]
                %179 = vst [vmem:[%s151 + $0x9c] sm:$0xff] %v178
                %v180 = vld [vmem:[%s150 + $0x1f8] sm:$0xff]
                %181 = vst [vmem:[%s151 + $0xa8] sm:$0xff] %v180
                %v182 = vld [vmem:[%s150 + $0x21c] sm:$0xff]
                %183 = vst [vmem:[%s151 + $0xb4] sm:$0xff] %v182
                %v184 = vld [vmem:[%s150 + $0x240] sm:$0xff]
                %185 = vst [vmem:[%s151 + $0xc0] sm:$0xff] %v184
                %v186 = vld [vmem:[%s150 + $0x264] sm:$0xff]
                %187 = vst [vmem:[%s151 + $0xcc] sm:$0xff] %v186
                %v188 = vld [vmem:[%s150 + $0x288] sm:$0xff]
                %189 = vst [vmem:[%s151 + $0xd8] sm:$0xff] %v188
                %v190 = vld [vmem:[%s150 + $0x2ac] sm:$0xff]
                %191 = vst [vmem:[%s151 + $0xe4] sm:$0xff] %v190
              $region41: #{covidetector_forward.6} parent=35 // loop_footer
                %s149 = sadd.s32 1, %s145
              $region42: #{covidetector_forward.6} parent=35 // loop_footer_branch
                %144 = sbr.rel target = $region38
              $region43: #{covidetector_forward.6} parent=35 // loop_exit
                _
              %s193 = ssub.s32 16, 1
              loop: start=0, step=1, limit=1
              $region44: #{covidetector_forward.6} parent=35 // loop_pre_header
                _
              $region45: #{covidetector_forward.6} parent=35 // loop_header
                %s195 = sphi 0, %s199
                %p196 = scmp.ge.s32.totalorder %s195, 1
                %s200 = sphi %s142, %s142
                %s201 = sphi %s143, %s143
              $region46: #{covidetector_forward.6} parent=35 // loop_header_branch
                %198 = sbr.rel (%p196) target = $region50
              $region47: #{covidetector_forward.6} parent=35 // loop_body
                %v202 = vld [vmem:[%s200] sm:%s193]
                %203 = vst [vmem:[%s201] sm:%s193] %v202
                %v204 = vld [vmem:[%s200 + $0x24] sm:%s193]
                %205 = vst [vmem:[%s201 + $0xc] sm:%s193] %v204
                %v206 = vld [vmem:[%s200 + $0x48] sm:%s193]
                %207 = vst [vmem:[%s201 + $0x18] sm:%s193] %v206
                %v208 = vld [vmem:[%s200 + $0x6c] sm:%s193]
                %209 = vst [vmem:[%s201 + $0x24] sm:%s193] %v208
                %v210 = vld [vmem:[%s200 + $0x90] sm:%s193]
                %211 = vst [vmem:[%s201 + $0x30] sm:%s193] %v210
                %v212 = vld [vmem:[%s200 + $0xb4] sm:%s193]
                %213 = vst [vmem:[%s201 + $0x3c] sm:%s193] %v212
                %v214 = vld [vmem:[%s200 + $0xd8] sm:%s193]
                %215 = vst [vmem:[%s201 + $0x48] sm:%s193] %v214
                %v216 = vld [vmem:[%s200 + $0xfc] sm:%s193]
                %217 = vst [vmem:[%s201 + $0x54] sm:%s193] %v216
                %v218 = vld [vmem:[%s200 + $0x120] sm:%s193]
                %219 = vst [vmem:[%s201 + $0x60] sm:%s193] %v218
                %v220 = vld [vmem:[%s200 + $0x144] sm:%s193]
                %221 = vst [vmem:[%s201 + $0x6c] sm:%s193] %v220
                %v222 = vld [vmem:[%s200 + $0x168] sm:%s193]
                %223 = vst [vmem:[%s201 + $0x78] sm:%s193] %v222
                %v224 = vld [vmem:[%s200 + $0x18c] sm:%s193]
                %225 = vst [vmem:[%s201 + $0x84] sm:%s193] %v224
                %v226 = vld [vmem:[%s200 + $0x1b0] sm:%s193]
                %227 = vst [vmem:[%s201 + $0x90] sm:%s193] %v226
                %v228 = vld [vmem:[%s200 + $0x1d4] sm:%s193]
                %229 = vst [vmem:[%s201 + $0x9c] sm:%s193] %v228
                %v230 = vld [vmem:[%s200 + $0x1f8] sm:%s193]
                %231 = vst [vmem:[%s201 + $0xa8] sm:%s193] %v230
                %v232 = vld [vmem:[%s200 + $0x21c] sm:%s193]
                %233 = vst [vmem:[%s201 + $0xb4] sm:%s193] %v232
                %v234 = vld [vmem:[%s200 + $0x240] sm:%s193]
                %235 = vst [vmem:[%s201 + $0xc0] sm:%s193] %v234
                %v236 = vld [vmem:[%s200 + $0x264] sm:%s193]
                %237 = vst [vmem:[%s201 + $0xcc] sm:%s193] %v236
                %v238 = vld [vmem:[%s200 + $0x288] sm:%s193]
                %239 = vst [vmem:[%s201 + $0xd8] sm:%s193] %v238
                %v240 = vld [vmem:[%s200 + $0x2ac] sm:%s193]
                %241 = vst [vmem:[%s201 + $0xe4] sm:%s193] %v240
              $region48: #{covidetector_forward.6} parent=35 // loop_footer
                %s199 = sadd.s32 1, %s195
              $region49: #{covidetector_forward.6} parent=35 // loop_footer_branch
                %194 = sbr.rel target = $region45
              $region50: #{covidetector_forward.6} parent=35 // loop_exit
                _
            $region36: #{covidetector_forward.6} parent=31 // pred_fallthru
              _
          $region32: #{covidetector_forward.6} parent=27 // pred_fallthru
            _
          %242 = vnop
        $region28: #{covidetector_forward.6} parent=23 // pred_fallthru
          _
      $region24: #{covidetector_forward.6} parent=5 // pred_fallthru
        _
      %p243 = scmp.le.s32.totalorder 1, %s9
      %p244 = scmp.lt.s32.totalorder %s9, 4
      %p245 = pnand %p243, %p244
      %p246 = pneg %p245
      // Predicated region
      $region51: #{covidetector_forward.6} parent=5 // pred_check
        _
      $region52: #{covidetector_forward.6} parent=5 // pred_check_branch
        %248 = sbr.rel (%p245) target = $region54
      $region53: #{covidetector_forward.6} parent=5 // pred_region
        %s249 = ssub.s32 %s9, 1
        %s250 = sand.u32 %s22, 1
        %s251 = sand.u32 %s22, 1
        %s252 = smul.addr %s251, 240
        %s253 = scalar_lea.vmem [#allocation2], %s252
        // Predicated region
        $region55: #{covidetector_forward.6} parent=53 // pred_check
          %p254 = pneg %p35
        $region56: #{covidetector_forward.6} parent=53 // pred_check_branch
          %256 = sbr.rel (%p254) target = $region58
        $region57: #{covidetector_forward.6} parent=53 // pred_region
          _
        $region58: #{covidetector_forward.6} parent=53 // pred_fallthru
          _
        %s257 = sand.u32 %s22, 1
        %s258 = sand.u32 %s22, 1
        %s259 = smul.addr %s258, 240
        %s260 = scalar_lea.vmem [#allocation2], %s259
        %p261 = pneg %p35
        %p262 = pneg %p32
        %p263 = pneg %p56
        %p264 = pneg %p53
        %p265 = pneg %p77
        %p266 = pneg %p74
        %p267 = pneg %p103
        %p268 = pneg %p100
        %s269 = smul.u32 3, %s14
        %p270 = scmp.lt.s32.totalorder %s269, 8
        %s271 = scalar_select %p270, %s269, 8
        %s272 = smul.addr %s271, 8
        %s273 = scalar_lea.vmem %s3, %s272
        %s274 = smul.u32 3, %s14
        %s275 = smul.u32 3, %s14
        %p276 = scmp.lt.s32.totalorder %s275, 8
        %s277 = scalar_select %p276, %s275, 8
        %s278 = smul.addr %s277, 8
        %s279 = scalar_lea.vmem %s3, %s278
        %s280 = smul.u32 3, %s14
        %v282 = vld [vmem:[%s1] sm:$0xf]
        %v283 = vld [vmem:[%s2] sm:$0xff]
        %v284 = vld [vmem:[%s253] sm:$0xff]
        %v285 = vld [vmem:[%s253 + $0x8] sm:$0xf]
        %v286 = vld [vmem:[%s253 + $0xc] sm:$0xff]
        %v287 = vld [vmem:[%s253 + $0x14] sm:$0xf]
        %v288 = vld [vmem:[%s253 + $0x18] sm:$0xff]
        %v289 = vld [vmem:[%s253 + $0x20] sm:$0xf]
        %v290 = vld [vmem:[%s253 + $0x24] sm:$0xff]
        %v291 = vld [vmem:[%s253 + $0x2c] sm:$0xf]
        %v292 = vld [vmem:[%s253 + $0x30] sm:$0x33]
        %v293 = vld [vmem:[%s253 + $0x38] sm:$0x3]
        %295 = vset.pattern.permute.xlu0 0
        %296 = vperm.xlu0 %295, %v283
        %v297 = vpop.permute.xlu0 %296
        %v309 = vunpack.c.l.b16 %v284
        %v310 = vunpack.c.h.b16 %v284
        %v311 = vunpack.c.l.b16 %v285
        %v312 = vunpack.c.l.b16 %v286
        %v313 = vunpack.c.h.b16 %v286
        %v314 = vunpack.c.l.b16 %v287
        %v315 = vunpack.c.l.b16 %v288
        %v316 = vunpack.c.h.b16 %v288
        %v317 = vunpack.c.l.b16 %v289
        %v318 = vunpack.c.l.b16 %v290
        %v319 = vunpack.c.h.b16 %v290
        %v320 = vunpack.c.l.b16 %v291
        %v321 = vunpack.c.l.b16 %v292
        %v322 = vunpack.c.h.b16 %v292
        %v323 = vunpack.c.l.b16 %v293
        %v324 = vpack.c.b16 %v312, %v309
        %v325 = vpack.c.b16 %v313, %v310
        %v326 = vpack.c.b16 %v314, %v311
        %v327 = vpack.c.b16 %v318, %v315
        %v328 = vpack.c.b16 %v319, %v316
        %v329 = vpack.c.b16 %v320, %v317
        %v330 = vpack.c.b16 %v321, %v321
        %v331 = vpack.c.b16 %v322, %v322
        %v332 = vpack.c.b16 %v323, %v323
        %vm339 = vcmask 293888
        %v341 = vsel %vm339, %v282, 0
        %vm343 = vcmask 1041408
        %v345 = vsel %vm343, %v330, 0
        %v348 = vsel %vm343, %v331, 0
        %v351 = vsel %vm343, %v332, 0
        %353 = vmatprep.subr.bf16.mxu0 0
        %354 = vmatpush1.bf16.msra.mxu0 0
        %355 = vmatprep.subr.bf16.mxu0 0
        %356 = vmatpush1.bf16.msra.mxu0 0
        %357 = vmatprep.subr.bf16.mxu0 0
        %358 = vmatpush1.bf16.msra.mxu0 0
        %359 = vmatprep.subr.bf16.mxu0 0
        %360 = vmatpush1.bf16.msra.mxu0 0
        %361 = vmatprep.subr.bf16.mxu0 0
        %362 = vmatpush1.bf16.msra.mxu0 0
        %363 = vmatprep.subr.bf16.mxu0 %v348
        %364 = vmatpush1.bf16.msra.mxu0 %v345
        %365 = vmatprep.subr.bf16.mxu0 %v328
        %366 = vmatpush1.bf16.msra.mxu0 %v327
        %367 = vmatprep.subr.bf16.mxu0 %v325
        %368 = vmatpush1.bf16.msra.mxu0 %v324
        %369 = vmatprep.subr.bf16.mxu0 0
        %370 = vmatpush2.bf16.msra.mxu0 0
        %371 = vmatprep.subr.bf16.mxu0 0
        %372 = vmatpush2.bf16.msra.mxu0 0
        %373 = vmatprep.subr.bf16.mxu0 0
        %374 = vmatpush2.bf16.msra.mxu0 0
        %375 = vmatprep.subr.bf16.mxu0 0
        %376 = vmatpush2.bf16.msra.mxu0 0
        %377 = vmatprep.subr.bf16.mxu0 0
        %378 = vmatpush2.bf16.msra.mxu0 0
        %379 = vmatprep.subr.bf16.mxu0 0
        %380 = vmatpush2.bf16.msra.mxu0 0
        %381 = vmatprep.subr.bf16.mxu0 0
        %382 = vmatpush2.bf16.msra.mxu0 0
        %383 = vmatprep.subr.bf16.mxu0 0
        %384 = vmatpush2.bf16.msra.mxu0 0
        %385 = vmatprep.mubr.bf16.mxu0 0
        %386 = vmatmul.mubr.bf16.gmra.mxu0 %v341
        %v387 = vpop.f32.mrf.mxu0
        %v388 = vadd.f32 %v297, %v387
        %v389 = vpop.f32.mrf.mxu0
        %v390 = vadd.f32 %v297, %v389
        %v391 = vpop.f32.mrf.mxu0
        %v392 = vpop.f32.mrf.mxu0
        %393 = vdwg.mxu0
        %394 = vmatprep.subr.bf16.mxu0 0
        %395 = vmatpush1.bf16.msra.mxu0 0
        %396 = vmatprep.subr.bf16.mxu0 0
        %397 = vmatpush1.bf16.msra.mxu0 0
        %398 = vmatprep.subr.bf16.mxu0 0
        %399 = vmatpush1.bf16.msra.mxu0 0
        %400 = vmatprep.subr.bf16.mxu0 0
        %401 = vmatpush1.bf16.msra.mxu0 0
        %402 = vmatprep.subr.bf16.mxu0 0
        %403 = vmatpush1.bf16.msra.mxu0 0
        %404 = vmatprep.subr.bf16.mxu0 0
        %405 = vmatpush1.bf16.msra.mxu0 %v351
        %406 = vmatprep.subr.bf16.mxu0 0
        %407 = vmatpush1.bf16.msra.mxu0 %v329
        %408 = vmatprep.subr.bf16.mxu0 0
        %409 = vmatpush1.bf16.msra.mxu0 %v326
        %410 = vmatprep.subr.bf16.mxu0 0
        %411 = vmatpush2.bf16.msra.mxu0 0
        %412 = vmatprep.subr.bf16.mxu0 0
        %413 = vmatpush2.bf16.msra.mxu0 0
        %414 = vmatprep.subr.bf16.mxu0 0
        %415 = vmatpush2.bf16.msra.mxu0 0
        %416 = vmatprep.subr.bf16.mxu0 0
        %417 = vmatpush2.bf16.msra.mxu0 0
        %418 = vmatprep.subr.bf16.mxu0 0
        %419 = vmatpush2.bf16.msra.mxu0 0
        %420 = vmatprep.subr.bf16.mxu0 0
        %421 = vmatpush2.bf16.msra.mxu0 0
        %422 = vmatprep.subr.bf16.mxu0 0
        %423 = vmatpush2.bf16.msra.mxu0 0
        %424 = vmatprep.subr.bf16.mxu0 0
        %425 = vmatpush2.bf16.msra.mxu0 0
        %426 = vmatprep.mubr.bf16.mxu0 0
        %427 = vmatmul.mubr.bf16.gmra.mxu0 %v341
        %v428 = vpop.f32.mrf.mxu0
        %v429 = vadd.f32 %v297, %v428
        %v430 = vpop.f32.mrf.mxu0
        %v431 = vpop.f32.mrf.mxu0
        %v432 = vpop.f32.mrf.mxu0
        %433 = vdwg.mxu0
        %v434 = vmul.f32 %v388, 0.5
        %v435 = vmul.f32 %v390, 0.5
        %v436 = vmul.f32 %v429, 0.5
        %v437 = vmul.f32 %v388, 0.70710677
        %v438 = vmul.f32 %v390, 0.70710677
        %v439 = vmul.f32 %v429, 0.70710677
        %v440 = verf.f32.pop %v437
        %v441 = verf.f32.pop %v438
        %v442 = verf.f32.pop %v439
        %v443 = vadd.f32 %v440, 1.0
        %v444 = vadd.f32 %v441, 1.0
        %v445 = vadd.f32 %v442, 1.0
        %v446 = vmul.f32 %v434, %v443
        %v447 = vmul.f32 %v435, %v444
        %v448 = vmul.f32 %v436, %v445
        %s449 = scalar_lea.vmem %s253, 60 [#allocation2]
        %v450 = vld [vmem:[%s449] sm:$0xff]
        %v451 = vld [vmem:[%s449 + $0x8] sm:$0xf]
        %v452 = vld [vmem:[%s449 + $0xc] sm:$0xff]
        %v453 = vld [vmem:[%s449 + $0x14] sm:$0xf]
        %v454 = vld [vmem:[%s449 + $0x18] sm:$0xff]
        %v455 = vld [vmem:[%s449 + $0x20] sm:$0xf]
        %v456 = vld [vmem:[%s449 + $0x24] sm:$0xff]
        %v457 = vld [vmem:[%s449 + $0x2c] sm:$0xf]
        %v458 = vld [vmem:[%s449 + $0x30] sm:$0x33]
        %v459 = vld [vmem:[%s449 + $0x38] sm:$0x3]
        %v470 = vunpack.c.l.b16 %v450
        %v471 = vunpack.c.h.b16 %v450
        %v472 = vunpack.c.l.b16 %v451
        %v473 = vunpack.c.l.b16 %v452
        %v474 = vunpack.c.h.b16 %v452
        %v475 = vunpack.c.l.b16 %v453
        %v476 = vunpack.c.l.b16 %v454
        %v477 = vunpack.c.h.b16 %v454
        %v478 = vunpack.c.l.b16 %v455
        %v479 = vunpack.c.l.b16 %v456
        %v480 = vunpack.c.h.b16 %v456
        %v481 = vunpack.c.l.b16 %v457
        %v482 = vunpack.c.l.b16 %v458
        %v483 = vunpack.c.h.b16 %v458
        %v484 = vunpack.c.l.b16 %v459
        %v485 = vpack.c.b16 %v473, %v470
        %v486 = vpack.c.b16 %v474, %v471
        %v487 = vpack.c.b16 %v475, %v472
        %v488 = vpack.c.b16 %v479, %v476
        %v489 = vpack.c.b16 %v480, %v477
        %v490 = vpack.c.b16 %v481, %v478
        %v491 = vpack.c.b16 %v482, %v482
        %v492 = vpack.c.b16 %v483, %v483
        %v493 = vpack.c.b16 %v484, %v484
        %v501 = vsel %vm343, %v491, 0
        %v504 = vsel %vm343, %v492, 0
        %v507 = vsel %vm343, %v493, 0
        %509 = vmatprep.subr.bf16.mxu0 0
        %510 = vmatpush1.bf16.msra.mxu0 0
        %511 = vmatprep.subr.bf16.mxu0 0
        %512 = vmatpush1.bf16.msra.mxu0 0
        %513 = vmatprep.subr.bf16.mxu0 0
        %514 = vmatpush1.bf16.msra.mxu0 0
        %515 = vmatprep.subr.bf16.mxu0 0
        %516 = vmatpush1.bf16.msra.mxu0 0
        %517 = vmatprep.subr.bf16.mxu0 0
        %518 = vmatpush1.bf16.msra.mxu0 0
        %519 = vmatprep.subr.bf16.mxu0 %v504
        %520 = vmatpush1.bf16.msra.mxu0 %v501
        %521 = vmatprep.subr.bf16.mxu0 %v489
        %522 = vmatpush1.bf16.msra.mxu0 %v488
        %523 = vmatprep.subr.bf16.mxu0 %v486
        %524 = vmatpush1.bf16.msra.mxu0 %v485
        %525 = vmatprep.subr.bf16.mxu0 0
        %526 = vmatpush2.bf16.msra.mxu0 0
        %527 = vmatprep.subr.bf16.mxu0 0
        %528 = vmatpush2.bf16.msra.mxu0 0
        %529 = vmatprep.subr.bf16.mxu0 0
        %530 = vmatpush2.bf16.msra.mxu0 0
        %531 = vmatprep.subr.bf16.mxu0 0
        %532 = vmatpush2.bf16.msra.mxu0 0
        %533 = vmatprep.subr.bf16.mxu0 0
        %534 = vmatpush2.bf16.msra.mxu0 0
        %535 = vmatprep.subr.bf16.mxu0 0
        %536 = vmatpush2.bf16.msra.mxu0 0
        %537 = vmatprep.subr.bf16.mxu0 0
        %538 = vmatpush2.bf16.msra.mxu0 0
        %539 = vmatprep.subr.bf16.mxu0 0
        %540 = vmatpush2.bf16.msra.mxu0 0
        %541 = vmatprep.mubr.bf16.mxu0 0
        %542 = vmatmul.mubr.bf16.gmra.mxu0 %v341
        %v543 = vpop.f32.mrf.mxu0
        %v544 = vadd.f32 %v297, %v543
        %v545 = vpop.f32.mrf.mxu0
        %v546 = vadd.f32 %v297, %v545
        %v547 = vpop.f32.mrf.mxu0
        %v548 = vpop.f32.mrf.mxu0
        %549 = vdwg.mxu0
        %550 = vmatprep.subr.bf16.mxu0 0
        %551 = vmatpush1.bf16.msra.mxu0 0
        %552 = vmatprep.subr.bf16.mxu0 0
        %553 = vmatpush1.bf16.msra.mxu0 0
        %554 = vmatprep.subr.bf16.mxu0 0
        %555 = vmatpush1.bf16.msra.mxu0 0
        %556 = vmatprep.subr.bf16.mxu0 0
        %557 = vmatpush1.bf16.msra.mxu0 0
        %558 = vmatprep.subr.bf16.mxu0 0
        %559 = vmatpush1.bf16.msra.mxu0 0
        %560 = vmatprep.subr.bf16.mxu0 0
        %561 = vmatpush1.bf16.msra.mxu0 %v507
        %562 = vmatprep.subr.bf16.mxu0 0
        %563 = vmatpush1.bf16.msra.mxu0 %v490
        %564 = vmatprep.subr.bf16.mxu0 0
        %565 = vmatpush1.bf16.msra.mxu0 %v487
        %566 = vmatprep.subr.bf16.mxu0 0
        %567 = vmatpush2.bf16.msra.mxu0 0
        %568 = vmatprep.subr.bf16.mxu0 0
        %569 = vmatpush2.bf16.msra.mxu0 0
        %570 = vmatprep.subr.bf16.mxu0 0
        %571 = vmatpush2.bf16.msra.mxu0 0
        %572 = vmatprep.subr.bf16.mxu0 0
        %573 = vmatpush2.bf16.msra.mxu0 0
        %574 = vmatprep.subr.bf16.mxu0 0
        %575 = vmatpush2.bf16.msra.mxu0 0
        %576 = vmatprep.subr.bf16.mxu0 0
        %577 = vmatpush2.bf16.msra.mxu0 0
        %578 = vmatprep.subr.bf16.mxu0 0
        %579 = vmatpush2.bf16.msra.mxu0 0
        %580 = vmatprep.subr.bf16.mxu0 0
        %581 = vmatpush2.bf16.msra.mxu0 0
        %582 = vmatprep.mubr.bf16.mxu0 0
        %583 = vmatmul.mubr.bf16.gmra.mxu0 %v341
        %v584 = vpop.f32.mrf.mxu0
        %v585 = vadd.f32 %v297, %v584
        %v586 = vpop.f32.mrf.mxu0
        %v587 = vpop.f32.mrf.mxu0
        %v588 = vpop.f32.mrf.mxu0
        %589 = vdwg.mxu0
        %v590 = vmul.f32 %v544, 0.5
        %v591 = vmul.f32 %v546, 0.5
        %v592 = vmul.f32 %v585, 0.5
        %v593 = vmul.f32 %v544, 0.70710677
        %v594 = vmul.f32 %v546, 0.70710677
        %v595 = vmul.f32 %v585, 0.70710677
        %v596 = verf.f32.pop %v593
        %v597 = verf.f32.pop %v594
        %v598 = verf.f32.pop %v595
        %v599 = vadd.f32 %v596, 1.0
        %v600 = vadd.f32 %v597, 1.0
        %v601 = vadd.f32 %v598, 1.0
        %v602 = vmul.f32 %v590, %v599
        %v603 = vmul.f32 %v591, %v600
        %v604 = vmul.f32 %v592, %v601
        %v605 = vmax.f32 %v446, %v602
        %v606 = vmax.f32 %v447, %v603
        %v607 = vmax.f32 %v448, %v604
        %s608 = scalar_lea.vmem %s253, 120 [#allocation2]
        %v609 = vld [vmem:[%s608] sm:$0xff]
        %v610 = vld [vmem:[%s608 + $0x8] sm:$0xf]
        %v611 = vld [vmem:[%s608 + $0xc] sm:$0xff]
        %v612 = vld [vmem:[%s608 + $0x14] sm:$0xf]
        %v613 = vld [vmem:[%s608 + $0x18] sm:$0xff]
        %v614 = vld [vmem:[%s608 + $0x20] sm:$0xf]
        %v615 = vld [vmem:[%s608 + $0x24] sm:$0xff]
        %v616 = vld [vmem:[%s608 + $0x2c] sm:$0xf]
        %v617 = vld [vmem:[%s608 + $0x30] sm:$0x33]
        %v618 = vld [vmem:[%s608 + $0x38] sm:$0x3]
        %v629 = vunpack.c.l.b16 %v609
        %v630 = vunpack.c.h.b16 %v609
        %v631 = vunpack.c.l.b16 %v610
        %v632 = vunpack.c.l.b16 %v611
        %v633 = vunpack.c.h.b16 %v611
        %v634 = vunpack.c.l.b16 %v612
        %v635 = vunpack.c.l.b16 %v613
        %v636 = vunpack.c.h.b16 %v613
        %v637 = vunpack.c.l.b16 %v614
        %v638 = vunpack.c.l.b16 %v615
        %v639 = vunpack.c.h.b16 %v615
        %v640 = vunpack.c.l.b16 %v616
        %v641 = vunpack.c.l.b16 %v617
        %v642 = vunpack.c.h.b16 %v617
        %v643 = vunpack.c.l.b16 %v618
        %v644 = vpack.c.b16 %v632, %v629
        %v645 = vpack.c.b16 %v633, %v630
        %v646 = vpack.c.b16 %v634, %v631
        %v647 = vpack.c.b16 %v638, %v635
        %v648 = vpack.c.b16 %v639, %v636
        %v649 = vpack.c.b16 %v640, %v637
        %v650 = vpack.c.b16 %v641, %v641
        %v651 = vpack.c.b16 %v642, %v642
        %v652 = vpack.c.b16 %v643, %v643
        %v660 = vsel %vm343, %v650, 0
        %v663 = vsel %vm343, %v651, 0
        %v666 = vsel %vm343, %v652, 0
        %668 = vmatprep.subr.bf16.mxu0 0
        %669 = vmatpush1.bf16.msra.mxu0 0
        %670 = vmatprep.subr.bf16.mxu0 0
        %671 = vmatpush1.bf16.msra.mxu0 0
        %672 = vmatprep.subr.bf16.mxu0 0
        %673 = vmatpush1.bf16.msra.mxu0 0
        %674 = vmatprep.subr.bf16.mxu0 0
        %675 = vmatpush1.bf16.msra.mxu0 0
        %676 = vmatprep.subr.bf16.mxu0 0
        %677 = vmatpush1.bf16.msra.mxu0 0
        %678 = vmatprep.subr.bf16.mxu0 %v663
        %679 = vmatpush1.bf16.msra.mxu0 %v660
        %680 = vmatprep.subr.bf16.mxu0 %v648
        %681 = vmatpush1.bf16.msra.mxu0 %v647
        %682 = vmatprep.subr.bf16.mxu0 %v645
        %683 = vmatpush1.bf16.msra.mxu0 %v644
        %684 = vmatprep.subr.bf16.mxu0 0
        %685 = vmatpush2.bf16.msra.mxu0 0
        %686 = vmatprep.subr.bf16.mxu0 0
        %687 = vmatpush2.bf16.msra.mxu0 0
        %688 = vmatprep.subr.bf16.mxu0 0
        %689 = vmatpush2.bf16.msra.mxu0 0
        %690 = vmatprep.subr.bf16.mxu0 0
        %691 = vmatpush2.bf16.msra.mxu0 0
        %692 = vmatprep.subr.bf16.mxu0 0
        %693 = vmatpush2.bf16.msra.mxu0 0
        %694 = vmatprep.subr.bf16.mxu0 0
        %695 = vmatpush2.bf16.msra.mxu0 0
        %696 = vmatprep.subr.bf16.mxu0 0
        %697 = vmatpush2.bf16.msra.mxu0 0
        %698 = vmatprep.subr.bf16.mxu0 0
        %699 = vmatpush2.bf16.msra.mxu0 0
        %700 = vmatprep.mubr.bf16.mxu0 0
        %701 = vmatmul.mubr.bf16.gmra.mxu0 %v341
        %v702 = vpop.f32.mrf.mxu0
        %v703 = vadd.f32 %v297, %v702
        %v704 = vpop.f32.mrf.mxu0
        %v705 = vadd.f32 %v297, %v704
        %v706 = vpop.f32.mrf.mxu0
        %v707 = vpop.f32.mrf.mxu0
        %708 = vdwg.mxu0
        %709 = vmatprep.subr.bf16.mxu0 0
        %710 = vmatpush1.bf16.msra.mxu0 0
        %711 = vmatprep.subr.bf16.mxu0 0
        %712 = vmatpush1.bf16.msra.mxu0 0
        %713 = vmatprep.subr.bf16.mxu0 0
        %714 = vmatpush1.bf16.msra.mxu0 0
        %715 = vmatprep.subr.bf16.mxu0 0
        %716 = vmatpush1.bf16.msra.mxu0 0
        %717 = vmatprep.subr.bf16.mxu0 0
        %718 = vmatpush1.bf16.msra.mxu0 0
        %719 = vmatprep.subr.bf16.mxu0 0
        %720 = vmatpush1.bf16.msra.mxu0 %v666
        %721 = vmatprep.subr.bf16.mxu0 0
        %722 = vmatpush1.bf16.msra.mxu0 %v649
        %723 = vmatprep.subr.bf16.mxu0 0
        %724 = vmatpush1.bf16.msra.mxu0 %v646
        %725 = vmatprep.subr.bf16.mxu0 0
        %726 = vmatpush2.bf16.msra.mxu0 0
        %727 = vmatprep.subr.bf16.mxu0 0
        %728 = vmatpush2.bf16.msra.mxu0 0
        %729 = vmatprep.subr.bf16.mxu0 0
        %730 = vmatpush2.bf16.msra.mxu0 0
        %731 = vmatprep.subr.bf16.mxu0 0
        %732 = vmatpush2.bf16.msra.mxu0 0
        %733 = vmatprep.subr.bf16.mxu0 0
        %734 = vmatpush2.bf16.msra.mxu0 0
        %735 = vmatprep.subr.bf16.mxu0 0
        %736 = vmatpush2.bf16.msra.mxu0 0
        %737 = vmatprep.subr.bf16.mxu0 0
        %738 = vmatpush2.bf16.msra.mxu0 0
        %739 = vmatprep.subr.bf16.mxu0 0
        %740 = vmatpush2.bf16.msra.mxu0 0
        %741 = vmatprep.mubr.bf16.mxu0 0
        %742 = vmatmul.mubr.bf16.gmra.mxu0 %v341
        %v743 = vpop.f32.mrf.mxu0
        %v744 = vadd.f32 %v297, %v743
        %v745 = vpop.f32.mrf.mxu0
        %v746 = vpop.f32.mrf.mxu0
        %v747 = vpop.f32.mrf.mxu0
        %748 = vdwg.mxu0
        %v749 = vmul.f32 %v703, 0.5
        %v750 = vmul.f32 %v705, 0.5
        %v751 = vmul.f32 %v744, 0.5
        %v752 = vmul.f32 %v703, 0.70710677
        %v753 = vmul.f32 %v705, 0.70710677
        %v754 = vmul.f32 %v744, 0.70710677
        %v755 = verf.f32.pop %v752
        %v756 = verf.f32.pop %v753
        %v757 = verf.f32.pop %v754
        %v758 = vadd.f32 %v755, 1.0
        %v759 = vadd.f32 %v756, 1.0
        %v760 = vadd.f32 %v757, 1.0
        %v761 = vmul.f32 %v749, %v758
        %v762 = vmul.f32 %v750, %v759
        %v763 = vmul.f32 %v751, %v760
        %v764 = vmax.f32 %v605, %v761
        %v765 = vmax.f32 %v606, %v762
        %v766 = vmax.f32 %v607, %v763
        %s767 = scalar_lea.vmem %s253, 180 [#allocation2]
        %v768 = vld [vmem:[%s767] sm:$0xff]
        %v769 = vld [vmem:[%s767 + $0x8] sm:$0xf]
        %v770 = vld [vmem:[%s767 + $0xc] sm:$0xff]
        %v771 = vld [vmem:[%s767 + $0x14] sm:$0xf]
        %v772 = vld [vmem:[%s767 + $0x18] sm:$0xff]
        %v773 = vld [vmem:[%s767 + $0x20] sm:$0xf]
        %v774 = vld [vmem:[%s767 + $0x24] sm:$0xff]
        %v775 = vld [vmem:[%s767 + $0x2c] sm:$0xf]
        %v776 = vld [vmem:[%s767 + $0x30] sm:$0x33]
        %v777 = vld [vmem:[%s767 + $0x38] sm:$0x3]
        %v788 = vunpack.c.l.b16 %v768
        %v789 = vunpack.c.h.b16 %v768
        %v790 = vunpack.c.l.b16 %v769
        %v791 = vunpack.c.l.b16 %v770
        %v792 = vunpack.c.h.b16 %v770
        %v793 = vunpack.c.l.b16 %v771
        %v794 = vunpack.c.l.b16 %v772
        %v795 = vunpack.c.h.b16 %v772
        %v796 = vunpack.c.l.b16 %v773
        %v797 = vunpack.c.l.b16 %v774
        %v798 = vunpack.c.h.b16 %v774
        %v799 = vunpack.c.l.b16 %v775
        %v800 = vunpack.c.l.b16 %v776
        %v801 = vunpack.c.h.b16 %v776
        %v802 = vunpack.c.l.b16 %v777
        %v803 = vpack.c.b16 %v791, %v788
        %v804 = vpack.c.b16 %v792, %v789
        %v805 = vpack.c.b16 %v793, %v790
        %v806 = vpack.c.b16 %v797, %v794
        %v807 = vpack.c.b16 %v798, %v795
        %v808 = vpack.c.b16 %v799, %v796
        %v809 = vpack.c.b16 %v800, %v800
        %v810 = vpack.c.b16 %v801, %v801
        %v811 = vpack.c.b16 %v802, %v802
        %v819 = vsel %vm343, %v809, 0
        %v822 = vsel %vm343, %v810, 0
        %v825 = vsel %vm343, %v811, 0
        %827 = vmatprep.subr.bf16.mxu0 0
        %828 = vmatpush1.bf16.msra.mxu0 0
        %829 = vmatprep.subr.bf16.mxu0 0
        %830 = vmatpush1.bf16.msra.mxu0 0
        %831 = vmatprep.subr.bf16.mxu0 0
        %832 = vmatpush1.bf16.msra.mxu0 0
        %833 = vmatprep.subr.bf16.mxu0 0
        %834 = vmatpush1.bf16.msra.mxu0 0
        %835 = vmatprep.subr.bf16.mxu0 0
        %836 = vmatpush1.bf16.msra.mxu0 0
        %837 = vmatprep.subr.bf16.mxu0 %v822
        %838 = vmatpush1.bf16.msra.mxu0 %v819
        %839 = vmatprep.subr.bf16.mxu0 %v807
        %840 = vmatpush1.bf16.msra.mxu0 %v806
        %841 = vmatprep.subr.bf16.mxu0 %v804
        %842 = vmatpush1.bf16.msra.mxu0 %v803
        %843 = vmatprep.subr.bf16.mxu0 0
        %844 = vmatpush2.bf16.msra.mxu0 0
        %845 = vmatprep.subr.bf16.mxu0 0
        %846 = vmatpush2.bf16.msra.mxu0 0
        %847 = vmatprep.subr.bf16.mxu0 0
        %848 = vmatpush2.bf16.msra.mxu0 0
        %849 = vmatprep.subr.bf16.mxu0 0
        %850 = vmatpush2.bf16.msra.mxu0 0
        %851 = vmatprep.subr.bf16.mxu0 0
        %852 = vmatpush2.bf16.msra.mxu0 0
        %853 = vmatprep.subr.bf16.mxu0 0
        %854 = vmatpush2.bf16.msra.mxu0 0
        %855 = vmatprep.subr.bf16.mxu0 0
        %856 = vmatpush2.bf16.msra.mxu0 0
        %857 = vmatprep.subr.bf16.mxu0 0
        %858 = vmatpush2.bf16.msra.mxu0 0
        %859 = vmatprep.mubr.bf16.mxu0 0
        %860 = vmatmul.mubr.bf16.gmra.mxu0 %v341
        %v861 = vpop.f32.mrf.mxu0
        %v862 = vadd.f32 %v297, %v861
        %v863 = vpop.f32.mrf.mxu0
        %v864 = vadd.f32 %v297, %v863
        %v865 = vpop.f32.mrf.mxu0
        %v866 = vpop.f32.mrf.mxu0
        %867 = vdwg.mxu0
        %868 = vmatprep.subr.bf16.mxu0 0
        %869 = vmatpush1.bf16.msra.mxu0 0
        %870 = vmatprep.subr.bf16.mxu0 0
        %871 = vmatpush1.bf16.msra.mxu0 0
        %872 = vmatprep.subr.bf16.mxu0 0
        %873 = vmatpush1.bf16.msra.mxu0 0
        %874 = vmatprep.subr.bf16.mxu0 0
        %875 = vmatpush1.bf16.msra.mxu0 0
        %876 = vmatprep.subr.bf16.mxu0 0
        %877 = vmatpush1.bf16.msra.mxu0 0
        %878 = vmatprep.subr.bf16.mxu0 0
        %879 = vmatpush1.bf16.msra.mxu0 %v825
        %880 = vmatprep.subr.bf16.mxu0 0
        %881 = vmatpush1.bf16.msra.mxu0 %v808
        %882 = vmatprep.subr.bf16.mxu0 0
        %883 = vmatpush1.bf16.msra.mxu0 %v805
        %884 = vmatprep.subr.bf16.mxu0 0
        %885 = vmatpush2.bf16.msra.mxu0 0
        %886 = vmatprep.subr.bf16.mxu0 0
        %887 = vmatpush2.bf16.msra.mxu0 0
        %888 = vmatprep.subr.bf16.mxu0 0
        %889 = vmatpush2.bf16.msra.mxu0 0
        %890 = vmatprep.subr.bf16.mxu0 0
        %891 = vmatpush2.bf16.msra.mxu0 0
        %892 = vmatprep.subr.bf16.mxu0 0
        %893 = vmatpush2.bf16.msra.mxu0 0
        %894 = vmatprep.subr.bf16.mxu0 0
        %895 = vmatpush2.bf16.msra.mxu0 0
        %896 = vmatprep.subr.bf16.mxu0 0
        %897 = vmatpush2.bf16.msra.mxu0 0
        %898 = vmatprep.subr.bf16.mxu0 0
        %899 = vmatpush2.bf16.msra.mxu0 0
        %900 = vmatprep.mubr.bf16.mxu0 0
        %901 = vmatmul.mubr.bf16.gmra.mxu0 %v341
        %v902 = vpop.f32.mrf.mxu0
        %v903 = vadd.f32 %v297, %v902
        %v904 = vpop.f32.mrf.mxu0
        %v905 = vpop.f32.mrf.mxu0
        %v906 = vpop.f32.mrf.mxu0
        %907 = vdwg.mxu0
        %v908 = vmul.f32 %v862, 0.5
        %v909 = vmul.f32 %v864, 0.5
        %v910 = vmul.f32 %v903, 0.5
        %v911 = vmul.f32 %v862, 0.70710677
        %v912 = vmul.f32 %v864, 0.70710677
        %v913 = vmul.f32 %v903, 0.70710677
        %v914 = verf.f32.pop %v911
        %v915 = verf.f32.pop %v912
        %v916 = verf.f32.pop %v913
        %v917 = vadd.f32 %v914, 1.0
        %v918 = vadd.f32 %v915, 1.0
        %v919 = vadd.f32 %v916, 1.0
        %v920 = vmul.f32 %v908, %v917
        %v921 = vmul.f32 %v909, %v918
        %v922 = vmul.f32 %v910, %v919
        %v923 = vmax.f32 %v764, %v920
        %v924 = vmax.f32 %v765, %v921
        %v925 = vmax.f32 %v766, %v922
        %926 = vst [vmem:[%s279] sm:$0xff] %v923
        %927 = vst [vmem:[%s279 + $0x8] sm:$0xff] %v924
        %928 = vst [vmem:[%s279 + $0x10] sm:$0xff] %v925
        %s929 = smul.u32 3, %s14
        %p930 = scmp.lt.s32.totalorder %s929, 8
        %s931 = scalar_select %p930, %s929, 8
        %s932 = smul.addr %s931, 8
        %s933 = scalar_lea.vmem %s3, %s932
        // Predicated region
        $region59: #{covidetector_forward.6} parent=53 // pred_check
          %p934 = pneg %p100
        $region60: #{covidetector_forward.6} parent=53 // pred_check_branch
          %936 = sbr.rel (%p934) target = $region62
        $region61: #{covidetector_forward.6} parent=53 // pred_region
          %s937 = smul.u32 3, %s14
        $region62: #{covidetector_forward.6} parent=53 // pred_fallthru
          _
      $region54: #{covidetector_forward.6} parent=5 // pred_fallthru
        _
      %p938 = scmp.le.s32.totalorder 2, %s9
      // Predicated region
      $region63: #{covidetector_forward.6} parent=5 // pred_check
        %p939 = pneg %p938
      $region64: #{covidetector_forward.6} parent=5 // pred_check_branch
        %941 = sbr.rel (%p939) target = $region66
      $region65: #{covidetector_forward.6} parent=5 // pred_region
        %s942 = ssub.s32 %s9, 2
        // Predicated region
        $region67: #{covidetector_forward.6} parent=65 // pred_check
          %p943 = pneg %p106
        $region68: #{covidetector_forward.6} parent=65 // pred_check_branch
          %945 = sbr.rel (%p943) target = $region70
        $region69: #{covidetector_forward.6} parent=65 // pred_region
          %s946 = smul.u32 3, %s15
          %p947 = scmp.lt.s32.totalorder %s946, 8
          %s948 = scalar_select %p947, %s946, 8
          %s949 = smul.addr %s948, 8
          %s950 = scalar_lea.vmem %s3, %s949
        $region70: #{covidetector_forward.6} parent=65 // pred_fallthru
          _
      $region66: #{covidetector_forward.6} parent=5 // pred_fallthru
        _
    $region6: #{covidetector_forward.6} parent=1 // loop_footer
      %s13 = sadd.s32 1, %s9
    $region7: #{covidetector_forward.6} parent=1 // loop_footer_branch
      %8 = sbr.rel target = $region3
    $region8: #{covidetector_forward.6} parent=1 // loop_exit
      _

// kernel: covidetector_forward.7
$region0: #{covidetector_forward.7}
  #allocation0 [shape = 'u32[]', space=smem, size = 0x4, offset = 0x4, fixed_abs, tag = 'smem constant byte address 0x4 - core index']
  #allocation1 [shape = 'u32[144,128]{1,0:T(1,128)}', space=vmem, size = 0x12000, scoped, tag = 'internal scratch']
  %s0 = inlined_call_operand.vmem [shape: bf16[4,72,200], index: 0, kind: input, shape index: {}]
  %s1 = inlined_call_operand.vmem [shape: bf16[16,72], index: 1, kind: input, shape index: {}]
  %s2 = inlined_call_operand.vmem [shape: f32[16,1], index: 2, kind: input, shape index: {}]
  %s3 = inlined_call_operand.vmem [shape: f32[16,200], index: 3, kind: output, shape index: {}]
  %s4 = sld [smem:[#allocation0]]
  $region22: #{covidetector_forward.7} parent=0
    _
  %s6 = ssub.s32 1, %s4
  %s7 = scalar_select 0, %s6, %s4
  // Predicated region
  $region2: #{covidetector_forward.7} parent=0 // pred_check
    _
  $region3: #{covidetector_forward.7} parent=0 // pred_check_branch
    %9 = sbr.rel (0) target = $region5
  $region4: #{covidetector_forward.7} parent=0 // pred_region
    _
  $region5: #{covidetector_forward.7} parent=0 // pred_fallthru
    _
  // Predicated region
  $region6: #{covidetector_forward.7} parent=0 // pred_check
    _
  $region7: #{covidetector_forward.7} parent=0 // pred_check_branch
    %11 = sbr.rel (0) target = $region9
  $region8: #{covidetector_forward.7} parent=0 // pred_region
    _
  $region9: #{covidetector_forward.7} parent=0 // pred_fallthru
    _
  // Predicated region
  $region10: #{covidetector_forward.7} parent=0 // pred_check
    _
  $region11: #{covidetector_forward.7} parent=0 // pred_check_branch
    %13 = sbr.rel (0) target = $region13
  $region12: #{covidetector_forward.7} parent=0 // pred_region
    _
  $region13: #{covidetector_forward.7} parent=0 // pred_fallthru
    _
  %v15 = vld [vmem:[%s1] sm:$0xf]
  %v16 = vld [vmem:[%s1 + $0x4] sm:$0xf]
  %v17 = vld [vmem:[%s2] sm:$0xff]
  %v18 = vld [vmem:[%s2 + $0x8] sm:$0xff]
  %v19 = vld [vmem:[%s0] sm:$0xff]
  %v20 = vld [vmem:[%s0 + $0x8] sm:$0xff]
  %v21 = vld [vmem:[%s0 + $0x10] sm:$0xff]
  %v22 = vld [vmem:[%s0 + $0x18] sm:$0xff]
  %v23 = vld [vmem:[%s0 + $0x20] sm:$0xff]
  %v24 = vld [vmem:[%s0 + $0x28] sm:$0xff]
  %v25 = vld [vmem:[%s0 + $0x30] sm:$0xff]
  %v26 = vld [vmem:[%s0 + $0x38] sm:$0xff]
  %v27 = vld [vmem:[%s0 + $0x40] sm:$0xff]
  %29 = vset.pattern.permute.xlu0 0
  %30 = vperm.xlu0 %29, %v17
  %v31 = vpop.permute.xlu0 %30
  %34 = vset.pattern.permute.xlu0 0
  %35 = vperm.xlu0 %34, %v18
  %v36 = vpop.permute.xlu0 %35
  %v40 = vunpack.c.l.b16 %v15
  %v41 = vunpack.c.l.b16 %v16
  %v42 = vpack.c.b16 %v41, %v40
  %v52 = vunpack.c.l.b16 %v19
  %v53 = vunpack.c.h.b16 %v19
  %v54 = vunpack.c.l.b16 %v20
  %v55 = vunpack.c.h.b16 %v20
  %v56 = vunpack.c.l.b16 %v21
  %v57 = vunpack.c.h.b16 %v21
  %v58 = vunpack.c.l.b16 %v22
  %v59 = vunpack.c.h.b16 %v22
  %v60 = vunpack.c.l.b16 %v23
  %v61 = vunpack.c.h.b16 %v23
  %v62 = vunpack.c.l.b16 %v24
  %v63 = vunpack.c.h.b16 %v24
  %v64 = vunpack.c.l.b16 %v25
  %v65 = vunpack.c.h.b16 %v25
  %v66 = vunpack.c.l.b16 %v26
  %v67 = vunpack.c.h.b16 %v26
  %v68 = vunpack.c.l.b16 %v27
  %v69 = vunpack.c.h.b16 %v27
  %v70 = vpack.c.b16 %v54, %v52
  %v71 = vpack.c.b16 %v55, %v53
  %v72 = vpack.c.b16 %v58, %v56
  %v73 = vpack.c.b16 %v59, %v57
  %v74 = vpack.c.b16 %v62, %v60
  %v75 = vpack.c.b16 %v63, %v61
  %v76 = vpack.c.b16 %v66, %v64
  %v77 = vpack.c.b16 %v67, %v65
  %v78 = vpack.c.b16 %v68, %v68
  %v79 = vpack.c.b16 %v69, %v69
  %vm88 = vcmask 588800
  %v90 = vsel %vm88, %v42, 0
  %vm92 = vcmask 1043456
  %v94 = vsel %vm92, %v78, 0
  %v97 = vsel %vm92, %v79, 0
  %99 = vmatprep.subr.bf16.mxu0 0
  %100 = vmatpush1.bf16.msra.mxu0 0
  %101 = vmatprep.subr.bf16.mxu0 0
  %102 = vmatpush1.bf16.msra.mxu0 0
  %103 = vmatprep.subr.bf16.mxu0 0
  %104 = vmatpush1.bf16.msra.mxu0 0
  %105 = vmatprep.subr.bf16.mxu0 %v97
  %106 = vmatpush1.bf16.msra.mxu0 %v94
  %107 = vmatprep.subr.bf16.mxu0 %v77
  %108 = vmatpush1.bf16.msra.mxu0 %v76
  %109 = vmatprep.subr.bf16.mxu0 %v75
  %110 = vmatpush1.bf16.msra.mxu0 %v74
  %111 = vmatprep.subr.bf16.mxu0 %v73
  %112 = vmatpush1.bf16.msra.mxu0 %v72
  %113 = vmatprep.subr.bf16.mxu0 %v71
  %114 = vmatpush1.bf16.msra.mxu0 %v70
  %115 = vmatprep.subr.bf16.mxu0 0
  %116 = vmatpush2.bf16.msra.mxu0 0
  %117 = vmatprep.subr.bf16.mxu0 0
  %118 = vmatpush2.bf16.msra.mxu0 0
  %119 = vmatprep.subr.bf16.mxu0 0
  %120 = vmatpush2.bf16.msra.mxu0 0
  %121 = vmatprep.subr.bf16.mxu0 0
  %122 = vmatpush2.bf16.msra.mxu0 0
  %123 = vmatprep.subr.bf16.mxu0 0
  %124 = vmatpush2.bf16.msra.mxu0 0
  %125 = vmatprep.subr.bf16.mxu0 0
  %126 = vmatpush2.bf16.msra.mxu0 0
  %127 = vmatprep.subr.bf16.mxu0 0
  %128 = vmatpush2.bf16.msra.mxu0 0
  %129 = vmatprep.subr.bf16.mxu0 0
  %130 = vmatpush2.bf16.msra.mxu0 0
  %131 = vmatprep.mubr.bf16.mxu0 0
  %132 = vmatmul.mubr.bf16.gmra.mxu0 %v90
  %v133 = vpop.f32.mrf.mxu0
  %v134 = vadd.f32 %v31, %v133
  %v135 = vpop.f32.mrf.mxu0
  %v136 = vadd.f32 %v31, %v135
  %v137 = vpop.f32.mrf.mxu0
  %v138 = vadd.f32 %v36, %v137
  %v139 = vpop.f32.mrf.mxu0
  %v140 = vadd.f32 %v36, %v139
  %141 = vdwg.mxu0
  %v142 = vmul.f32 %v134, 0.5
  %v143 = vmul.f32 %v136, 0.5
  %v144 = vmul.f32 %v138, 0.5
  %v145 = vmul.f32 %v140, 0.5
  %v146 = vmul.f32 %v134, 0.70710677
  %v147 = vmul.f32 %v136, 0.70710677
  %v148 = vmul.f32 %v138, 0.70710677
  %v149 = vmul.f32 %v140, 0.70710677
  %v150 = verf.f32.pop %v146
  %v151 = verf.f32.pop %v147
  %v152 = verf.f32.pop %v148
  %v153 = verf.f32.pop %v149
  %v154 = vadd.f32 %v150, 1.0
  %v155 = vadd.f32 %v151, 1.0
  %v156 = vadd.f32 %v152, 1.0
  %v157 = vadd.f32 %v153, 1.0
  %v158 = vmul.f32 %v142, %v154
  %v159 = vmul.f32 %v143, %v155
  %v160 = vmul.f32 %v144, %v156
  %v161 = vmul.f32 %v145, %v157
  %s162 = scalar_lea.vmem %s0, 72
  %v163 = vld [vmem:[%s162] sm:$0xff]
  %v164 = vld [vmem:[%s162 + $0x8] sm:$0xff]
  %v165 = vld [vmem:[%s162 + $0x10] sm:$0xff]
  %v166 = vld [vmem:[%s162 + $0x18] sm:$0xff]
  %v167 = vld [vmem:[%s162 + $0x20] sm:$0xff]
  %v168 = vld [vmem:[%s162 + $0x28] sm:$0xff]
  %v169 = vld [vmem:[%s162 + $0x30] sm:$0xff]
  %v170 = vld [vmem:[%s162 + $0x38] sm:$0xff]
  %v171 = vld [vmem:[%s162 + $0x40] sm:$0xff]
  %v181 = vunpack.c.l.b16 %v163
  %v182 = vunpack.c.h.b16 %v163
  %v183 = vunpack.c.l.b16 %v164
  %v184 = vunpack.c.h.b16 %v164
  %v185 = vunpack.c.l.b16 %v165
  %v186 = vunpack.c.h.b16 %v165
  %v187 = vunpack.c.l.b16 %v166
  %v188 = vunpack.c.h.b16 %v166
  %v189 = vunpack.c.l.b16 %v167
  %v190 = vunpack.c.h.b16 %v167
  %v191 = vunpack.c.l.b16 %v168
  %v192 = vunpack.c.h.b16 %v168
  %v193 = vunpack.c.l.b16 %v169
  %v194 = vunpack.c.h.b16 %v169
  %v195 = vunpack.c.l.b16 %v170
  %v196 = vunpack.c.h.b16 %v170
  %v197 = vunpack.c.l.b16 %v171
  %v198 = vunpack.c.h.b16 %v171
  %v199 = vpack.c.b16 %v183, %v181
  %v200 = vpack.c.b16 %v184, %v182
  %v201 = vpack.c.b16 %v187, %v185
  %v202 = vpack.c.b16 %v188, %v186
  %v203 = vpack.c.b16 %v191, %v189
  %v204 = vpack.c.b16 %v192, %v190
  %v205 = vpack.c.b16 %v195, %v193
  %v206 = vpack.c.b16 %v196, %v194
  %v207 = vpack.c.b16 %v197, %v197
  %v208 = vpack.c.b16 %v198, %v198
  %v218 = vsel %vm92, %v207, 0
  %v221 = vsel %vm92, %v208, 0
  %223 = vmatprep.subr.bf16.mxu0 0
  %224 = vmatpush1.bf16.msra.mxu0 0
  %225 = vmatprep.subr.bf16.mxu0 0
  %226 = vmatpush1.bf16.msra.mxu0 0
  %227 = vmatprep.subr.bf16.mxu0 0
  %228 = vmatpush1.bf16.msra.mxu0 0
  %229 = vmatprep.subr.bf16.mxu0 %v221
  %230 = vmatpush1.bf16.msra.mxu0 %v218
  %231 = vmatprep.subr.bf16.mxu0 %v206
  %232 = vmatpush1.bf16.msra.mxu0 %v205
  %233 = vmatprep.subr.bf16.mxu0 %v204
  %234 = vmatpush1.bf16.msra.mxu0 %v203
  %235 = vmatprep.subr.bf16.mxu0 %v202
  %236 = vmatpush1.bf16.msra.mxu0 %v201
  %237 = vmatprep.subr.bf16.mxu0 %v200
  %238 = vmatpush1.bf16.msra.mxu0 %v199
  %239 = vmatprep.subr.bf16.mxu0 0
  %240 = vmatpush2.bf16.msra.mxu0 0
  %241 = vmatprep.subr.bf16.mxu0 0
  %242 = vmatpush2.bf16.msra.mxu0 0
  %243 = vmatprep.subr.bf16.mxu0 0
  %244 = vmatpush2.bf16.msra.mxu0 0
  %245 = vmatprep.subr.bf16.mxu0 0
  %246 = vmatpush2.bf16.msra.mxu0 0
  %247 = vmatprep.subr.bf16.mxu0 0
  %248 = vmatpush2.bf16.msra.mxu0 0
  %249 = vmatprep.subr.bf16.mxu0 0
  %250 = vmatpush2.bf16.msra.mxu0 0
  %251 = vmatprep.subr.bf16.mxu0 0
  %252 = vmatpush2.bf16.msra.mxu0 0
  %253 = vmatprep.subr.bf16.mxu0 0
  %254 = vmatpush2.bf16.msra.mxu0 0
  %255 = vmatprep.mubr.bf16.mxu0 0
  %256 = vmatmul.mubr.bf16.gmra.mxu0 %v90
  %v257 = vpop.f32.mrf.mxu0
  %v258 = vadd.f32 %v31, %v257
  %v259 = vpop.f32.mrf.mxu0
  %v260 = vadd.f32 %v31, %v259
  %v261 = vpop.f32.mrf.mxu0
  %v262 = vadd.f32 %v36, %v261
  %v263 = vpop.f32.mrf.mxu0
  %v264 = vadd.f32 %v36, %v263
  %265 = vdwg.mxu0
  %v266 = vmul.f32 %v258, 0.5
  %v267 = vmul.f32 %v260, 0.5
  %v268 = vmul.f32 %v262, 0.5
  %v269 = vmul.f32 %v264, 0.5
  %v270 = vmul.f32 %v258, 0.70710677
  %v271 = vmul.f32 %v260, 0.70710677
  %v272 = vmul.f32 %v262, 0.70710677
  %v273 = vmul.f32 %v264, 0.70710677
  %v274 = verf.f32.pop %v270
  %v275 = verf.f32.pop %v271
  %v276 = verf.f32.pop %v272
  %v277 = verf.f32.pop %v273
  %v278 = vadd.f32 %v274, 1.0
  %v279 = vadd.f32 %v275, 1.0
  %v280 = vadd.f32 %v276, 1.0
  %v281 = vadd.f32 %v277, 1.0
  %v282 = vmul.f32 %v266, %v278
  %v283 = vmul.f32 %v267, %v279
  %v284 = vmul.f32 %v268, %v280
  %v285 = vmul.f32 %v269, %v281
  %v286 = vmax.f32 %v158, %v282
  %v287 = vmax.f32 %v159, %v283
  %v288 = vmax.f32 %v160, %v284
  %v289 = vmax.f32 %v161, %v285
  %s290 = scalar_lea.vmem %s0, 144
  %v291 = vld [vmem:[%s290] sm:$0xff]
  %v292 = vld [vmem:[%s290 + $0x8] sm:$0xff]
  %v293 = vld [vmem:[%s290 + $0x10] sm:$0xff]
  %v294 = vld [vmem:[%s290 + $0x18] sm:$0xff]
  %v295 = vld [vmem:[%s290 + $0x20] sm:$0xff]
  %v296 = vld [vmem:[%s290 + $0x28] sm:$0xff]
  %v297 = vld [vmem:[%s290 + $0x30] sm:$0xff]
  %v298 = vld [vmem:[%s290 + $0x38] sm:$0xff]
  %v299 = vld [vmem:[%s290 + $0x40] sm:$0xff]
  %v309 = vunpack.c.l.b16 %v291
  %v310 = vunpack.c.h.b16 %v291
  %v311 = vunpack.c.l.b16 %v292
  %v312 = vunpack.c.h.b16 %v292
  %v313 = vunpack.c.l.b16 %v293
  %v314 = vunpack.c.h.b16 %v293
  %v315 = vunpack.c.l.b16 %v294
  %v316 = vunpack.c.h.b16 %v294
  %v317 = vunpack.c.l.b16 %v295
  %v318 = vunpack.c.h.b16 %v295
  %v319 = vunpack.c.l.b16 %v296
  %v320 = vunpack.c.h.b16 %v296
  %v321 = vunpack.c.l.b16 %v297
  %v322 = vunpack.c.h.b16 %v297
  %v323 = vunpack.c.l.b16 %v298
  %v324 = vunpack.c.h.b16 %v298
  %v325 = vunpack.c.l.b16 %v299
  %v326 = vunpack.c.h.b16 %v299
  %v327 = vpack.c.b16 %v311, %v309
  %v328 = vpack.c.b16 %v312, %v310
  %v329 = vpack.c.b16 %v315, %v313
  %v330 = vpack.c.b16 %v316, %v314
  %v331 = vpack.c.b16 %v319, %v317
  %v332 = vpack.c.b16 %v320, %v318
  %v333 = vpack.c.b16 %v323, %v321
  %v334 = vpack.c.b16 %v324, %v322
  %v335 = vpack.c.b16 %v325, %v325
  %v336 = vpack.c.b16 %v326, %v326
  %v346 = vsel %vm92, %v335, 0
  %v349 = vsel %vm92, %v336, 0
  %351 = vmatprep.subr.bf16.mxu0 0
  %352 = vmatpush1.bf16.msra.mxu0 0
  %353 = vmatprep.subr.bf16.mxu0 0
  %354 = vmatpush1.bf16.msra.mxu0 0
  %355 = vmatprep.subr.bf16.mxu0 0
  %356 = vmatpush1.bf16.msra.mxu0 0
  %357 = vmatprep.subr.bf16.mxu0 %v349
  %358 = vmatpush1.bf16.msra.mxu0 %v346
  %359 = vmatprep.subr.bf16.mxu0 %v334
  %360 = vmatpush1.bf16.msra.mxu0 %v333
  %361 = vmatprep.subr.bf16.mxu0 %v332
  %362 = vmatpush1.bf16.msra.mxu0 %v331
  %363 = vmatprep.subr.bf16.mxu0 %v330
  %364 = vmatpush1.bf16.msra.mxu0 %v329
  %365 = vmatprep.subr.bf16.mxu0 %v328
  %366 = vmatpush1.bf16.msra.mxu0 %v327
  %367 = vmatprep.subr.bf16.mxu0 0
  %368 = vmatpush2.bf16.msra.mxu0 0
  %369 = vmatprep.subr.bf16.mxu0 0
  %370 = vmatpush2.bf16.msra.mxu0 0
  %371 = vmatprep.subr.bf16.mxu0 0
  %372 = vmatpush2.bf16.msra.mxu0 0
  %373 = vmatprep.subr.bf16.mxu0 0
  %374 = vmatpush2.bf16.msra.mxu0 0
  %375 = vmatprep.subr.bf16.mxu0 0
  %376 = vmatpush2.bf16.msra.mxu0 0
  %377 = vmatprep.subr.bf16.mxu0 0
  %378 = vmatpush2.bf16.msra.mxu0 0
  %379 = vmatprep.subr.bf16.mxu0 0
  %380 = vmatpush2.bf16.msra.mxu0 0
  %381 = vmatprep.subr.bf16.mxu0 0
  %382 = vmatpush2.bf16.msra.mxu0 0
  %383 = vmatprep.mubr.bf16.mxu0 0
  %384 = vmatmul.mubr.bf16.gmra.mxu0 %v90
  %v385 = vpop.f32.mrf.mxu0
  %v386 = vadd.f32 %v31, %v385
  %v387 = vpop.f32.mrf.mxu0
  %v388 = vadd.f32 %v31, %v387
  %v389 = vpop.f32.mrf.mxu0
  %v390 = vadd.f32 %v36, %v389
  %v391 = vpop.f32.mrf.mxu0
  %v392 = vadd.f32 %v36, %v391
  %393 = vdwg.mxu0
  %v394 = vmul.f32 %v386, 0.5
  %v395 = vmul.f32 %v388, 0.5
  %v396 = vmul.f32 %v390, 0.5
  %v397 = vmul.f32 %v392, 0.5
  %v398 = vmul.f32 %v386, 0.70710677
  %v399 = vmul.f32 %v388, 0.70710677
  %v400 = vmul.f32 %v390, 0.70710677
  %v401 = vmul.f32 %v392, 0.70710677
  %v402 = verf.f32.pop %v398
  %v403 = verf.f32.pop %v399
  %v404 = verf.f32.pop %v400
  %v405 = verf.f32.pop %v401
  %v406 = vadd.f32 %v402, 1.0
  %v407 = vadd.f32 %v403, 1.0
  %v408 = vadd.f32 %v404, 1.0
  %v409 = vadd.f32 %v405, 1.0
  %v410 = vmul.f32 %v394, %v406
  %v411 = vmul.f32 %v395, %v407
  %v412 = vmul.f32 %v396, %v408
  %v413 = vmul.f32 %v397, %v409
  %v414 = vmax.f32 %v286, %v410
  %v415 = vmax.f32 %v287, %v411
  %v416 = vmax.f32 %v288, %v412
  %v417 = vmax.f32 %v289, %v413
  %s418 = scalar_lea.vmem %s0, 216
  %v419 = vld [vmem:[%s418] sm:$0xff]
  %v420 = vld [vmem:[%s418 + $0x8] sm:$0xff]
  %v421 = vld [vmem:[%s418 + $0x10] sm:$0xff]
  %v422 = vld [vmem:[%s418 + $0x18] sm:$0xff]
  %v423 = vld [vmem:[%s418 + $0x20] sm:$0xff]
  %v424 = vld [vmem:[%s418 + $0x28] sm:$0xff]
  %v425 = vld [vmem:[%s418 + $0x30] sm:$0xff]
  %v426 = vld [vmem:[%s418 + $0x38] sm:$0xff]
  %v427 = vld [vmem:[%s418 + $0x40] sm:$0xff]
  %v437 = vunpack.c.l.b16 %v419
  %v438 = vunpack.c.h.b16 %v419
  %v439 = vunpack.c.l.b16 %v420
  %v440 = vunpack.c.h.b16 %v420
  %v441 = vunpack.c.l.b16 %v421
  %v442 = vunpack.c.h.b16 %v421
  %v443 = vunpack.c.l.b16 %v422
  %v444 = vunpack.c.h.b16 %v422
  %v445 = vunpack.c.l.b16 %v423
  %v446 = vunpack.c.h.b16 %v423
  %v447 = vunpack.c.l.b16 %v424
  %v448 = vunpack.c.h.b16 %v424
  %v449 = vunpack.c.l.b16 %v425
  %v450 = vunpack.c.h.b16 %v425
  %v451 = vunpack.c.l.b16 %v426
  %v452 = vunpack.c.h.b16 %v426
  %v453 = vunpack.c.l.b16 %v427
  %v454 = vunpack.c.h.b16 %v427
  %v455 = vpack.c.b16 %v439, %v437
  %v456 = vpack.c.b16 %v440, %v438
  %v457 = vpack.c.b16 %v443, %v441
  %v458 = vpack.c.b16 %v444, %v442
  %v459 = vpack.c.b16 %v447, %v445
  %v460 = vpack.c.b16 %v448, %v446
  %v461 = vpack.c.b16 %v451, %v449
  %v462 = vpack.c.b16 %v452, %v450
  %v463 = vpack.c.b16 %v453, %v453
  %v464 = vpack.c.b16 %v454, %v454
  %v474 = vsel %vm92, %v463, 0
  %v477 = vsel %vm92, %v464, 0
  %479 = vmatprep.subr.bf16.mxu0 0
  %480 = vmatpush1.bf16.msra.mxu0 0
  %481 = vmatprep.subr.bf16.mxu0 0
  %482 = vmatpush1.bf16.msra.mxu0 0
  %483 = vmatprep.subr.bf16.mxu0 0
  %484 = vmatpush1.bf16.msra.mxu0 0
  %485 = vmatprep.subr.bf16.mxu0 %v477
  %486 = vmatpush1.bf16.msra.mxu0 %v474
  %487 = vmatprep.subr.bf16.mxu0 %v462
  %488 = vmatpush1.bf16.msra.mxu0 %v461
  %489 = vmatprep.subr.bf16.mxu0 %v460
  %490 = vmatpush1.bf16.msra.mxu0 %v459
  %491 = vmatprep.subr.bf16.mxu0 %v458
  %492 = vmatpush1.bf16.msra.mxu0 %v457
  %493 = vmatprep.subr.bf16.mxu0 %v456
  %494 = vmatpush1.bf16.msra.mxu0 %v455
  %495 = vmatprep.subr.bf16.mxu0 0
  %496 = vmatpush2.bf16.msra.mxu0 0
  %497 = vmatprep.subr.bf16.mxu0 0
  %498 = vmatpush2.bf16.msra.mxu0 0
  %499 = vmatprep.subr.bf16.mxu0 0
  %500 = vmatpush2.bf16.msra.mxu0 0
  %501 = vmatprep.subr.bf16.mxu0 0
  %502 = vmatpush2.bf16.msra.mxu0 0
  %503 = vmatprep.subr.bf16.mxu0 0
  %504 = vmatpush2.bf16.msra.mxu0 0
  %505 = vmatprep.subr.bf16.mxu0 0
  %506 = vmatpush2.bf16.msra.mxu0 0
  %507 = vmatprep.subr.bf16.mxu0 0
  %508 = vmatpush2.bf16.msra.mxu0 0
  %509 = vmatprep.subr.bf16.mxu0 0
  %510 = vmatpush2.bf16.msra.mxu0 0
  %511 = vmatprep.mubr.bf16.mxu0 0
  %512 = vmatmul.mubr.bf16.gmra.mxu0 %v90
  %v513 = vpop.f32.mrf.mxu0
  %v514 = vadd.f32 %v31, %v513
  %v515 = vpop.f32.mrf.mxu0
  %v516 = vadd.f32 %v31, %v515
  %v517 = vpop.f32.mrf.mxu0
  %v518 = vadd.f32 %v36, %v517
  %v519 = vpop.f32.mrf.mxu0
  %v520 = vadd.f32 %v36, %v519
  %521 = vdwg.mxu0
  %v522 = vmul.f32 %v514, 0.5
  %v523 = vmul.f32 %v516, 0.5
  %v524 = vmul.f32 %v518, 0.5
  %v525 = vmul.f32 %v520, 0.5
  %v526 = vmul.f32 %v514, 0.70710677
  %v527 = vmul.f32 %v516, 0.70710677
  %v528 = vmul.f32 %v518, 0.70710677
  %v529 = vmul.f32 %v520, 0.70710677
  %v530 = verf.f32.pop %v526
  %v531 = verf.f32.pop %v527
  %v532 = verf.f32.pop %v528
  %v533 = verf.f32.pop %v529
  %v534 = vadd.f32 %v530, 1.0
  %v535 = vadd.f32 %v531, 1.0
  %v536 = vadd.f32 %v532, 1.0
  %v537 = vadd.f32 %v533, 1.0
  %v538 = vmul.f32 %v522, %v534
  %v539 = vmul.f32 %v523, %v535
  %v540 = vmul.f32 %v524, %v536
  %v541 = vmul.f32 %v525, %v537
  %v542 = vmax.f32 %v414, %v538
  %v543 = vmax.f32 %v415, %v539
  %v544 = vmax.f32 %v416, %v540
  %v545 = vmax.f32 %v417, %v541
  %546 = vst [vmem:[%s3] sm:$0xff] %v542
  %547 = vst.msk [vmem:[%s3 + $0x8] sm:$0xff] %vm88, %v543
  %548 = vst [vmem:[%s3 + $0x10] sm:$0xff] %v544
  %549 = vst.msk [vmem:[%s3 + $0x18] sm:$0xff] %vm88, %v545
  // Predicated region
  $region14: #{covidetector_forward.7} parent=0 // pred_check
    _
  $region15: #{covidetector_forward.7} parent=0 // pred_check_branch
    %551 = sbr.rel (0) target = $region17
  $region16: #{covidetector_forward.7} parent=0 // pred_region
    _
  $region17: #{covidetector_forward.7} parent=0 // pred_fallthru
    _
  // Predicated region
  $region18: #{covidetector_forward.7} parent=0 // pred_check
    _
  $region19: #{covidetector_forward.7} parent=0 // pred_check_branch
    %553 = sbr.rel (0) target = $region21
  $region20: #{covidetector_forward.7} parent=0 // pred_region
    _
  $region21: #{covidetector_forward.7} parent=0 // pred_fallthru
    _

// kernel: covidetector_forward.8
$region0: #{covidetector_forward.8}
  #allocation0 [shape = 'u32[]', space=smem, size = 0x4, offset = 0x4, fixed_abs, tag = 'smem constant byte address 0x4 - core index']
  #allocation1 [shape = 'u32[144,128]{1,0:T(1,128)}', space=vmem, size = 0x12000, scoped, tag = 'internal scratch']
  %s0 = inlined_call_operand.vmem [shape: bf16[4,144,32], index: 0, kind: input, shape index: {}]
  %s1 = inlined_call_operand.vmem [shape: bf16[32,144], index: 1, kind: input, shape index: {}]
  %s2 = inlined_call_operand.vmem [shape: f32[32,1], index: 2, kind: input, shape index: {}]
  %s3 = inlined_call_operand.vmem [shape: f32[32,32], index: 3, kind: output, shape index: {}]
  %s4 = sld [smem:[#allocation0]]
  $region22: #{covidetector_forward.8} parent=0
    _
  %s6 = ssub.s32 1, %s4
  %s7 = scalar_select 0, %s6, %s4
  // Predicated region
  $region2: #{covidetector_forward.8} parent=0 // pred_check
    _
  $region3: #{covidetector_forward.8} parent=0 // pred_check_branch
    %9 = sbr.rel (0) target = $region5
  $region4: #{covidetector_forward.8} parent=0 // pred_region
    _
  $region5: #{covidetector_forward.8} parent=0 // pred_fallthru
    _
  // Predicated region
  $region6: #{covidetector_forward.8} parent=0 // pred_check
    _
  $region7: #{covidetector_forward.8} parent=0 // pred_check_branch
    %11 = sbr.rel (0) target = $region9
  $region8: #{covidetector_forward.8} parent=0 // pred_region
    _
  $region9: #{covidetector_forward.8} parent=0 // pred_fallthru
    _
  // Predicated region
  $region10: #{covidetector_forward.8} parent=0 // pred_check
    _
  $region11: #{covidetector_forward.8} parent=0 // pred_check_branch
    %13 = sbr.rel (0) target = $region13
  $region12: #{covidetector_forward.8} parent=0 // pred_region
    _
  $region13: #{covidetector_forward.8} parent=0 // pred_fallthru
    _
  %v15 = vld [vmem:[%s1] sm:$0xff]
  %v16 = vld [vmem:[%s1 + $0x8] sm:$0xff]
  %v17 = vld [vmem:[%s1 + $0x10] sm:$0xff]
  %v18 = vld [vmem:[%s1 + $0x18] sm:$0xff]
  %v19 = vld [vmem:[%s2] sm:$0xff]
  %v20 = vld [vmem:[%s2 + $0x8] sm:$0xff]
  %v21 = vld [vmem:[%s2 + $0x10] sm:$0xff]
  %v22 = vld [vmem:[%s2 + $0x18] sm:$0xff]
  %v23 = vld [vmem:[%s0] sm:$0xf]
  %v24 = vld [vmem:[%s0 + $0x4] sm:$0xf]
  %v25 = vld [vmem:[%s0 + $0x8] sm:$0xf]
  %v26 = vld [vmem:[%s0 + $0xc] sm:$0xf]
  %v27 = vld [vmem:[%s0 + $0x10] sm:$0xf]
  %v28 = vld [vmem:[%s0 + $0x14] sm:$0xf]
  %v29 = vld [vmem:[%s0 + $0x18] sm:$0xf]
  %v30 = vld [vmem:[%s0 + $0x1c] sm:$0xf]
  %v31 = vld [vmem:[%s0 + $0x20] sm:$0xf]
  %v32 = vld [vmem:[%s0 + $0x24] sm:$0xf]
  %v33 = vld [vmem:[%s0 + $0x28] sm:$0xf]
  %v34 = vld [vmem:[%s0 + $0x2c] sm:$0xf]
  %v35 = vld [vmem:[%s0 + $0x30] sm:$0xf]
  %v36 = vld [vmem:[%s0 + $0x34] sm:$0xf]
  %v37 = vld [vmem:[%s0 + $0x38] sm:$0xf]
  %v38 = vld [vmem:[%s0 + $0x3c] sm:$0xf]
  %v39 = vld [vmem:[%s0 + $0x40] sm:$0xf]
  %v40 = vld [vmem:[%s0 + $0x44] sm:$0xf]
  %42 = vset.pattern.permute.xlu0 0
  %43 = vperm.xlu0 %42, %v19
  %v44 = vpop.permute.xlu0 %43
  %47 = vset.pattern.permute.xlu0 0
  %48 = vperm.xlu0 %47, %v20
  %v49 = vpop.permute.xlu0 %48
  %52 = vset.pattern.permute.xlu0 0
  %53 = vperm.xlu0 %52, %v21
  %v54 = vpop.permute.xlu0 %53
  %57 = vset.pattern.permute.xlu0 0
  %58 = vperm.xlu0 %57, %v22
  %v59 = vpop.permute.xlu0 %58
  %v65 = vunpack.c.l.b16 %v15
  %v66 = vunpack.c.h.b16 %v15
  %v67 = vunpack.c.l.b16 %v16
  %v68 = vunpack.c.h.b16 %v16
  %v69 = vunpack.c.l.b16 %v17
  %v70 = vunpack.c.h.b16 %v17
  %v71 = vunpack.c.l.b16 %v18
  %v72 = vunpack.c.h.b16 %v18
  %v73 = vpack.c.b16 %v67, %v65
  %v74 = vpack.c.b16 %v68, %v66
  %v75 = vpack.c.b16 %v71, %v69
  %v76 = vpack.c.b16 %v72, %v70
  %v97 = vunpack.c.l.b16 %v23
  %v98 = vunpack.c.l.b16 %v24
  %v99 = vunpack.c.l.b16 %v25
  %v100 = vunpack.c.l.b16 %v26
  %v101 = vunpack.c.l.b16 %v27
  %v102 = vunpack.c.l.b16 %v28
  %v103 = vunpack.c.l.b16 %v29
  %v104 = vunpack.c.l.b16 %v30
  %v105 = vunpack.c.l.b16 %v31
  %v106 = vunpack.c.l.b16 %v32
  %v107 = vunpack.c.l.b16 %v33
  %v108 = vunpack.c.l.b16 %v34
  %v109 = vunpack.c.l.b16 %v35
  %v110 = vunpack.c.l.b16 %v36
  %v111 = vunpack.c.l.b16 %v37
  %v112 = vunpack.c.l.b16 %v38
  %v113 = vunpack.c.l.b16 %v39
  %v114 = vunpack.c.l.b16 %v40
  %v115 = vpack.c.b16 %v98, %v97
  %v116 = vpack.c.b16 %v100, %v99
  %v117 = vpack.c.b16 %v102, %v101
  %v118 = vpack.c.b16 %v104, %v103
  %v119 = vpack.c.b16 %v106, %v105
  %v120 = vpack.c.b16 %v108, %v107
  %v121 = vpack.c.b16 %v110, %v109
  %v122 = vpack.c.b16 %v112, %v111
  %v123 = vpack.c.b16 %v114, %v113
  %vm133 = vcmask 130048
  %v135 = vsel %vm133, %v74, 0
  %v138 = vsel %vm133, %v76, 0
  %140 = vmatprep.subr.bf16.mxu0 0
  %141 = vmatpush1.bf16.msra.mxu0 %v122
  %142 = vmatprep.subr.bf16.mxu0 0
  %143 = vmatpush1.bf16.msra.mxu0 %v121
  %144 = vmatprep.subr.bf16.mxu0 0
  %145 = vmatpush1.bf16.msra.mxu0 %v120
  %146 = vmatprep.subr.bf16.mxu0 0
  %147 = vmatpush1.bf16.msra.mxu0 %v119
  %148 = vmatprep.subr.bf16.mxu0 0
  %149 = vmatpush1.bf16.msra.mxu0 %v118
  %150 = vmatprep.subr.bf16.mxu0 0
  %151 = vmatpush1.bf16.msra.mxu0 %v117
  %152 = vmatprep.subr.bf16.mxu0 0
  %153 = vmatpush1.bf16.msra.mxu0 %v116
  %154 = vmatprep.subr.bf16.mxu0 0
  %155 = vmatpush1.bf16.msra.mxu0 %v115
  %156 = vmatprep.subr.bf16.mxu0 0
  %157 = vmatpush2.bf16.msra.mxu0 0
  %158 = vmatprep.subr.bf16.mxu0 0
  %159 = vmatpush2.bf16.msra.mxu0 0
  %160 = vmatprep.subr.bf16.mxu0 0
  %161 = vmatpush2.bf16.msra.mxu0 0
  %162 = vmatprep.subr.bf16.mxu0 0
  %163 = vmatpush2.bf16.msra.mxu0 0
  %164 = vmatprep.subr.bf16.mxu0 0
  %165 = vmatpush2.bf16.msra.mxu0 0
  %166 = vmatprep.subr.bf16.mxu0 0
  %167 = vmatpush2.bf16.msra.mxu0 0
  %168 = vmatprep.subr.bf16.mxu0 0
  %169 = vmatpush2.bf16.msra.mxu0 0
  %170 = vmatprep.subr.bf16.mxu0 0
  %171 = vmatpush2.bf16.msra.mxu0 %v123
  %172 = vmatprep.mubr.bf16.mxu0 %v135
  %173 = vmatmul.mubr.bf16.gmra.mxu0 %v73
  %v174 = vpop.f32.mrf.mxu0
  %v175 = vadd.f32 %v44, %v174
  %v176 = vpop.f32.mrf.mxu0
  %v177 = vpop.f32.mrf.mxu0
  %v178 = vadd.f32 %v49, %v177
  %v179 = vpop.f32.mrf.mxu0
  %180 = vmatprep.mubr.bf16.mxu0 %v138
  %181 = vmatmul.mubr.bf16.gmra.mxu0 %v75
  %v182 = vpop.f32.mrf.mxu0
  %v183 = vadd.f32 %v54, %v182
  %v184 = vpop.f32.mrf.mxu0
  %v185 = vpop.f32.mrf.mxu0
  %v186 = vadd.f32 %v59, %v185
  %v187 = vpop.f32.mrf.mxu0
  %188 = vdwg.mxu0
  %v189 = vmul.f32 %v175, 0.5
  %v190 = vmul.f32 %v178, 0.5
  %v191 = vmul.f32 %v183, 0.5
  %v192 = vmul.f32 %v186, 0.5
  %v193 = vmul.f32 %v175, 0.70710677
  %v194 = vmul.f32 %v178, 0.70710677
  %v195 = vmul.f32 %v183, 0.70710677
  %v196 = vmul.f32 %v186, 0.70710677
  %v197 = verf.f32.pop %v193
  %v198 = verf.f32.pop %v194
  %v199 = verf.f32.pop %v195
  %v200 = verf.f32.pop %v196
  %v201 = vadd.f32 %v197, 1.0
  %v202 = vadd.f32 %v198, 1.0
  %v203 = vadd.f32 %v199, 1.0
  %v204 = vadd.f32 %v200, 1.0
  %v205 = vmul.f32 %v189, %v201
  %v206 = vmul.f32 %v190, %v202
  %v207 = vmul.f32 %v191, %v203
  %v208 = vmul.f32 %v192, %v204
  %s209 = scalar_lea.vmem %s0, 72
  %v210 = vld [vmem:[%s209] sm:$0xf]
  %v211 = vld [vmem:[%s209 + $0x4] sm:$0xf]
  %v212 = vld [vmem:[%s209 + $0x8] sm:$0xf]
  %v213 = vld [vmem:[%s209 + $0xc] sm:$0xf]
  %v214 = vld [vmem:[%s209 + $0x10] sm:$0xf]
  %v215 = vld [vmem:[%s209 + $0x14] sm:$0xf]
  %v216 = vld [vmem:[%s209 + $0x18] sm:$0xf]
  %v217 = vld [vmem:[%s209 + $0x1c] sm:$0xf]
  %v218 = vld [vmem:[%s209 + $0x20] sm:$0xf]
  %v219 = vld [vmem:[%s209 + $0x24] sm:$0xf]
  %v220 = vld [vmem:[%s209 + $0x28] sm:$0xf]
  %v221 = vld [vmem:[%s209 + $0x2c] sm:$0xf]
  %v222 = vld [vmem:[%s209 + $0x30] sm:$0xf]
  %v223 = vld [vmem:[%s209 + $0x34] sm:$0xf]
  %v224 = vld [vmem:[%s209 + $0x38] sm:$0xf]
  %v225 = vld [vmem:[%s209 + $0x3c] sm:$0xf]
  %v226 = vld [vmem:[%s209 + $0x40] sm:$0xf]
  %v227 = vld [vmem:[%s209 + $0x44] sm:$0xf]
  %v246 = vunpack.c.l.b16 %v210
  %v247 = vunpack.c.l.b16 %v211
  %v248 = vunpack.c.l.b16 %v212
  %v249 = vunpack.c.l.b16 %v213
  %v250 = vunpack.c.l.b16 %v214
  %v251 = vunpack.c.l.b16 %v215
  %v252 = vunpack.c.l.b16 %v216
  %v253 = vunpack.c.l.b16 %v217
  %v254 = vunpack.c.l.b16 %v218
  %v255 = vunpack.c.l.b16 %v219
  %v256 = vunpack.c.l.b16 %v220
  %v257 = vunpack.c.l.b16 %v221
  %v258 = vunpack.c.l.b16 %v222
  %v259 = vunpack.c.l.b16 %v223
  %v260 = vunpack.c.l.b16 %v224
  %v261 = vunpack.c.l.b16 %v225
  %v262 = vunpack.c.l.b16 %v226
  %v263 = vunpack.c.l.b16 %v227
  %v264 = vpack.c.b16 %v247, %v246
  %v265 = vpack.c.b16 %v249, %v248
  %v266 = vpack.c.b16 %v251, %v250
  %v267 = vpack.c.b16 %v253, %v252
  %v268 = vpack.c.b16 %v255, %v254
  %v269 = vpack.c.b16 %v257, %v256
  %v270 = vpack.c.b16 %v259, %v258
  %v271 = vpack.c.b16 %v261, %v260
  %v272 = vpack.c.b16 %v263, %v262
  %282 = vmatprep.subr.bf16.mxu0 0
  %283 = vmatpush1.bf16.msra.mxu0 %v271
  %284 = vmatprep.subr.bf16.mxu0 0
  %285 = vmatpush1.bf16.msra.mxu0 %v270
  %286 = vmatprep.subr.bf16.mxu0 0
  %287 = vmatpush1.bf16.msra.mxu0 %v269
  %288 = vmatprep.subr.bf16.mxu0 0
  %289 = vmatpush1.bf16.msra.mxu0 %v268
  %290 = vmatprep.subr.bf16.mxu0 0
  %291 = vmatpush1.bf16.msra.mxu0 %v267
  %292 = vmatprep.subr.bf16.mxu0 0
  %293 = vmatpush1.bf16.msra.mxu0 %v266
  %294 = vmatprep.subr.bf16.mxu0 0
  %295 = vmatpush1.bf16.msra.mxu0 %v265
  %296 = vmatprep.subr.bf16.mxu0 0
  %297 = vmatpush1.bf16.msra.mxu0 %v264
  %298 = vmatprep.subr.bf16.mxu0 0
  %299 = vmatpush2.bf16.msra.mxu0 0
  %300 = vmatprep.subr.bf16.mxu0 0
  %301 = vmatpush2.bf16.msra.mxu0 0
  %302 = vmatprep.subr.bf16.mxu0 0
  %303 = vmatpush2.bf16.msra.mxu0 0
  %304 = vmatprep.subr.bf16.mxu0 0
  %305 = vmatpush2.bf16.msra.mxu0 0
  %306 = vmatprep.subr.bf16.mxu0 0
  %307 = vmatpush2.bf16.msra.mxu0 0
  %308 = vmatprep.subr.bf16.mxu0 0
  %309 = vmatpush2.bf16.msra.mxu0 0
  %310 = vmatprep.subr.bf16.mxu0 0
  %311 = vmatpush2.bf16.msra.mxu0 0
  %312 = vmatprep.subr.bf16.mxu0 0
  %313 = vmatpush2.bf16.msra.mxu0 %v272
  %314 = vmatprep.mubr.bf16.mxu0 %v135
  %315 = vmatmul.mubr.bf16.gmra.mxu0 %v73
  %v316 = vpop.f32.mrf.mxu0
  %v317 = vadd.f32 %v44, %v316
  %v318 = vpop.f32.mrf.mxu0
  %v319 = vpop.f32.mrf.mxu0
  %v320 = vadd.f32 %v49, %v319
  %v321 = vpop.f32.mrf.mxu0
  %322 = vmatprep.mubr.bf16.mxu0 %v138
  %323 = vmatmul.mubr.bf16.gmra.mxu0 %v75
  %v324 = vpop.f32.mrf.mxu0
  %v325 = vadd.f32 %v54, %v324
  %v326 = vpop.f32.mrf.mxu0
  %v327 = vpop.f32.mrf.mxu0
  %v328 = vadd.f32 %v59, %v327
  %v329 = vpop.f32.mrf.mxu0
  %330 = vdwg.mxu0
  %v331 = vmul.f32 %v317, 0.5
  %v332 = vmul.f32 %v320, 0.5
  %v333 = vmul.f32 %v325, 0.5
  %v334 = vmul.f32 %v328, 0.5
  %v335 = vmul.f32 %v317, 0.70710677
  %v336 = vmul.f32 %v320, 0.70710677
  %v337 = vmul.f32 %v325, 0.70710677
  %v338 = vmul.f32 %v328, 0.70710677
  %v339 = verf.f32.pop %v335
  %v340 = verf.f32.pop %v336
  %v341 = verf.f32.pop %v337
  %v342 = verf.f32.pop %v338
  %v343 = vadd.f32 %v339, 1.0
  %v344 = vadd.f32 %v340, 1.0
  %v345 = vadd.f32 %v341, 1.0
  %v346 = vadd.f32 %v342, 1.0
  %v347 = vmul.f32 %v331, %v343
  %v348 = vmul.f32 %v332, %v344
  %v349 = vmul.f32 %v333, %v345
  %v350 = vmul.f32 %v334, %v346
  %v351 = vmax.f32 %v205, %v347
  %v352 = vmax.f32 %v206, %v348
  %v353 = vmax.f32 %v207, %v349
  %v354 = vmax.f32 %v208, %v350
  %s355 = scalar_lea.vmem %s0, 144
  %v356 = vld [vmem:[%s355] sm:$0xf]
  %v357 = vld [vmem:[%s355 + $0x4] sm:$0xf]
  %v358 = vld [vmem:[%s355 + $0x8] sm:$0xf]
  %v359 = vld [vmem:[%s355 + $0xc] sm:$0xf]
  %v360 = vld [vmem:[%s355 + $0x10] sm:$0xf]
  %v361 = vld [vmem:[%s355 + $0x14] sm:$0xf]
  %v362 = vld [vmem:[%s355 + $0x18] sm:$0xf]
  %v363 = vld [vmem:[%s355 + $0x1c] sm:$0xf]
  %v364 = vld [vmem:[%s355 + $0x20] sm:$0xf]
  %v365 = vld [vmem:[%s355 + $0x24] sm:$0xf]
  %v366 = vld [vmem:[%s355 + $0x28] sm:$0xf]
  %v367 = vld [vmem:[%s355 + $0x2c] sm:$0xf]
  %v368 = vld [vmem:[%s355 + $0x30] sm:$0xf]
  %v369 = vld [vmem:[%s355 + $0x34] sm:$0xf]
  %v370 = vld [vmem:[%s355 + $0x38] sm:$0xf]
  %v371 = vld [vmem:[%s355 + $0x3c] sm:$0xf]
  %v372 = vld [vmem:[%s355 + $0x40] sm:$0xf]
  %v373 = vld [vmem:[%s355 + $0x44] sm:$0xf]
  %v392 = vunpack.c.l.b16 %v356
  %v393 = vunpack.c.l.b16 %v357
  %v394 = vunpack.c.l.b16 %v358
  %v395 = vunpack.c.l.b16 %v359
  %v396 = vunpack.c.l.b16 %v360
  %v397 = vunpack.c.l.b16 %v361
  %v398 = vunpack.c.l.b16 %v362
  %v399 = vunpack.c.l.b16 %v363
  %v400 = vunpack.c.l.b16 %v364
  %v401 = vunpack.c.l.b16 %v365
  %v402 = vunpack.c.l.b16 %v366
  %v403 = vunpack.c.l.b16 %v367
  %v404 = vunpack.c.l.b16 %v368
  %v405 = vunpack.c.l.b16 %v369
  %v406 = vunpack.c.l.b16 %v370
  %v407 = vunpack.c.l.b16 %v371
  %v408 = vunpack.c.l.b16 %v372
  %v409 = vunpack.c.l.b16 %v373
  %v410 = vpack.c.b16 %v393, %v392
  %v411 = vpack.c.b16 %v395, %v394
  %v412 = vpack.c.b16 %v397, %v396
  %v413 = vpack.c.b16 %v399, %v398
  %v414 = vpack.c.b16 %v401, %v400
  %v415 = vpack.c.b16 %v403, %v402
  %v416 = vpack.c.b16 %v405, %v404
  %v417 = vpack.c.b16 %v407, %v406
  %v418 = vpack.c.b16 %v409, %v408
  %428 = vmatprep.subr.bf16.mxu0 0
  %429 = vmatpush1.bf16.msra.mxu0 %v417
  %430 = vmatprep.subr.bf16.mxu0 0
  %431 = vmatpush1.bf16.msra.mxu0 %v416
  %432 = vmatprep.subr.bf16.mxu0 0
  %433 = vmatpush1.bf16.msra.mxu0 %v415
  %434 = vmatprep.subr.bf16.mxu0 0
  %435 = vmatpush1.bf16.msra.mxu0 %v414
  %436 = vmatprep.subr.bf16.mxu0 0
  %437 = vmatpush1.bf16.msra.mxu0 %v413
  %438 = vmatprep.subr.bf16.mxu0 0
  %439 = vmatpush1.bf16.msra.mxu0 %v412
  %440 = vmatprep.subr.bf16.mxu0 0
  %441 = vmatpush1.bf16.msra.mxu0 %v411
  %442 = vmatprep.subr.bf16.mxu0 0
  %443 = vmatpush1.bf16.msra.mxu0 %v410
  %444 = vmatprep.subr.bf16.mxu0 0
  %445 = vmatpush2.bf16.msra.mxu0 0
  %446 = vmatprep.subr.bf16.mxu0 0
  %447 = vmatpush2.bf16.msra.mxu0 0
  %448 = vmatprep.subr.bf16.mxu0 0
  %449 = vmatpush2.bf16.msra.mxu0 0
  %450 = vmatprep.subr.bf16.mxu0 0
  %451 = vmatpush2.bf16.msra.mxu0 0
  %452 = vmatprep.subr.bf16.mxu0 0
  %453 = vmatpush2.bf16.msra.mxu0 0
  %454 = vmatprep.subr.bf16.mxu0 0
  %455 = vmatpush2.bf16.msra.mxu0 0
  %456 = vmatprep.subr.bf16.mxu0 0
  %457 = vmatpush2.bf16.msra.mxu0 0
  %458 = vmatprep.subr.bf16.mxu0 0
  %459 = vmatpush2.bf16.msra.mxu0 %v418
  %460 = vmatprep.mubr.bf16.mxu0 %v135
  %461 = vmatmul.mubr.bf16.gmra.mxu0 %v73
  %v462 = vpop.f32.mrf.mxu0
  %v463 = vadd.f32 %v44, %v462
  %v464 = vpop.f32.mrf.mxu0
  %v465 = vpop.f32.mrf.mxu0
  %v466 = vadd.f32 %v49, %v465
  %v467 = vpop.f32.mrf.mxu0
  %468 = vmatprep.mubr.bf16.mxu0 %v138
  %469 = vmatmul.mubr.bf16.gmra.mxu0 %v75
  %v470 = vpop.f32.mrf.mxu0
  %v471 = vadd.f32 %v54, %v470
  %v472 = vpop.f32.mrf.mxu0
  %v473 = vpop.f32.mrf.mxu0
  %v474 = vadd.f32 %v59, %v473
  %v475 = vpop.f32.mrf.mxu0
  %476 = vdwg.mxu0
  %v477 = vmul.f32 %v463, 0.5
  %v478 = vmul.f32 %v466, 0.5
  %v479 = vmul.f32 %v471, 0.5
  %v480 = vmul.f32 %v474, 0.5
  %v481 = vmul.f32 %v463, 0.70710677
  %v482 = vmul.f32 %v466, 0.70710677
  %v483 = vmul.f32 %v471, 0.70710677
  %v484 = vmul.f32 %v474, 0.70710677
  %v485 = verf.f32.pop %v481
  %v486 = verf.f32.pop %v482
  %v487 = verf.f32.pop %v483
  %v488 = verf.f32.pop %v484
  %v489 = vadd.f32 %v485, 1.0
  %v490 = vadd.f32 %v486, 1.0
  %v491 = vadd.f32 %v487, 1.0
  %v492 = vadd.f32 %v488, 1.0
  %v493 = vmul.f32 %v477, %v489
  %v494 = vmul.f32 %v478, %v490
  %v495 = vmul.f32 %v479, %v491
  %v496 = vmul.f32 %v480, %v492
  %v497 = vmax.f32 %v351, %v493
  %v498 = vmax.f32 %v352, %v494
  %v499 = vmax.f32 %v353, %v495
  %v500 = vmax.f32 %v354, %v496
  %s501 = scalar_lea.vmem %s0, 216
  %v502 = vld [vmem:[%s501] sm:$0xf]
  %v503 = vld [vmem:[%s501 + $0x4] sm:$0xf]
  %v504 = vld [vmem:[%s501 + $0x8] sm:$0xf]
  %v505 = vld [vmem:[%s501 + $0xc] sm:$0xf]
  %v506 = vld [vmem:[%s501 + $0x10] sm:$0xf]
  %v507 = vld [vmem:[%s501 + $0x14] sm:$0xf]
  %v508 = vld [vmem:[%s501 + $0x18] sm:$0xf]
  %v509 = vld [vmem:[%s501 + $0x1c] sm:$0xf]
  %v510 = vld [vmem:[%s501 + $0x20] sm:$0xf]
  %v511 = vld [vmem:[%s501 + $0x24] sm:$0xf]
  %v512 = vld [vmem:[%s501 + $0x28] sm:$0xf]
  %v513 = vld [vmem:[%s501 + $0x2c] sm:$0xf]
  %v514 = vld [vmem:[%s501 + $0x30] sm:$0xf]
  %v515 = vld [vmem:[%s501 + $0x34] sm:$0xf]
  %v516 = vld [vmem:[%s501 + $0x38] sm:$0xf]
  %v517 = vld [vmem:[%s501 + $0x3c] sm:$0xf]
  %v518 = vld [vmem:[%s501 + $0x40] sm:$0xf]
  %v519 = vld [vmem:[%s501 + $0x44] sm:$0xf]
  %v538 = vunpack.c.l.b16 %v502
  %v539 = vunpack.c.l.b16 %v503
  %v540 = vunpack.c.l.b16 %v504
  %v541 = vunpack.c.l.b16 %v505
  %v542 = vunpack.c.l.b16 %v506
  %v543 = vunpack.c.l.b16 %v507
  %v544 = vunpack.c.l.b16 %v508
  %v545 = vunpack.c.l.b16 %v509
  %v546 = vunpack.c.l.b16 %v510
  %v547 = vunpack.c.l.b16 %v511
  %v548 = vunpack.c.l.b16 %v512
  %v549 = vunpack.c.l.b16 %v513
  %v550 = vunpack.c.l.b16 %v514
  %v551 = vunpack.c.l.b16 %v515
  %v552 = vunpack.c.l.b16 %v516
  %v553 = vunpack.c.l.b16 %v517
  %v554 = vunpack.c.l.b16 %v518
  %v555 = vunpack.c.l.b16 %v519
  %v556 = vpack.c.b16 %v539, %v538
  %v557 = vpack.c.b16 %v541, %v540
  %v558 = vpack.c.b16 %v543, %v542
  %v559 = vpack.c.b16 %v545, %v544
  %v560 = vpack.c.b16 %v547, %v546
  %v561 = vpack.c.b16 %v549, %v548
  %v562 = vpack.c.b16 %v551, %v550
  %v563 = vpack.c.b16 %v553, %v552
  %v564 = vpack.c.b16 %v555, %v554
  %574 = vmatprep.subr.bf16.mxu0 0
  %575 = vmatpush1.bf16.msra.mxu0 %v563
  %576 = vmatprep.subr.bf16.mxu0 0
  %577 = vmatpush1.bf16.msra.mxu0 %v562
  %578 = vmatprep.subr.bf16.mxu0 0
  %579 = vmatpush1.bf16.msra.mxu0 %v561
  %580 = vmatprep.subr.bf16.mxu0 0
  %581 = vmatpush1.bf16.msra.mxu0 %v560
  %582 = vmatprep.subr.bf16.mxu0 0
  %583 = vmatpush1.bf16.msra.mxu0 %v559
  %584 = vmatprep.subr.bf16.mxu0 0
  %585 = vmatpush1.bf16.msra.mxu0 %v558
  %586 = vmatprep.subr.bf16.mxu0 0
  %587 = vmatpush1.bf16.msra.mxu0 %v557
  %588 = vmatprep.subr.bf16.mxu0 0
  %589 = vmatpush1.bf16.msra.mxu0 %v556
  %590 = vmatprep.subr.bf16.mxu0 0
  %591 = vmatpush2.bf16.msra.mxu0 0
  %592 = vmatprep.subr.bf16.mxu0 0
  %593 = vmatpush2.bf16.msra.mxu0 0
  %594 = vmatprep.subr.bf16.mxu0 0
  %595 = vmatpush2.bf16.msra.mxu0 0
  %596 = vmatprep.subr.bf16.mxu0 0
  %597 = vmatpush2.bf16.msra.mxu0 0
  %598 = vmatprep.subr.bf16.mxu0 0
  %599 = vmatpush2.bf16.msra.mxu0 0
  %600 = vmatprep.subr.bf16.mxu0 0
  %601 = vmatpush2.bf16.msra.mxu0 0
  %602 = vmatprep.subr.bf16.mxu0 0
  %603 = vmatpush2.bf16.msra.mxu0 0
  %604 = vmatprep.subr.bf16.mxu0 0
  %605 = vmatpush2.bf16.msra.mxu0 %v564
  %606 = vmatprep.mubr.bf16.mxu0 %v135
  %607 = vmatmul.mubr.bf16.gmra.mxu0 %v73
  %v608 = vpop.f32.mrf.mxu0
  %v609 = vadd.f32 %v44, %v608
  %v610 = vpop.f32.mrf.mxu0
  %v611 = vpop.f32.mrf.mxu0
  %v612 = vadd.f32 %v49, %v611
  %v613 = vpop.f32.mrf.mxu0
  %614 = vmatprep.mubr.bf16.mxu0 %v138
  %615 = vmatmul.mubr.bf16.gmra.mxu0 %v75
  %v616 = vpop.f32.mrf.mxu0
  %v617 = vadd.f32 %v54, %v616
  %v618 = vpop.f32.mrf.mxu0
  %v619 = vpop.f32.mrf.mxu0
  %v620 = vadd.f32 %v59, %v619
  %v621 = vpop.f32.mrf.mxu0
  %622 = vdwg.mxu0
  %v623 = vmul.f32 %v609, 0.5
  %v624 = vmul.f32 %v612, 0.5
  %v625 = vmul.f32 %v617, 0.5
  %v626 = vmul.f32 %v620, 0.5
  %v627 = vmul.f32 %v609, 0.70710677
  %v628 = vmul.f32 %v612, 0.70710677
  %v629 = vmul.f32 %v617, 0.70710677
  %v630 = vmul.f32 %v620, 0.70710677
  %v631 = verf.f32.pop %v627
  %v632 = verf.f32.pop %v628
  %v633 = verf.f32.pop %v629
  %v634 = verf.f32.pop %v630
  %v635 = vadd.f32 %v631, 1.0
  %v636 = vadd.f32 %v632, 1.0
  %v637 = vadd.f32 %v633, 1.0
  %v638 = vadd.f32 %v634, 1.0
  %v639 = vmul.f32 %v623, %v635
  %v640 = vmul.f32 %v624, %v636
  %v641 = vmul.f32 %v625, %v637
  %v642 = vmul.f32 %v626, %v638
  %v643 = vmax.f32 %v497, %v639
  %v644 = vmax.f32 %v498, %v640
  %v645 = vmax.f32 %v499, %v641
  %v646 = vmax.f32 %v500, %v642
  %vm647 = vcmask 261120
  %648 = vst.msk [vmem:[%s3] sm:$0xff] %vm647, %v643
  %649 = vst.msk [vmem:[%s3 + $0x8] sm:$0xff] %vm647, %v644
  %650 = vst.msk [vmem:[%s3 + $0x10] sm:$0xff] %vm647, %v645
  %651 = vst.msk [vmem:[%s3 + $0x18] sm:$0xff] %vm647, %v646
  // Predicated region
  $region14: #{covidetector_forward.8} parent=0 // pred_check
    _
  $region15: #{covidetector_forward.8} parent=0 // pred_check_branch
    %653 = sbr.rel (0) target = $region17
  $region16: #{covidetector_forward.8} parent=0 // pred_region
    _
  $region17: #{covidetector_forward.8} parent=0 // pred_fallthru
    _
  // Predicated region
  $region18: #{covidetector_forward.8} parent=0 // pred_check
    _
  $region19: #{covidetector_forward.8} parent=0 // pred_check_branch
    %655 = sbr.rel (0) target = $region21
  $region20: #{covidetector_forward.8} parent=0 // pred_region
    _
  $region21: #{covidetector_forward.8} parent=0 // pred_fallthru
    _

// kernel: covidetector_forward.9
$region0: #{covidetector_forward.9}
  #allocation0 [shape = 'u32[]', space=smem, size = 0x4, offset = 0x4, fixed_abs, tag = 'smem constant byte address 0x4 - core index']
  #allocation1 [shape = 'u32[144,128]{1,0:T(1,128)}', space=vmem, size = 0x12000, scoped, tag = 'internal scratch']
  %s0 = inlined_call_operand.vmem [shape: f32[2,16,32], index: 0, kind: input, shape index: {}, may-alias: {0,1}]
  %s1 = inlined_call_operand.vmem [shape: f32[2,16,32], index: 1, kind: input, shape index: {}, may-alias: {0,1}]
  %s2 = inlined_call_operand.vmem [shape: f32[1,32], index: 2, kind: input, shape index: {}]
  %s3 = inlined_call_operand.vmem [shape: f32[1,32], index: 3, kind: input, shape index: {}]
  %s4 = inlined_call_operand.vmem [shape: bf16[2,32,16], index: 4, kind: input, shape index: {}]
  %s5 = inlined_call_operand.vmem [shape: bf16[2,32,16], index: 5, kind: input, shape index: {}]
  %s6 = inlined_call_operand.vmem [shape: bf16[2,16,32], index: 6, kind: input, shape index: {}]
  %s7 = inlined_call_operand.vmem [shape: f32[1,32], index: 7, kind: input, shape index: {}]
  %s8 = inlined_call_operand.vmem [shape: f32[1,32], index: 8, kind: input, shape index: {}]
  %s9 = inlined_call_operand.vmem [shape: f32[1,32], index: 9, kind: input, shape index: {}]
  %s10 = inlined_call_operand.vmem [shape: bf16[32,128], index: 10, kind: input, shape index: {}]
  %s11 = inlined_call_operand.vmem [shape: f32[1,128], index: 11, kind: input, shape index: {}]
  %s12 = inlined_call_operand.vmem [shape: bf16[128,32], index: 12, kind: input, shape index: {}]
  %s13 = inlined_call_operand.vmem [shape: f32[1,32], index: 13, kind: input, shape index: {}]
  %s14 = inlined_call_operand.vmem [shape: f32[2,16,32], index: 14, kind: output, shape index: {0}]
  %s15 = inlined_call_operand.vmem [shape: f32[2,16,32], index: 15, kind: output, shape index: {1}]
  %16 = xla_tuple %s14, %s15
  %s17 = sld [smem:[#allocation0]]
  $region97: #{covidetector_forward.9} parent=0
    _
  %s19 = ssub.s32 1, %s17
  %s20 = scalar_select 0, %s19, %s17
  loop: start=0, step=1, limit=4
  $region2: #{covidetector_forward.9} parent=0 // loop_pre_header
    _
  $region3: #{covidetector_forward.9} parent=0 // loop_header
    %s22 = sphi 0, %s26
    %p23 = scmp.ge.s32.totalorder %s22, 4
    %s32 = sphi 0, %s34
    %s35 = sphi 0, %s32
    %s36 = sphi 0, %s35
    %s52 = sphi 0, %s36
    %s58 = sphi 0, %s60
    %s61 = sphi 0, %s58
    %s62 = sphi 0, %s61
    %s78 = sphi 0, %s62
    %s82 = sphi 0, %s82
    %s84 = sphi 0, %s82
    %s85 = sphi 0, %s84
    %s99 = sphi 0, %s85
    %s103 = sphi 0, %s103
    %s105 = sphi 0, %s103
    %s106 = sphi 0, %s105
    %s120 = sphi 0, %s106
    %s124 = sphi 0, %s124
    %s126 = sphi 0, %s124
    %s127 = sphi 0, %s126
    %s141 = sphi 0, %s127
    %s145 = sphi 0, %s145
    %s147 = sphi 0, %s145
    %s148 = sphi 0, %s147
    %s162 = sphi 0, %s148
    %s166 = sphi 0, %s166
    %s168 = sphi 0, %s166
    %s169 = sphi 0, %s168
    %s183 = sphi 0, %s169
    %s187 = sphi 0, %s187
    %s189 = sphi 0, %s187
    %s190 = sphi 0, %s189
    %s204 = sphi 0, %s190
    %s208 = sphi 0, %s208
    %s210 = sphi 0, %s208
    %s211 = sphi 0, %s210
    %s225 = sphi 0, %s211
    %s229 = sphi 0, %s229
    %s231 = sphi 0, %s229
    %s232 = sphi 0, %s231
    %s246 = sphi 0, %s232
    %s250 = sphi 0, %s250
    %s252 = sphi 0, %s250
    %s253 = sphi 0, %s252
    %s267 = sphi 0, %s253
    %s271 = sphi 0, %s271
    %s273 = sphi 0, %s271
    %s274 = sphi 0, %s273
    %s288 = sphi 0, %s274
    %s292 = sphi 0, %s292
    %s294 = sphi 0, %s292
    %s295 = sphi 0, %s294
    %s309 = sphi 0, %s295
    %s313 = sphi 0, %s313
    %s315 = sphi 0, %s313
    %s316 = sphi 0, %s315
    %s330 = sphi 0, %s316
    %s336 = sphi 0, %s338
    %s339 = sphi 0, %s336
    %s340 = sphi 0, %s339
    %s356 = sphi 0, %s340
    %s362 = sphi 0, %s364
    %s365 = sphi 0, %s362
    %s366 = sphi 0, %s365
    %s382 = sphi 0, %s366
  $region4: #{covidetector_forward.9} parent=0 // loop_header_branch
    %25 = sbr.rel (%p23) target = $region8
  $region5: #{covidetector_forward.9} parent=0 // loop_body
    %s27 = ssub.s32 %s22, 1
    %s28 = ssub.s32 %s22, 2
    %s29 = sadd.s32 %s22, 1
    %s30 = ssub.s32 %s22, %s29
    %p31 = scmp.eq.s32.totalorder %s30, 0
    %s33 = sadd.s32 %s32, 1
    %s34 = scalar_select %p31, %s32, %s33
    %p37 = pneg %p31
    %p38 = scmp.eq.s32.totalorder %s22, 1
    %p39 = por %p37, %p38
    %p40 = scmp.ne.s32.totalorder %s32, %s35
    %p41 = scmp.eq.s32.totalorder %s22, 0
    %p42 = por %p40, %p41
    %p43 = scmp.ne.s32.totalorder %s32, %s35
    %p44 = scmp.eq.s32.totalorder %s27, 1
    %p45 = por %p43, %p44
    %p46 = scmp.ne.s32.totalorder %s35, %s36
    %p47 = scmp.eq.s32.totalorder %s27, 0
    %p48 = por %p46, %p47
    %p49 = scmp.ne.s32.totalorder %s35, %s36
    %p50 = scmp.eq.s32.totalorder %s28, 1
    %p51 = por %p49, %p50
    %p53 = scmp.ne.s32.totalorder %s36, %s52
    %p54 = scmp.eq.s32.totalorder %s28, 0
    %p55 = por %p53, %p54
    %s56 = ssub.s32 %s22, %s29
    %p57 = scmp.eq.s32.totalorder %s56, 0
    %s59 = sadd.s32 %s58, 1
    %s60 = scalar_select %p57, %s58, %s59
    %p63 = pneg %p57
    %p64 = scmp.eq.s32.totalorder %s22, 1
    %p65 = por %p63, %p64
    %p66 = scmp.ne.s32.totalorder %s58, %s61
    %p67 = scmp.eq.s32.totalorder %s22, 0
    %p68 = por %p66, %p67
    %p69 = scmp.ne.s32.totalorder %s58, %s61
    %p70 = scmp.eq.s32.totalorder %s27, 1
    %p71 = por %p69, %p70
    %p72 = scmp.ne.s32.totalorder %s61, %s62
    %p73 = scmp.eq.s32.totalorder %s27, 0
    %p74 = por %p72, %p73
    %p75 = scmp.ne.s32.totalorder %s61, %s62
    %p76 = scmp.eq.s32.totalorder %s28, 1
    %p77 = por %p75, %p76
    %p79 = scmp.ne.s32.totalorder %s62, %s78
    %p80 = scmp.eq.s32.totalorder %s28, 0
    %p81 = por %p79, %p80
    %s83 = sadd.s32 %s82, 1
    %p86 = scmp.eq.s32.totalorder %s22, 1
    %p87 = scmp.ne.s32.totalorder %s82, %s84
    %p88 = scmp.eq.s32.totalorder %s22, 0
    %p89 = por %p87, %p88
    %p90 = scmp.ne.s32.totalorder %s82, %s84
    %p91 = scmp.eq.s32.totalorder %s27, 1
    %p92 = por %p90, %p91
    %p93 = scmp.ne.s32.totalorder %s84, %s85
    %p94 = scmp.eq.s32.totalorder %s27, 0
    %p95 = por %p93, %p94
    %p96 = scmp.ne.s32.totalorder %s84, %s85
    %p97 = scmp.eq.s32.totalorder %s28, 1
    %p98 = por %p96, %p97
    %p100 = scmp.ne.s32.totalorder %s85, %s99
    %p101 = scmp.eq.s32.totalorder %s28, 0
    %p102 = por %p100, %p101
    %s104 = sadd.s32 %s103, 1
    %p107 = scmp.eq.s32.totalorder %s22, 1
    %p108 = scmp.ne.s32.totalorder %s103, %s105
    %p109 = scmp.eq.s32.totalorder %s22, 0
    %p110 = por %p108, %p109
    %p111 = scmp.ne.s32.totalorder %s103, %s105
    %p112 = scmp.eq.s32.totalorder %s27, 1
    %p113 = por %p111, %p112
    %p114 = scmp.ne.s32.totalorder %s105, %s106
    %p115 = scmp.eq.s32.totalorder %s27, 0
    %p116 = por %p114, %p115
    %p117 = scmp.ne.s32.totalorder %s105, %s106
    %p118 = scmp.eq.s32.totalorder %s28, 1
    %p119 = por %p117, %p118
    %p121 = scmp.ne.s32.totalorder %s106, %s120
    %p122 = scmp.eq.s32.totalorder %s28, 0
    %p123 = por %p121, %p122
    %s125 = sadd.s32 %s124, 1
    %p128 = scmp.eq.s32.totalorder %s22, 1
    %p129 = scmp.ne.s32.totalorder %s124, %s126
    %p130 = scmp.eq.s32.totalorder %s22, 0
    %p131 = por %p129, %p130
    %p132 = scmp.ne.s32.totalorder %s124, %s126
    %p133 = scmp.eq.s32.totalorder %s27, 1
    %p134 = por %p132, %p133
    %p135 = scmp.ne.s32.totalorder %s126, %s127
    %p136 = scmp.eq.s32.totalorder %s27, 0
    %p137 = por %p135, %p136
    %p138 = scmp.ne.s32.totalorder %s126, %s127
    %p139 = scmp.eq.s32.totalorder %s28, 1
    %p140 = por %p138, %p139
    %p142 = scmp.ne.s32.totalorder %s127, %s141
    %p143 = scmp.eq.s32.totalorder %s28, 0
    %p144 = por %p142, %p143
    %s146 = sadd.s32 %s145, 1
    %p149 = scmp.eq.s32.totalorder %s22, 1
    %p150 = scmp.ne.s32.totalorder %s145, %s147
    %p151 = scmp.eq.s32.totalorder %s22, 0
    %p152 = por %p150, %p151
    %p153 = scmp.ne.s32.totalorder %s145, %s147
    %p154 = scmp.eq.s32.totalorder %s27, 1
    %p155 = por %p153, %p154
    %p156 = scmp.ne.s32.totalorder %s147, %s148
    %p157 = scmp.eq.s32.totalorder %s27, 0
    %p158 = por %p156, %p157
    %p159 = scmp.ne.s32.totalorder %s147, %s148
    %p160 = scmp.eq.s32.totalorder %s28, 1
    %p161 = por %p159, %p160
    %p163 = scmp.ne.s32.totalorder %s148, %s162
    %p164 = scmp.eq.s32.totalorder %s28, 0
    %p165 = por %p163, %p164
    %s167 = sadd.s32 %s166, 1
    %p170 = scmp.eq.s32.totalorder %s22, 1
    %p171 = scmp.ne.s32.totalorder %s166, %s168
    %p172 = scmp.eq.s32.totalorder %s22, 0
    %p173 = por %p171, %p172
    %p174 = scmp.ne.s32.totalorder %s166, %s168
    %p175 = scmp.eq.s32.totalorder %s27, 1
    %p176 = por %p174, %p175
    %p177 = scmp.ne.s32.totalorder %s168, %s169
    %p178 = scmp.eq.s32.totalorder %s27, 0
    %p179 = por %p177, %p178
    %p180 = scmp.ne.s32.totalorder %s168, %s169
    %p181 = scmp.eq.s32.totalorder %s28, 1
    %p182 = por %p180, %p181
    %p184 = scmp.ne.s32.totalorder %s169, %s183
    %p185 = scmp.eq.s32.totalorder %s28, 0
    %p186 = por %p184, %p185
    %s188 = sadd.s32 %s187, 1
    %p191 = scmp.eq.s32.totalorder %s22, 1
    %p192 = scmp.ne.s32.totalorder %s187, %s189
    %p193 = scmp.eq.s32.totalorder %s22, 0
    %p194 = por %p192, %p193
    %p195 = scmp.ne.s32.totalorder %s187, %s189
    %p196 = scmp.eq.s32.totalorder %s27, 1
    %p197 = por %p195, %p196
    %p198 = scmp.ne.s32.totalorder %s189, %s190
    %p199 = scmp.eq.s32.totalorder %s27, 0
    %p200 = por %p198, %p199
    %p201 = scmp.ne.s32.totalorder %s189, %s190
    %p202 = scmp.eq.s32.totalorder %s28, 1
    %p203 = por %p201, %p202
    %p205 = scmp.ne.s32.totalorder %s190, %s204
    %p206 = scmp.eq.s32.totalorder %s28, 0
    %p207 = por %p205, %p206
    %s209 = sadd.s32 %s208, 1
    %p212 = scmp.eq.s32.totalorder %s22, 1
    %p213 = scmp.ne.s32.totalorder %s208, %s210
    %p214 = scmp.eq.s32.totalorder %s22, 0
    %p215 = por %p213, %p214
    %p216 = scmp.ne.s32.totalorder %s208, %s210
    %p217 = scmp.eq.s32.totalorder %s27, 1
    %p218 = por %p216, %p217
    %p219 = scmp.ne.s32.totalorder %s210, %s211
    %p220 = scmp.eq.s32.totalorder %s27, 0
    %p221 = por %p219, %p220
    %p222 = scmp.ne.s32.totalorder %s210, %s211
    %p223 = scmp.eq.s32.totalorder %s28, 1
    %p224 = por %p222, %p223
    %p226 = scmp.ne.s32.totalorder %s211, %s225
    %p227 = scmp.eq.s32.totalorder %s28, 0
    %p228 = por %p226, %p227
    %s230 = sadd.s32 %s229, 1
    %p233 = scmp.eq.s32.totalorder %s22, 1
    %p234 = scmp.ne.s32.totalorder %s229, %s231
    %p235 = scmp.eq.s32.totalorder %s22, 0
    %p236 = por %p234, %p235
    %p237 = scmp.ne.s32.totalorder %s229, %s231
    %p238 = scmp.eq.s32.totalorder %s27, 1
    %p239 = por %p237, %p238
    %p240 = scmp.ne.s32.totalorder %s231, %s232
    %p241 = scmp.eq.s32.totalorder %s27, 0
    %p242 = por %p240, %p241
    %p243 = scmp.ne.s32.totalorder %s231, %s232
    %p244 = scmp.eq.s32.totalorder %s28, 1
    %p245 = por %p243, %p244
    %p247 = scmp.ne.s32.totalorder %s232, %s246
    %p248 = scmp.eq.s32.totalorder %s28, 0
    %p249 = por %p247, %p248
    %s251 = sadd.s32 %s250, 1
    %p254 = scmp.eq.s32.totalorder %s22, 1
    %p255 = scmp.ne.s32.totalorder %s250, %s252
    %p256 = scmp.eq.s32.totalorder %s22, 0
    %p257 = por %p255, %p256
    %p258 = scmp.ne.s32.totalorder %s250, %s252
    %p259 = scmp.eq.s32.totalorder %s27, 1
    %p260 = por %p258, %p259
    %p261 = scmp.ne.s32.totalorder %s252, %s253
    %p262 = scmp.eq.s32.totalorder %s27, 0
    %p263 = por %p261, %p262
    %p264 = scmp.ne.s32.totalorder %s252, %s253
    %p265 = scmp.eq.s32.totalorder %s28, 1
    %p266 = por %p264, %p265
    %p268 = scmp.ne.s32.totalorder %s253, %s267
    %p269 = scmp.eq.s32.totalorder %s28, 0
    %p270 = por %p268, %p269
    %s272 = sadd.s32 %s271, 1
    %p275 = scmp.eq.s32.totalorder %s22, 1
    %p276 = scmp.ne.s32.totalorder %s271, %s273
    %p277 = scmp.eq.s32.totalorder %s22, 0
    %p278 = por %p276, %p277
    %p279 = scmp.ne.s32.totalorder %s271, %s273
    %p280 = scmp.eq.s32.totalorder %s27, 1
    %p281 = por %p279, %p280
    %p282 = scmp.ne.s32.totalorder %s273, %s274
    %p283 = scmp.eq.s32.totalorder %s27, 0
    %p284 = por %p282, %p283
    %p285 = scmp.ne.s32.totalorder %s273, %s274
    %p286 = scmp.eq.s32.totalorder %s28, 1
    %p287 = por %p285, %p286
    %p289 = scmp.ne.s32.totalorder %s274, %s288
    %p290 = scmp.eq.s32.totalorder %s28, 0
    %p291 = por %p289, %p290
    %s293 = sadd.s32 %s292, 1
    %p296 = scmp.eq.s32.totalorder %s22, 1
    %p297 = scmp.ne.s32.totalorder %s292, %s294
    %p298 = scmp.eq.s32.totalorder %s22, 0
    %p299 = por %p297, %p298
    %p300 = scmp.ne.s32.totalorder %s292, %s294
    %p301 = scmp.eq.s32.totalorder %s27, 1
    %p302 = por %p300, %p301
    %p303 = scmp.ne.s32.totalorder %s294, %s295
    %p304 = scmp.eq.s32.totalorder %s27, 0
    %p305 = por %p303, %p304
    %p306 = scmp.ne.s32.totalorder %s294, %s295
    %p307 = scmp.eq.s32.totalorder %s28, 1
    %p308 = por %p306, %p307
    %p310 = scmp.ne.s32.totalorder %s295, %s309
    %p311 = scmp.eq.s32.totalorder %s28, 0
    %p312 = por %p310, %p311
    %s314 = sadd.s32 %s313, 1
    %p317 = scmp.eq.s32.totalorder %s22, 1
    %p318 = scmp.ne.s32.totalorder %s313, %s315
    %p319 = scmp.eq.s32.totalorder %s22, 0
    %p320 = por %p318, %p319
    %p321 = scmp.ne.s32.totalorder %s313, %s315
    %p322 = scmp.eq.s32.totalorder %s27, 1
    %p323 = por %p321, %p322
    %p324 = scmp.ne.s32.totalorder %s315, %s316
    %p325 = scmp.eq.s32.totalorder %s27, 0
    %p326 = por %p324, %p325
    %p327 = scmp.ne.s32.totalorder %s315, %s316
    %p328 = scmp.eq.s32.totalorder %s28, 1
    %p329 = por %p327, %p328
    %p331 = scmp.ne.s32.totalorder %s316, %s330
    %p332 = scmp.eq.s32.totalorder %s28, 0
    %p333 = por %p331, %p332
    %s334 = ssub.s32 %s22, %s29
    %p335 = scmp.eq.s32.totalorder %s334, 0
    %s337 = sadd.s32 %s336, 1
    %s338 = scalar_select %p335, %s336, %s337
    %p341 = pneg %p335
    %p342 = scmp.eq.s32.totalorder %s22, 1
    %p343 = por %p341, %p342
    %p344 = scmp.ne.s32.totalorder %s336, %s339
    %p345 = scmp.eq.s32.totalorder %s22, 0
    %p346 = por %p344, %p345
    %p347 = scmp.ne.s32.totalorder %s336, %s339
    %p348 = scmp.eq.s32.totalorder %s27, 1
    %p349 = por %p347, %p348
    %p350 = scmp.ne.s32.totalorder %s339, %s340
    %p351 = scmp.eq.s32.totalorder %s27, 0
    %p352 = por %p350, %p351
    %p353 = scmp.ne.s32.totalorder %s339, %s340
    %p354 = scmp.eq.s32.totalorder %s28, 1
    %p355 = por %p353, %p354
    %p357 = scmp.ne.s32.totalorder %s340, %s356
    %p358 = scmp.eq.s32.totalorder %s28, 0
    %p359 = por %p357, %p358
    %s360 = ssub.s32 %s22, %s29
    %p361 = scmp.eq.s32.totalorder %s360, 0
    %s363 = sadd.s32 %s362, 1
    %s364 = scalar_select %p361, %s362, %s363
    %p367 = pneg %p361
    %p368 = scmp.eq.s32.totalorder %s22, 1
    %p369 = por %p367, %p368
    %p370 = scmp.ne.s32.totalorder %s362, %s365
    %p371 = scmp.eq.s32.totalorder %s22, 0
    %p372 = por %p370, %p371
    %p373 = scmp.ne.s32.totalorder %s362, %s365
    %p374 = scmp.eq.s32.totalorder %s27, 1
    %p375 = por %p373, %p374
    %p376 = scmp.ne.s32.totalorder %s365, %s366
    %p377 = scmp.eq.s32.totalorder %s27, 0
    %p378 = por %p376, %p377
    %p379 = scmp.ne.s32.totalorder %s365, %s366
    %p380 = scmp.eq.s32.totalorder %s28, 1
    %p381 = por %p379, %p380
    %p383 = scmp.ne.s32.totalorder %s366, %s382
    %p384 = scmp.eq.s32.totalorder %s28, 0
    %p385 = por %p383, %p384
    %p386 = scmp.le.s32.totalorder 1, %s22
    %p387 = scmp.lt.s32.totalorder %s22, 3
    %p388 = pnand %p386, %p387
    %p389 = pneg %p388
    // Predicated region
    $region9: #{covidetector_forward.9} parent=5 // pred_check
      _
    $region10: #{covidetector_forward.9} parent=5 // pred_check_branch
      %391 = sbr.rel (%p388) target = $region12
    $region11: #{covidetector_forward.9} parent=5 // pred_region
      %s392 = ssub.s32 %s22, 1
      // Predicated region
      $region13: #{covidetector_forward.9} parent=11 // pred_check
        %p393 = pneg %p95
      $region14: #{covidetector_forward.9} parent=11 // pred_check_branch
        %395 = sbr.rel (%p393) target = $region16
      $region15: #{covidetector_forward.9} parent=11 // pred_region
        _
      $region16: #{covidetector_forward.9} parent=11 // pred_fallthru
        _
      // Predicated region
      $region17: #{covidetector_forward.9} parent=11 // pred_check
        %p396 = pneg %p116
      $region18: #{covidetector_forward.9} parent=11 // pred_check_branch
        %398 = sbr.rel (%p396) target = $region20
      $region19: #{covidetector_forward.9} parent=11 // pred_region
        _
      $region20: #{covidetector_forward.9} parent=11 // pred_fallthru
        _
      // Predicated region
      $region21: #{covidetector_forward.9} parent=11 // pred_check
        %p399 = pneg %p137
      $region22: #{covidetector_forward.9} parent=11 // pred_check_branch
        %401 = sbr.rel (%p399) target = $region24
      $region23: #{covidetector_forward.9} parent=11 // pred_region
        _
      $region24: #{covidetector_forward.9} parent=11 // pred_fallthru
        _
      // Predicated region
      $region25: #{covidetector_forward.9} parent=11 // pred_check
        %p402 = pneg %p158
      $region26: #{covidetector_forward.9} parent=11 // pred_check_branch
        %404 = sbr.rel (%p402) target = $region28
      $region27: #{covidetector_forward.9} parent=11 // pred_region
        _
      $region28: #{covidetector_forward.9} parent=11 // pred_fallthru
        _
      // Predicated region
      $region29: #{covidetector_forward.9} parent=11 // pred_check
        %p405 = pneg %p179
      $region30: #{covidetector_forward.9} parent=11 // pred_check_branch
        %407 = sbr.rel (%p405) target = $region32
      $region31: #{covidetector_forward.9} parent=11 // pred_region
        _
      $region32: #{covidetector_forward.9} parent=11 // pred_fallthru
        _
      // Predicated region
      $region33: #{covidetector_forward.9} parent=11 // pred_check
        %p408 = pneg %p200
      $region34: #{covidetector_forward.9} parent=11 // pred_check_branch
        %410 = sbr.rel (%p408) target = $region36
      $region35: #{covidetector_forward.9} parent=11 // pred_region
        _
      $region36: #{covidetector_forward.9} parent=11 // pred_fallthru
        _
      // Predicated region
      $region37: #{covidetector_forward.9} parent=11 // pred_check
        %p411 = pneg %p221
      $region38: #{covidetector_forward.9} parent=11 // pred_check_branch
        %413 = sbr.rel (%p411) target = $region40
      $region39: #{covidetector_forward.9} parent=11 // pred_region
        _
      $region40: #{covidetector_forward.9} parent=11 // pred_fallthru
        _
      // Predicated region
      $region41: #{covidetector_forward.9} parent=11 // pred_check
        %p414 = pneg %p242
      $region42: #{covidetector_forward.9} parent=11 // pred_check_branch
        %416 = sbr.rel (%p414) target = $region44
      $region43: #{covidetector_forward.9} parent=11 // pred_region
        _
      $region44: #{covidetector_forward.9} parent=11 // pred_fallthru
        _
      // Predicated region
      $region45: #{covidetector_forward.9} parent=11 // pred_check
        %p417 = pneg %p263
      $region46: #{covidetector_forward.9} parent=11 // pred_check_branch
        %419 = sbr.rel (%p417) target = $region48
      $region47: #{covidetector_forward.9} parent=11 // pred_region
        _
      $region48: #{covidetector_forward.9} parent=11 // pred_fallthru
        _
      // Predicated region
      $region49: #{covidetector_forward.9} parent=11 // pred_check
        %p420 = pneg %p284
      $region50: #{covidetector_forward.9} parent=11 // pred_check_branch
        %422 = sbr.rel (%p420) target = $region52
      $region51: #{covidetector_forward.9} parent=11 // pred_region
        _
      $region52: #{covidetector_forward.9} parent=11 // pred_fallthru
        _
      // Predicated region
      $region53: #{covidetector_forward.9} parent=11 // pred_check
        %p423 = pneg %p305
      $region54: #{covidetector_forward.9} parent=11 // pred_check_branch
        %425 = sbr.rel (%p423) target = $region56
      $region55: #{covidetector_forward.9} parent=11 // pred_region
        _
      $region56: #{covidetector_forward.9} parent=11 // pred_fallthru
        _
      // Predicated region
      $region57: #{covidetector_forward.9} parent=11 // pred_check
        %p426 = pneg %p326
      $region58: #{covidetector_forward.9} parent=11 // pred_check_branch
        %428 = sbr.rel (%p426) target = $region60
      $region59: #{covidetector_forward.9} parent=11 // pred_region
        _
      $region60: #{covidetector_forward.9} parent=11 // pred_fallthru
        _
    $region12: #{covidetector_forward.9} parent=5 // pred_fallthru
      _
    %p429 = scmp.lt.s32.totalorder %s22, 2
    // Predicated region
    $region61: #{covidetector_forward.9} parent=5 // pred_check
      %p430 = pneg %p429
    $region62: #{covidetector_forward.9} parent=5 // pred_check_branch
      %432 = sbr.rel (%p430) target = $region64
    $region63: #{covidetector_forward.9} parent=5 // pred_region
      // Predicated region
      $region65: #{covidetector_forward.9} parent=63 // pred_check
        %p433 = pneg %p42
      $region66: #{covidetector_forward.9} parent=63 // pred_check_branch
        %435 = sbr.rel (%p433) target = $region68
      $region67: #{covidetector_forward.9} parent=63 // pred_region
        %p436 = scmp.lt.s32.totalorder %s22, 1
        %s437 = scalar_select %p436, %s22, 1
        %s438 = smul.addr %s437, 2
        %s439 = smul.addr %s438, 8
        %s440 = scalar_lea.vmem %s0, %s439
      $region68: #{covidetector_forward.9} parent=63 // pred_fallthru
        _
      // Predicated region
      $region69: #{covidetector_forward.9} parent=63 // pred_check
        %p441 = pneg %p68
      $region70: #{covidetector_forward.9} parent=63 // pred_check_branch
        %443 = sbr.rel (%p441) target = $region72
      $region71: #{covidetector_forward.9} parent=63 // pred_region
        %p444 = scmp.lt.s32.totalorder %s22, 1
        %s445 = scalar_select %p444, %s22, 1
        %s446 = smul.addr %s445, 2
        %s447 = smul.addr %s446, 8
        %s448 = scalar_lea.vmem %s1, %s447
      $region72: #{covidetector_forward.9} parent=63 // pred_fallthru
        _
    $region64: #{covidetector_forward.9} parent=5 // pred_fallthru
      _
    %p449 = scmp.le.s32.totalorder 1, %s22
    %p450 = scmp.lt.s32.totalorder %s22, 3
    %p451 = pnand %p449, %p450
    %p452 = pneg %p451
    // Predicated region
    $region73: #{covidetector_forward.9} parent=5 // pred_check
      _
    $region74: #{covidetector_forward.9} parent=5 // pred_check_branch
      %454 = sbr.rel (%p451) target = $region76
    $region75: #{covidetector_forward.9} parent=5 // pred_region
      %s455 = ssub.s32 %s22, 1
      %p456 = scmp.lt.s32.totalorder %s27, 1
      %s457 = scalar_select %p456, %s27, 1
      %s458 = smul.addr %s457, 2
      %s459 = smul.addr %s458, 8
      %s460 = scalar_lea.vmem %s0, %s459
      %p461 = pneg %p48
      %p462 = pneg %p45
      %p463 = scmp.lt.s32.totalorder %s27, 1
      %s464 = scalar_select %p463, %s27, 1
      %s465 = smul.addr %s464, 2
      %s466 = smul.addr %s465, 8
      %s467 = scalar_lea.vmem %s1, %s466
      %p468 = pneg %p74
      %p469 = pneg %p71
      %p470 = pneg %p95
      %p471 = pneg %p92
      %p472 = pneg %p116
      %p473 = pneg %p113
      %p474 = pneg %p137
      %p475 = pneg %p134
      %p476 = pneg %p158
      %p477 = pneg %p155
      %p478 = pneg %p179
      %p479 = pneg %p176
      %p480 = pneg %p200
      %p481 = pneg %p197
      %p482 = pneg %p221
      %p483 = pneg %p218
      %p484 = pneg %p242
      %p485 = pneg %p239
      %p486 = pneg %p263
      %p487 = pneg %p260
      %p488 = pneg %p284
      %p489 = pneg %p281
      %p490 = pneg %p305
      %p491 = pneg %p302
      %p492 = pneg %p326
      %p493 = pneg %p323
      %p494 = pneg %p352
      %p495 = pneg %p349
      %p496 = scmp.lt.s32.totalorder %s27, 1
      %s497 = scalar_select %p496, %s27, 1
      %s498 = smul.addr %s497, 2
      %s499 = smul.addr %s498, 8
      %s500 = scalar_lea.vmem %s14, %s499
      %p501 = pneg %p378
      %p502 = pneg %p375
      %p503 = scmp.lt.s32.totalorder %s27, 1
      %s504 = scalar_select %p503, %s27, 1
      %s505 = smul.addr %s504, 2
      %s506 = smul.addr %s505, 8
      %s507 = scalar_lea.vmem %s15, %s506
      %p508 = scmp.lt.s32.totalorder %s27, 1
      %s509 = scalar_select %p508, %s27, 1
      %s510 = smul.addr %s509, 2
      %s511 = smul.addr %s510, 8
      %s512 = scalar_lea.vmem %s0, %s511
      %p513 = scmp.lt.s32.totalorder %s27, 1
      %s514 = scalar_select %p513, %s27, 1
      %s515 = smul.addr %s514, 2
      %s516 = smul.addr %s515, 8
      %s517 = scalar_lea.vmem %s1, %s516
      %p518 = scmp.lt.s32.totalorder %s27, 1
      %s519 = scalar_select %p518, %s27, 1
      %s520 = smul.addr %s519, 2
      %s521 = smul.addr %s520, 8
      %s522 = scalar_lea.vmem %s14, %s521
      %p523 = scmp.lt.s32.totalorder %s27, 1
      %s524 = scalar_select %p523, %s27, 1
      %s525 = smul.addr %s524, 2
      %s526 = smul.addr %s525, 8
      %s527 = scalar_lea.vmem %s15, %s526
      %v529 = vld [vmem:[%s512] sm:$0xff]
      %v530 = vld [vmem:[%s512 + $0x8] sm:$0xff]
      %v531 = vld [vmem:[%s517] sm:$0xff]
      %v532 = vld [vmem:[%s517 + $0x8] sm:$0xff]
      %v533 = vld [vmem:[%s2] sm:$0x1]
      %v534 = vld [vmem:[%s3] sm:$0x1]
      %vm535 = vcmask 261120
      %v536 = vsel %vm535, %v531, 0.0
      %537 = vadd.xlane.f32.xlu0 %v536
      %v538 = vpop.xlane.xlu0 %537
      %v539 = vsel %vm535, %v532, 0.0
      %540 = vadd.xlane.f32.xlu0 %v539
      %v541 = vpop.xlane.xlu0 %540
      %v542 = vrcp.pop 32.0
      %v543 = vmul.f32 %v538, %v542
      %v544 = vmul.f32 %v541, %v542
      %v545 = vsub.f32 %v531, %v543
      %v546 = vsub.f32 %v532, %v544
      %v547 = vmul.f32 %v545, %v545
      %v548 = vmul.f32 %v546, %v546
      %v549 = vsel %vm535, %v547, 0.0
      %550 = vadd.xlane.f32.xlu0 %v549
      %v551 = vpop.xlane.xlu0 %550
      %v552 = vsel %vm535, %v548, 0.0
      %553 = vadd.xlane.f32.xlu0 %v552
      %v554 = vpop.xlane.xlu0 %553
      %v555 = vmul.f32 %v551, %v542
      %v556 = vmul.f32 %v554, %v542
      %v557 = vadd.f32 %v555, 1e-05
      %v558 = vadd.f32 %v556, 1e-05
      %v559 = vrsqrt.pop %v557
      %v560 = vrsqrt.pop %v558
      %v561 = vmul.f32 %v545, %v559
      %v562 = vmul.f32 %v546, %v560
      %v564 = vlaneseq
      %v565 = vshrl.u32 %v564, 7
      %v566 = vsub.s32 0, %v565
      %v567 = vrot.slane %v533, %v566
      %v569 = vmul.f32 %v561, %v567
      %v570 = vmul.f32 %v562, %v567
      %v572 = vlaneseq
      %v573 = vshrl.u32 %v572, 7
      %v574 = vsub.s32 0, %v573
      %v575 = vrot.slane %v534, %v574
      %v577 = vadd.f32 %v569, %v575
      %v578 = vadd.f32 %v570, %v575
      %v579 = vpack.c.bf16 %v578, %v577
      %v580 = vlaneseq
      %v581 = vshrl.u32 %v580, 7
      %v582 = vadd.s32 %v581, 8
      %v583 = vlaneseq
      %v584 = vand.u32 %v583, 127
      %vm585 = vcmp.eq.s32.totalorder %v581, %v584
      %vm586 = vcmp.eq.s32.totalorder %v582, %v584
      %v587 = vld [vmem:[%s7] sm:$0x1]
      %v588 = vld [vmem:[%s4] sm:$0xf]
      %v589 = vld [vmem:[%s4 + $0x4] sm:$0xf]
      %v590 = vld [vmem:[%s4 + $0x8] sm:$0xf]
      %v591 = vld [vmem:[%s4 + $0xc] sm:$0xf]
      %v596 = vunpack.c.l.b16 %v588
      %v597 = vunpack.c.l.b16 %v589
      %v598 = vunpack.c.l.b16 %v590
      %v599 = vunpack.c.l.b16 %v591
      %v600 = vpack.c.b16 %v597, %v596
      %v601 = vpack.c.b16 %v599, %v598
      %v605 = vsel %vm535, %v579, 0
      %607 = vmatprep.subr.bf16.mxu0 0
      %608 = vmatpush1.bf16.msra.mxu0 0
      %609 = vmatprep.subr.bf16.mxu0 0
      %610 = vmatpush1.bf16.msra.mxu0 0
      %611 = vmatprep.subr.bf16.mxu0 0
      %612 = vmatpush1.bf16.msra.mxu0 0
      %613 = vmatprep.subr.bf16.mxu0 0
      %614 = vmatpush1.bf16.msra.mxu0 0
      %615 = vmatprep.subr.bf16.mxu0 0
      %616 = vmatpush1.bf16.msra.mxu0 0
      %617 = vmatprep.subr.bf16.mxu0 0
      %618 = vmatpush1.bf16.msra.mxu0 0
      %619 = vmatprep.subr.bf16.mxu0 0
      %620 = vmatpush1.bf16.msra.mxu0 %v601
      %621 = vmatprep.subr.bf16.mxu0 0
      %622 = vmatpush1.bf16.msra.mxu0 %v600
      %623 = vmatprep.subr.bf16.mxu0 0
      %624 = vmatpush2.bf16.msra.mxu0 0
      %625 = vmatprep.subr.bf16.mxu0 0
      %626 = vmatpush2.bf16.msra.mxu0 0
      %627 = vmatprep.subr.bf16.mxu0 0
      %628 = vmatpush2.bf16.msra.mxu0 0
      %629 = vmatprep.subr.bf16.mxu0 0
      %630 = vmatpush2.bf16.msra.mxu0 0
      %631 = vmatprep.subr.bf16.mxu0 0
      %632 = vmatpush2.bf16.msra.mxu0 0
      %633 = vmatprep.subr.bf16.mxu0 0
      %634 = vmatpush2.bf16.msra.mxu0 0
      %635 = vmatprep.subr.bf16.mxu0 0
      %636 = vmatpush2.bf16.msra.mxu0 0
      %637 = vmatprep.subr.bf16.mxu0 0
      %638 = vmatpush2.bf16.msra.mxu0 0
      %639 = vmatprep.mubr.bf16.mxu0 0
      %640 = vmatmul.mubr.bf16.gmra.mxu0 %v605
      %v641 = vpop.f32.mrf.mxu0
      %v642 = vadd.f32 0.0, %v641
      %v643 = vpop.f32.mrf.mxu0
      %v644 = vpop.f32.mrf.mxu0
      %v645 = vadd.f32 0.0, %v644
      %v646 = vpop.f32.mrf.mxu0
      %647 = vdwg.mxu0
      %v648 = vld [vmem:[%s5] sm:$0xf]
      %v649 = vld [vmem:[%s5 + $0x4] sm:$0xf]
      %v650 = vld [vmem:[%s5 + $0x8] sm:$0xf]
      %v651 = vld [vmem:[%s5 + $0xc] sm:$0xf]
      %v656 = vunpack.c.l.b16 %v648
      %v657 = vunpack.c.l.b16 %v649
      %v658 = vunpack.c.l.b16 %v650
      %v659 = vunpack.c.l.b16 %v651
      %v660 = vpack.c.b16 %v657, %v656
      %v661 = vpack.c.b16 %v659, %v658
      %664 = vmatprep.subr.bf16.mxu0 0
      %665 = vmatpush1.bf16.msra.mxu0 0
      %666 = vmatprep.subr.bf16.mxu0 0
      %667 = vmatpush1.bf16.msra.mxu0 0
      %668 = vmatprep.subr.bf16.mxu0 0
      %669 = vmatpush1.bf16.msra.mxu0 0
      %670 = vmatprep.subr.bf16.mxu0 0
      %671 = vmatpush1.bf16.msra.mxu0 0
      %672 = vmatprep.subr.bf16.mxu0 0
      %673 = vmatpush1.bf16.msra.mxu0 0
      %674 = vmatprep.subr.bf16.mxu0 0
      %675 = vmatpush1.bf16.msra.mxu0 0
      %676 = vmatprep.subr.bf16.mxu0 0
      %677 = vmatpush1.bf16.msra.mxu0 %v661
      %678 = vmatprep.subr.bf16.mxu0 0
      %679 = vmatpush1.bf16.msra.mxu0 %v660
      %680 = vmatprep.subr.bf16.mxu0 0
      %681 = vmatpush2.bf16.msra.mxu0 0
      %682 = vmatprep.subr.bf16.mxu0 0
      %683 = vmatpush2.bf16.msra.mxu0 0
      %684 = vmatprep.subr.bf16.mxu0 0
      %685 = vmatpush2.bf16.msra.mxu0 0
      %686 = vmatprep.subr.bf16.mxu0 0
      %687 = vmatpush2.bf16.msra.mxu0 0
      %688 = vmatprep.subr.bf16.mxu0 0
      %689 = vmatpush2.bf16.msra.mxu0 0
      %690 = vmatprep.subr.bf16.mxu0 0
      %691 = vmatpush2.bf16.msra.mxu0 0
      %692 = vmatprep.subr.bf16.mxu0 0
      %693 = vmatpush2.bf16.msra.mxu0 0
      %694 = vmatprep.subr.bf16.mxu0 0
      %695 = vmatpush2.bf16.msra.mxu0 0
      %696 = vmatprep.mubr.bf16.mxu0 0
      %697 = vmatmul.mubr.bf16.gmra.mxu0 %v605
      %v698 = vpop.f32.mrf.mxu0
      %v699 = vadd.f32 0.0, %v698
      %v700 = vpop.f32.mrf.mxu0
      %v701 = vpop.f32.mrf.mxu0
      %v702 = vadd.f32 0.0, %v701
      %v703 = vpop.f32.mrf.mxu0
      %704 = vdwg.mxu0
      %v705 = vmul.f32 %v642, %v642
      %v706 = vmul.f32 %v645, %v645
      %vm707 = vcmask 130048
      %v708 = vsel %vm707, %v705, 0.0
      %709 = vadd.xlane.f32.xlu0 %v708
      %v710 = vpop.xlane.xlu0 %709
      %v711 = vsel %vm707, %v706, 0.0
      %712 = vadd.xlane.f32.xlu0 %v711
      %v713 = vpop.xlane.xlu0 %712
      %v714 = vmax.f32 %v710, 1e-24
      %v715 = vmax.f32 %v713, 1e-24
      %v716 = vrsqrt.pop %v714
      %v717 = vrsqrt.pop %v715
      %v718 = vmul.f32 %v642, %v716
      %v719 = vmul.f32 %v645, %v717
      %v721 = vsel %vm707, %v642, 0
      %v724 = vsel %vm707, %v645, 0
      %v727 = vsel %vm707, %v718, 0
      %v730 = vsel %vm707, %v719, 0
      %732 = vmatprep.subr.mxu0 0.0
      %733 = vmatpush1.xpose.msra.mxu0 0.0
      %734 = vmatprep.subr.mxu0 0.0
      %735 = vmatpush1.xpose.msra.mxu0 0.0
      %736 = vmatprep.subr.mxu0 0.0
      %737 = vmatpush1.xpose.msra.mxu0 0.0
      %738 = vmatprep.subr.mxu0 0.0
      %739 = vmatpush1.xpose.msra.mxu0 0.0
      %740 = vmatprep.subr.mxu0 0.0
      %741 = vmatpush1.xpose.msra.mxu0 0.0
      %742 = vmatprep.subr.mxu0 0.0
      %743 = vmatpush1.xpose.msra.mxu0 0.0
      %744 = vmatprep.subr.mxu0 0.0
      %745 = vmatpush1.xpose.msra.mxu0 0.0
      %746 = vmatprep.subr.mxu0 0.0
      %747 = vmatpush1.xpose.msra.mxu0 0.0
      %748 = vmatprep.subr.mxu0 0.0
      %749 = vmatpush1.xpose.msra.mxu0 0.0
      %750 = vmatprep.subr.mxu0 0.0
      %751 = vmatpush1.xpose.msra.mxu0 0.0
      %752 = vmatprep.subr.mxu0 0.0
      %753 = vmatpush1.xpose.msra.mxu0 0.0
      %754 = vmatprep.subr.mxu0 0.0
      %755 = vmatpush1.xpose.msra.mxu0 0.0
      %756 = vmatprep.subr.mxu0 0.0
      %757 = vmatpush1.xpose.msra.mxu0 0.0
      %758 = vmatprep.subr.mxu0 0.0
      %759 = vmatpush1.xpose.msra.mxu0 0.0
      %760 = vmatprep.subr.mxu0 0.0
      %761 = vmatpush1.xpose.msra.mxu0 %v730
      %762 = vmatprep.subr.mxu0 0.0
      %763 = vmatpush1.xpose.msra.mxu0 %v727
      %764 = vmatprep.subr.mxu0 0.0
      %765 = vmatpush2.xpose.msra.mxu0 0.0
      %766 = vmatprep.subr.mxu0 0.0
      %767 = vmatpush2.xpose.msra.mxu0 0.0
      %768 = vmatprep.subr.mxu0 0.0
      %769 = vmatpush2.xpose.msra.mxu0 0.0
      %770 = vmatprep.subr.mxu0 0.0
      %771 = vmatpush2.xpose.msra.mxu0 0.0
      %772 = vmatprep.subr.mxu0 0.0
      %773 = vmatpush2.xpose.msra.mxu0 0.0
      %774 = vmatprep.subr.mxu0 0.0
      %775 = vmatpush2.xpose.msra.mxu0 0.0
      %776 = vmatprep.subr.mxu0 0.0
      %777 = vmatpush2.xpose.msra.mxu0 0.0
      %778 = vmatprep.subr.mxu0 0.0
      %779 = vmatpush2.xpose.msra.mxu0 0.0
      %780 = vmatprep.subr.mxu0 0.0
      %781 = vmatpush2.xpose.msra.mxu0 0.0
      %782 = vmatprep.subr.mxu0 0.0
      %783 = vmatpush2.xpose.msra.mxu0 0.0
      %784 = vmatprep.subr.mxu0 0.0
      %785 = vmatpush2.xpose.msra.mxu0 0.0
      %786 = vmatprep.subr.mxu0 0.0
      %787 = vmatpush2.xpose.msra.mxu0 0.0
      %788 = vmatprep.subr.mxu0 0.0
      %789 = vmatpush2.xpose.msra.mxu0 0.0
      %790 = vmatprep.subr.mxu0 0.0
      %791 = vmatpush2.xpose.msra.mxu0 0.0
      %792 = vmatprep.subr.mxu0 0.0
      %793 = vmatpush2.xpose.msra.mxu0 0.0
      %794 = vmatprep.subr.mxu0 0.0
      %795 = vmatpush2.xpose.msra.mxu0 0.0
      %796 = vmatprep.mubr.f32.mxu0 0.0
      %797 = vmatmul.mubr.f32.gmra.mxu0 %v721
      %v798 = vpop.f32.mrf.mxu0
      %v799 = vadd.f32 0.0, %v798
      %v800 = vpop.f32.mrf.mxu0
      %801 = vmatprep.mubr.f32.mxu0 0.0
      %802 = vmatmul.mubr.f32.gmra.mxu0 %v724
      %v803 = vpop.f32.mrf.mxu0
      %v804 = vadd.f32 0.0, %v803
      %v805 = vpop.f32.mrf.mxu0
      %806 = vdwg.mxu0
      %v807 = vmul.f32 %v799, 0.25
      %v808 = vmul.f32 %v804, 0.25
      %v809 = vsel %vm585, -50000.0, %v807
      %v810 = vsel %vm586, -50000.0, %v808
      %v811 = vsel %vm707, %v809, -inf
      %812 = vmax.xlane.f32.xlu0 %v811
      %v813 = vpop.xlane.xlu0 %812
      %v814 = vsel %vm707, %v810, -inf
      %815 = vmax.xlane.f32.xlu0 %v814
      %v816 = vpop.xlane.xlu0 %815
      %v817 = vsub.f32 %v809, %v813
      %v818 = vsub.f32 %v810, %v816
      %v819 = vmul.f32 %v817, 1.442695
      %v820 = vpow.pop %v819
      %v821 = vmul.f32 %v818, 1.442695
      %v822 = vpow.pop %v821
      %v823 = vsel %vm707, %v820, 0.0
      %824 = vadd.xlane.f32.xlu0 %v823
      %v825 = vpop.xlane.xlu0 %824
      %v826 = vsel %vm707, %v822, 0.0
      %827 = vadd.xlane.f32.xlu0 %v826
      %v828 = vpop.xlane.xlu0 %827
      %v829 = vrcp.pop %v825
      %v830 = vrcp.pop %v828
      %v831 = vmul.f32 %v820, %v829
      %v832 = vmul.f32 %v822, %v830
      %v834 = vsel %vm707, %v831, 0
      %v837 = vsel %vm707, %v832, 0
      %839 = vmatprep.subr.mxu0 0.0
      %840 = vmatpush1.msra.mxu0 0.0
      %841 = vmatprep.subr.mxu0 0.0
      %842 = vmatpush1.msra.mxu0 0.0
      %843 = vmatprep.subr.mxu0 0.0
      %844 = vmatpush1.msra.mxu0 0.0
      %845 = vmatprep.subr.mxu0 0.0
      %846 = vmatpush1.msra.mxu0 0.0
      %847 = vmatprep.subr.mxu0 0.0
      %848 = vmatpush1.msra.mxu0 0.0
      %849 = vmatprep.subr.mxu0 0.0
      %850 = vmatpush1.msra.mxu0 0.0
      %851 = vmatprep.subr.mxu0 0.0
      %852 = vmatpush1.msra.mxu0 0.0
      %853 = vmatprep.subr.mxu0 0.0
      %854 = vmatpush1.msra.mxu0 0.0
      %855 = vmatprep.subr.mxu0 0.0
      %856 = vmatpush1.msra.mxu0 0.0
      %857 = vmatprep.subr.mxu0 0.0
      %858 = vmatpush1.msra.mxu0 0.0
      %859 = vmatprep.subr.mxu0 0.0
      %860 = vmatpush1.msra.mxu0 0.0
      %861 = vmatprep.subr.mxu0 0.0
      %862 = vmatpush1.msra.mxu0 0.0
      %863 = vmatprep.subr.mxu0 0.0
      %864 = vmatpush1.msra.mxu0 0.0
      %865 = vmatprep.subr.mxu0 0.0
      %866 = vmatpush1.msra.mxu0 0.0
      %867 = vmatprep.subr.mxu0 0.0
      %868 = vmatpush1.msra.mxu0 %v702
      %869 = vmatprep.subr.mxu0 0.0
      %870 = vmatpush1.msra.mxu0 %v699
      %871 = vmatprep.subr.mxu0 0.0
      %872 = vmatpush2.msra.mxu0 0.0
      %873 = vmatprep.subr.mxu0 0.0
      %874 = vmatpush2.msra.mxu0 0.0
      %875 = vmatprep.subr.mxu0 0.0
      %876 = vmatpush2.msra.mxu0 0.0
      %877 = vmatprep.subr.mxu0 0.0
      %878 = vmatpush2.msra.mxu0 0.0
      %879 = vmatprep.subr.mxu0 0.0
      %880 = vmatpush2.msra.mxu0 0.0
      %881 = vmatprep.subr.mxu0 0.0
      %882 = vmatpush2.msra.mxu0 0.0
      %883 = vmatprep.subr.mxu0 0.0
      %884 = vmatpush2.msra.mxu0 0.0
      %885 = vmatprep.subr.mxu0 0.0
      %886 = vmatpush2.msra.mxu0 0.0
      %887 = vmatprep.subr.mxu0 0.0
      %888 = vmatpush2.msra.mxu0 0.0
      %889 = vmatprep.subr.mxu0 0.0
      %890 = vmatpush2.msra.mxu0 0.0
      %891 = vmatprep.subr.mxu0 0.0
      %892 = vmatpush2.msra.mxu0 0.0
      %893 = vmatprep.subr.mxu0 0.0
      %894 = vmatpush2.msra.mxu0 0.0
      %895 = vmatprep.subr.mxu0 0.0
      %896 = vmatpush2.msra.mxu0 0.0
      %897 = vmatprep.subr.mxu0 0.0
      %898 = vmatpush2.msra.mxu0 0.0
      %899 = vmatprep.subr.mxu0 0.0
      %900 = vmatpush2.msra.mxu0 0.0
      %901 = vmatprep.subr.mxu0 0.0
      %902 = vmatpush2.msra.mxu0 0.0
      %903 = vmatprep.mubr.f32.mxu0 0.0
      %904 = vmatmul.mubr.f32.gmra.mxu0 %v834
      %v905 = vpop.f32.mrf.mxu0
      %v906 = vadd.f32 0.0, %v905
      %v907 = vpop.f32.mrf.mxu0
      %908 = vmatprep.mubr.f32.mxu0 0.0
      %909 = vmatmul.mubr.f32.gmra.mxu0 %v837
      %v910 = vpop.f32.mrf.mxu0
      %v911 = vadd.f32 0.0, %v910
      %v912 = vpop.f32.mrf.mxu0
      %913 = vdwg.mxu0
      %v914 = vpack.c.bf16 %v911, %v906
      %v915 = vld [vmem:[%s6] sm:$0xf]
      %v916 = vld [vmem:[%s6 + $0x4] sm:$0xf]
      %v919 = vunpack.c.l.b16 %v915
      %v920 = vunpack.c.l.b16 %v916
      %v921 = vpack.c.b16 %v920, %v919
      %v924 = vsel %vm707, %v914, 0
      %926 = vmatprep.subr.bf16.mxu0 0
      %927 = vmatpush1.bf16.msra.mxu0 0
      %928 = vmatprep.subr.bf16.mxu0 0
      %929 = vmatpush1.bf16.msra.mxu0 0
      %930 = vmatprep.subr.bf16.mxu0 0
      %931 = vmatpush1.bf16.msra.mxu0 0
      %932 = vmatprep.subr.bf16.mxu0 0
      %933 = vmatpush1.bf16.msra.mxu0 0
      %934 = vmatprep.subr.bf16.mxu0 0
      %935 = vmatpush1.bf16.msra.mxu0 0
      %936 = vmatprep.subr.bf16.mxu0 0
      %937 = vmatpush1.bf16.msra.mxu0 0
      %938 = vmatprep.subr.bf16.mxu0 0
      %939 = vmatpush1.bf16.msra.mxu0 0
      %940 = vmatprep.subr.bf16.mxu0 0
      %941 = vmatpush1.bf16.msra.mxu0 %v921
      %942 = vmatprep.subr.bf16.mxu0 0
      %943 = vmatpush2.bf16.msra.mxu0 0
      %944 = vmatprep.subr.bf16.mxu0 0
      %945 = vmatpush2.bf16.msra.mxu0 0
      %946 = vmatprep.subr.bf16.mxu0 0
      %947 = vmatpush2.bf16.msra.mxu0 0
      %948 = vmatprep.subr.bf16.mxu0 0
      %949 = vmatpush2.bf16.msra.mxu0 0
      %950 = vmatprep.subr.bf16.mxu0 0
      %951 = vmatpush2.bf16.msra.mxu0 0
      %952 = vmatprep.subr.bf16.mxu0 0
      %953 = vmatpush2.bf16.msra.mxu0 0
      %954 = vmatprep.subr.bf16.mxu0 0
      %955 = vmatpush2.bf16.msra.mxu0 0
      %956 = vmatprep.subr.bf16.mxu0 0
      %957 = vmatpush2.bf16.msra.mxu0 0
      %958 = vmatprep.mubr.bf16.mxu0 0
      %959 = vmatmul.mubr.bf16.gmra.mxu0 %v924
      %v960 = vpop.f32.mrf.mxu0
      %v961 = vadd.f32 0.0, %v960
      %v962 = vpop.f32.mrf.mxu0
      %v963 = vpop.f32.mrf.mxu0
      %v964 = vadd.f32 0.0, %v963
      %v965 = vpop.f32.mrf.mxu0
      %966 = vdwg.mxu0
      %v968 = vlaneseq
      %v969 = vshrl.u32 %v968, 7
      %v970 = vsub.s32 0, %v969
      %v971 = vrot.slane %v587, %v970
      %v973 = vadd.f32 %v971, %v961
      %v974 = vadd.f32 %v971, %v964
      %s975 = scalar_lea.vmem %s4, 16
      %v976 = vld [vmem:[%s975] sm:$0xf]
      %v977 = vld [vmem:[%s975 + $0x4] sm:$0xf]
      %v978 = vld [vmem:[%s975 + $0x8] sm:$0xf]
      %v979 = vld [vmem:[%s975 + $0xc] sm:$0xf]
      %v984 = vunpack.c.l.b16 %v976
      %v985 = vunpack.c.l.b16 %v977
      %v986 = vunpack.c.l.b16 %v978
      %v987 = vunpack.c.l.b16 %v979
      %v988 = vpack.c.b16 %v985, %v984
      %v989 = vpack.c.b16 %v987, %v986
      %992 = vmatprep.subr.bf16.mxu0 0
      %993 = vmatpush1.bf16.msra.mxu0 0
      %994 = vmatprep.subr.bf16.mxu0 0
      %995 = vmatpush1.bf16.msra.mxu0 0
      %996 = vmatprep.subr.bf16.mxu0 0
      %997 = vmatpush1.bf16.msra.mxu0 0
      %998 = vmatprep.subr.bf16.mxu0 0
      %999 = vmatpush1.bf16.msra.mxu0 0
      %1000 = vmatprep.subr.bf16.mxu0 0
      %1001 = vmatpush1.bf16.msra.mxu0 0
      %1002 = vmatprep.subr.bf16.mxu0 0
      %1003 = vmatpush1.bf16.msra.mxu0 0
      %1004 = vmatprep.subr.bf16.mxu0 0
      %1005 = vmatpush1.bf16.msra.mxu0 %v989
      %1006 = vmatprep.subr.bf16.mxu0 0
      %1007 = vmatpush1.bf16.msra.mxu0 %v988
      %1008 = vmatprep.subr.bf16.mxu0 0
      %1009 = vmatpush2.bf16.msra.mxu0 0
      %1010 = vmatprep.subr.bf16.mxu0 0
      %1011 = vmatpush2.bf16.msra.mxu0 0
      %1012 = vmatprep.subr.bf16.mxu0 0
      %1013 = vmatpush2.bf16.msra.mxu0 0
      %1014 = vmatprep.subr.bf16.mxu0 0
      %1015 = vmatpush2.bf16.msra.mxu0 0
      %1016 = vmatprep.subr.bf16.mxu0 0
      %1017 = vmatpush2.bf16.msra.mxu0 0
      %1018 = vmatprep.subr.bf16.mxu0 0
      %1019 = vmatpush2.bf16.msra.mxu0 0
      %1020 = vmatprep.subr.bf16.mxu0 0
      %1021 = vmatpush2.bf16.msra.mxu0 0
      %1022 = vmatprep.subr.bf16.mxu0 0
      %1023 = vmatpush2.bf16.msra.mxu0 0
      %1024 = vmatprep.mubr.bf16.mxu0 0
      %1025 = vmatmul.mubr.bf16.gmra.mxu0 %v605
      %v1026 = vpop.f32.mrf.mxu0
      %v1027 = vadd.f32 0.0, %v1026
      %v1028 = vpop.f32.mrf.mxu0
      %v1029 = vpop.f32.mrf.mxu0
      %v1030 = vadd.f32 0.0, %v1029
      %v1031 = vpop.f32.mrf.mxu0
      %1032 = vdwg.mxu0
      %s1033 = scalar_lea.vmem %s5, 16
      %v1034 = vld [vmem:[%s1033] sm:$0xf]
      %v1035 = vld [vmem:[%s1033 + $0x4] sm:$0xf]
      %v1036 = vld [vmem:[%s1033 + $0x8] sm:$0xf]
      %v1037 = vld [vmem:[%s1033 + $0xc] sm:$0xf]
      %v1042 = vunpack.c.l.b16 %v1034
      %v1043 = vunpack.c.l.b16 %v1035
      %v1044 = vunpack.c.l.b16 %v1036
      %v1045 = vunpack.c.l.b16 %v1037
      %v1046 = vpack.c.b16 %v1043, %v1042
      %v1047 = vpack.c.b16 %v1045, %v1044
      %1050 = vmatprep.subr.bf16.mxu0 0
      %1051 = vmatpush1.bf16.msra.mxu0 0
      %1052 = vmatprep.subr.bf16.mxu0 0
      %1053 = vmatpush1.bf16.msra.mxu0 0
      %1054 = vmatprep.subr.bf16.mxu0 0
      %1055 = vmatpush1.bf16.msra.mxu0 0
      %1056 = vmatprep.subr.bf16.mxu0 0
      %1057 = vmatpush1.bf16.msra.mxu0 0
      %1058 = vmatprep.subr.bf16.mxu0 0
      %1059 = vmatpush1.bf16.msra.mxu0 0
      %1060 = vmatprep.subr.bf16.mxu0 0
      %1061 = vmatpush1.bf16.msra.mxu0 0
      %1062 = vmatprep.subr.bf16.mxu0 0
      %1063 = vmatpush1.bf16.msra.mxu0 %v1047
      %1064 = vmatprep.subr.bf16.mxu0 0
      %1065 = vmatpush1.bf16.msra.mxu0 %v1046
      %1066 = vmatprep.subr.bf16.mxu0 0
      %1067 = vmatpush2.bf16.msra.mxu0 0
      %1068 = vmatprep.subr.bf16.mxu0 0
      %1069 = vmatpush2.bf16.msra.mxu0 0
      %1070 = vmatprep.subr.bf16.mxu0 0
      %1071 = vmatpush2.bf16.msra.mxu0 0
      %1072 = vmatprep.subr.bf16.mxu0 0
      %1073 = vmatpush2.bf16.msra.mxu0 0
      %1074 = vmatprep.subr.bf16.mxu0 0
      %1075 = vmatpush2.bf16.msra.mxu0 0
      %1076 = vmatprep.subr.bf16.mxu0 0
      %1077 = vmatpush2.bf16.msra.mxu0 0
      %1078 = vmatprep.subr.bf16.mxu0 0
      %1079 = vmatpush2.bf16.msra.mxu0 0
      %1080 = vmatprep.subr.bf16.mxu0 0
      %1081 = vmatpush2.bf16.msra.mxu0 0
      %1082 = vmatprep.mubr.bf16.mxu0 0
      %1083 = vmatmul.mubr.bf16.gmra.mxu0 %v605
      %v1084 = vpop.f32.mrf.mxu0
      %v1085 = vadd.f32 0.0, %v1084
      %v1086 = vpop.f32.mrf.mxu0
      %v1087 = vpop.f32.mrf.mxu0
      %v1088 = vadd.f32 0.0, %v1087
      %v1089 = vpop.f32.mrf.mxu0
      %1090 = vdwg.mxu0
      %v1091 = vmul.f32 %v1027, %v1027
      %v1092 = vmul.f32 %v1030, %v1030
      %v1093 = vsel %vm707, %v1091, 0.0
      %1094 = vadd.xlane.f32.xlu0 %v1093
      %v1095 = vpop.xlane.xlu0 %1094
      %v1096 = vsel %vm707, %v1092, 0.0
      %1097 = vadd.xlane.f32.xlu0 %v1096
      %v1098 = vpop.xlane.xlu0 %1097
      %v1099 = vmax.f32 %v1095, 1e-24
      %v1100 = vmax.f32 %v1098, 1e-24
      %v1101 = vrsqrt.pop %v1099
      %v1102 = vrsqrt.pop %v1100
      %v1103 = vmul.f32 %v1027, %v1101
      %v1104 = vmul.f32 %v1030, %v1102
      %v1106 = vsel %vm707, %v1027, 0
      %v1109 = vsel %vm707, %v1030, 0
      %v1112 = vsel %vm707, %v1103, 0
      %v1115 = vsel %vm707, %v1104, 0
      %1117 = vmatprep.subr.mxu0 0.0
      %1118 = vmatpush1.xpose.msra.mxu0 0.0
      %1119 = vmatprep.subr.mxu0 0.0
      %1120 = vmatpush1.xpose.msra.mxu0 0.0
      %1121 = vmatprep.subr.mxu0 0.0
      %1122 = vmatpush1.xpose.msra.mxu0 0.0
      %1123 = vmatprep.subr.mxu0 0.0
      %1124 = vmatpush1.xpose.msra.mxu0 0.0
      %1125 = vmatprep.subr.mxu0 0.0
      %1126 = vmatpush1.xpose.msra.mxu0 0.0
      %1127 = vmatprep.subr.mxu0 0.0
      %1128 = vmatpush1.xpose.msra.mxu0 0.0
      %1129 = vmatprep.subr.mxu0 0.0
      %1130 = vmatpush1.xpose.msra.mxu0 0.0
      %1131 = vmatprep.subr.mxu0 0.0
      %1132 = vmatpush1.xpose.msra.mxu0 0.0
      %1133 = vmatprep.subr.mxu0 0.0
      %1134 = vmatpush1.xpose.msra.mxu0 0.0
      %1135 = vmatprep.subr.mxu0 0.0
      %1136 = vmatpush1.xpose.msra.mxu0 0.0
      %1137 = vmatprep.subr.mxu0 0.0
      %1138 = vmatpush1.xpose.msra.mxu0 0.0
      %1139 = vmatprep.subr.mxu0 0.0
      %1140 = vmatpush1.xpose.msra.mxu0 0.0
      %1141 = vmatprep.subr.mxu0 0.0
      %1142 = vmatpush1.xpose.msra.mxu0 0.0
      %1143 = vmatprep.subr.mxu0 0.0
      %1144 = vmatpush1.xpose.msra.mxu0 0.0
      %1145 = vmatprep.subr.mxu0 0.0
      %1146 = vmatpush1.xpose.msra.mxu0 %v1115
      %1147 = vmatprep.subr.mxu0 0.0
      %1148 = vmatpush1.xpose.msra.mxu0 %v1112
      %1149 = vmatprep.subr.mxu0 0.0
      %1150 = vmatpush2.xpose.msra.mxu0 0.0
      %1151 = vmatprep.subr.mxu0 0.0
      %1152 = vmatpush2.xpose.msra.mxu0 0.0
      %1153 = vmatprep.subr.mxu0 0.0
      %1154 = vmatpush2.xpose.msra.mxu0 0.0
      %1155 = vmatprep.subr.mxu0 0.0
      %1156 = vmatpush2.xpose.msra.mxu0 0.0
      %1157 = vmatprep.subr.mxu0 0.0
      %1158 = vmatpush2.xpose.msra.mxu0 0.0
      %1159 = vmatprep.subr.mxu0 0.0
      %1160 = vmatpush2.xpose.msra.mxu0 0.0
      %1161 = vmatprep.subr.mxu0 0.0
      %1162 = vmatpush2.xpose.msra.mxu0 0.0
      %1163 = vmatprep.subr.mxu0 0.0
      %1164 = vmatpush2.xpose.msra.mxu0 0.0
      %1165 = vmatprep.subr.mxu0 0.0
      %1166 = vmatpush2.xpose.msra.mxu0 0.0
      %1167 = vmatprep.subr.mxu0 0.0
      %1168 = vmatpush2.xpose.msra.mxu0 0.0
      %1169 = vmatprep.subr.mxu0 0.0
      %1170 = vmatpush2.xpose.msra.mxu0 0.0
      %1171 = vmatprep.subr.mxu0 0.0
      %1172 = vmatpush2.xpose.msra.mxu0 0.0
      %1173 = vmatprep.subr.mxu0 0.0
      %1174 = vmatpush2.xpose.msra.mxu0 0.0
      %1175 = vmatprep.subr.mxu0 0.0
      %1176 = vmatpush2.xpose.msra.mxu0 0.0
      %1177 = vmatprep.subr.mxu0 0.0
      %1178 = vmatpush2.xpose.msra.mxu0 0.0
      %1179 = vmatprep.subr.mxu0 0.0
      %1180 = vmatpush2.xpose.msra.mxu0 0.0
      %1181 = vmatprep.mubr.f32.mxu0 0.0
      %1182 = vmatmul.mubr.f32.gmra.mxu0 %v1106
      %v1183 = vpop.f32.mrf.mxu0
      %v1184 = vadd.f32 0.0, %v1183
      %v1185 = vpop.f32.mrf.mxu0
      %1186 = vmatprep.mubr.f32.mxu0 0.0
      %1187 = vmatmul.mubr.f32.gmra.mxu0 %v1109
      %v1188 = vpop.f32.mrf.mxu0
      %v1189 = vadd.f32 0.0, %v1188
      %v1190 = vpop.f32.mrf.mxu0
      %1191 = vdwg.mxu0
      %v1192 = vmul.f32 %v1184, 0.25
      %v1193 = vmul.f32 %v1189, 0.25
      %v1194 = vsel %vm585, -50000.0, %v1192
      %v1195 = vsel %vm586, -50000.0, %v1193
      %v1196 = vsel %vm707, %v1194, -inf
      %1197 = vmax.xlane.f32.xlu0 %v1196
      %v1198 = vpop.xlane.xlu0 %1197
      %v1199 = vsel %vm707, %v1195, -inf
      %1200 = vmax.xlane.f32.xlu0 %v1199
      %v1201 = vpop.xlane.xlu0 %1200
      %v1202 = vsub.f32 %v1194, %v1198
      %v1203 = vsub.f32 %v1195, %v1201
      %v1204 = vmul.f32 %v1202, 1.442695
      %v1205 = vpow.pop %v1204
      %v1206 = vmul.f32 %v1203, 1.442695
      %v1207 = vpow.pop %v1206
      %v1208 = vsel %vm707, %v1205, 0.0
      %1209 = vadd.xlane.f32.xlu0 %v1208
      %v1210 = vpop.xlane.xlu0 %1209
      %v1211 = vsel %vm707, %v1207, 0.0
      %1212 = vadd.xlane.f32.xlu0 %v1211
      %v1213 = vpop.xlane.xlu0 %1212
      %v1214 = vrcp.pop %v1210
      %v1215 = vrcp.pop %v1213
      %v1216 = vmul.f32 %v1205, %v1214
      %v1217 = vmul.f32 %v1207, %v1215
      %v1219 = vsel %vm707, %v1216, 0
      %v1222 = vsel %vm707, %v1217, 0
      %1224 = vmatprep.subr.mxu0 0.0
      %1225 = vmatpush1.msra.mxu0 0.0
      %1226 = vmatprep.subr.mxu0 0.0
      %1227 = vmatpush1.msra.mxu0 0.0
      %1228 = vmatprep.subr.mxu0 0.0
      %1229 = vmatpush1.msra.mxu0 0.0
      %1230 = vmatprep.subr.mxu0 0.0
      %1231 = vmatpush1.msra.mxu0 0.0
      %1232 = vmatprep.subr.mxu0 0.0
      %1233 = vmatpush1.msra.mxu0 0.0
      %1234 = vmatprep.subr.mxu0 0.0
      %1235 = vmatpush1.msra.mxu0 0.0
      %1236 = vmatprep.subr.mxu0 0.0
      %1237 = vmatpush1.msra.mxu0 0.0
      %1238 = vmatprep.subr.mxu0 0.0
      %1239 = vmatpush1.msra.mxu0 0.0
      %1240 = vmatprep.subr.mxu0 0.0
      %1241 = vmatpush1.msra.mxu0 0.0
      %1242 = vmatprep.subr.mxu0 0.0
      %1243 = vmatpush1.msra.mxu0 0.0
      %1244 = vmatprep.subr.mxu0 0.0
      %1245 = vmatpush1.msra.mxu0 0.0
      %1246 = vmatprep.subr.mxu0 0.0
      %1247 = vmatpush1.msra.mxu0 0.0
      %1248 = vmatprep.subr.mxu0 0.0
      %1249 = vmatpush1.msra.mxu0 0.0
      %1250 = vmatprep.subr.mxu0 0.0
      %1251 = vmatpush1.msra.mxu0 0.0
      %1252 = vmatprep.subr.mxu0 0.0
      %1253 = vmatpush1.msra.mxu0 %v1088
      %1254 = vmatprep.subr.mxu0 0.0
      %1255 = vmatpush1.msra.mxu0 %v1085
      %1256 = vmatprep.subr.mxu0 0.0
      %1257 = vmatpush2.msra.mxu0 0.0
      %1258 = vmatprep.subr.mxu0 0.0
      %1259 = vmatpush2.msra.mxu0 0.0
      %1260 = vmatprep.subr.mxu0 0.0
      %1261 = vmatpush2.msra.mxu0 0.0
      %1262 = vmatprep.subr.mxu0 0.0
      %1263 = vmatpush2.msra.mxu0 0.0
      %1264 = vmatprep.subr.mxu0 0.0
      %1265 = vmatpush2.msra.mxu0 0.0
      %1266 = vmatprep.subr.mxu0 0.0
      %1267 = vmatpush2.msra.mxu0 0.0
      %1268 = vmatprep.subr.mxu0 0.0
      %1269 = vmatpush2.msra.mxu0 0.0
      %1270 = vmatprep.subr.mxu0 0.0
      %1271 = vmatpush2.msra.mxu0 0.0
      %1272 = vmatprep.subr.mxu0 0.0
      %1273 = vmatpush2.msra.mxu0 0.0
      %1274 = vmatprep.subr.mxu0 0.0
      %1275 = vmatpush2.msra.mxu0 0.0
      %1276 = vmatprep.subr.mxu0 0.0
      %1277 = vmatpush2.msra.mxu0 0.0
      %1278 = vmatprep.subr.mxu0 0.0
      %1279 = vmatpush2.msra.mxu0 0.0
      %1280 = vmatprep.subr.mxu0 0.0
      %1281 = vmatpush2.msra.mxu0 0.0
      %1282 = vmatprep.subr.mxu0 0.0
      %1283 = vmatpush2.msra.mxu0 0.0
      %1284 = vmatprep.subr.mxu0 0.0
      %1285 = vmatpush2.msra.mxu0 0.0
      %1286 = vmatprep.subr.mxu0 0.0
      %1287 = vmatpush2.msra.mxu0 0.0
      %1288 = vmatprep.mubr.f32.mxu0 0.0
      %1289 = vmatmul.mubr.f32.gmra.mxu0 %v1219
      %v1290 = vpop.f32.mrf.mxu0
      %v1291 = vadd.f32 0.0, %v1290
      %v1292 = vpop.f32.mrf.mxu0
      %1293 = vmatprep.mubr.f32.mxu0 0.0
      %1294 = vmatmul.mubr.f32.gmra.mxu0 %v1222
      %v1295 = vpop.f32.mrf.mxu0
      %v1296 = vadd.f32 0.0, %v1295
      %v1297 = vpop.f32.mrf.mxu0
      %1298 = vdwg.mxu0
      %v1299 = vpack.c.bf16 %v1296, %v1291
      %s1300 = scalar_lea.vmem %s6, 8
      %v1301 = vld [vmem:[%s1300] sm:$0xf]
      %v1302 = vld [vmem:[%s1300 + $0x4] sm:$0xf]
      %v1305 = vunpack.c.l.b16 %v1301
      %v1306 = vunpack.c.l.b16 %v1302
      %v1307 = vpack.c.b16 %v1306, %v1305
      %v1310 = vsel %vm707, %v1299, 0
      %1312 = vmatprep.subr.bf16.mxu0 0
      %1313 = vmatpush1.bf16.msra.mxu0 0
      %1314 = vmatprep.subr.bf16.mxu0 0
      %1315 = vmatpush1.bf16.msra.mxu0 0
      %1316 = vmatprep.subr.bf16.mxu0 0
      %1317 = vmatpush1.bf16.msra.mxu0 0
      %1318 = vmatprep.subr.bf16.mxu0 0
      %1319 = vmatpush1.bf16.msra.mxu0 0
      %1320 = vmatprep.subr.bf16.mxu0 0
      %1321 = vmatpush1.bf16.msra.mxu0 0
      %1322 = vmatprep.subr.bf16.mxu0 0
      %1323 = vmatpush1.bf16.msra.mxu0 0
      %1324 = vmatprep.subr.bf16.mxu0 0
      %1325 = vmatpush1.bf16.msra.mxu0 0
      %1326 = vmatprep.subr.bf16.mxu0 0
      %1327 = vmatpush1.bf16.msra.mxu0 %v1307
      %1328 = vmatprep.subr.bf16.mxu0 0
      %1329 = vmatpush2.bf16.msra.mxu0 0
      %1330 = vmatprep.subr.bf16.mxu0 0
      %1331 = vmatpush2.bf16.msra.mxu0 0
      %1332 = vmatprep.subr.bf16.mxu0 0
      %1333 = vmatpush2.bf16.msra.mxu0 0
      %1334 = vmatprep.subr.bf16.mxu0 0
      %1335 = vmatpush2.bf16.msra.mxu0 0
      %1336 = vmatprep.subr.bf16.mxu0 0
      %1337 = vmatpush2.bf16.msra.mxu0 0
      %1338 = vmatprep.subr.bf16.mxu0 0
      %1339 = vmatpush2.bf16.msra.mxu0 0
      %1340 = vmatprep.subr.bf16.mxu0 0
      %1341 = vmatpush2.bf16.msra.mxu0 0
      %1342 = vmatprep.subr.bf16.mxu0 0
      %1343 = vmatpush2.bf16.msra.mxu0 0
      %1344 = vmatprep.mubr.bf16.mxu0 0
      %1345 = vmatmul.mubr.bf16.gmra.mxu0 %v1310
      %v1346 = vpop.f32.mrf.mxu0
      %v1347 = vadd.f32 0.0, %v1346
      %v1348 = vpop.f32.mrf.mxu0
      %v1349 = vpop.f32.mrf.mxu0
      %v1350 = vadd.f32 0.0, %v1349
      %v1351 = vpop.f32.mrf.mxu0
      %1352 = vdwg.mxu0
      %v1353 = vadd.f32 %v973, %v1347
      %v1354 = vadd.f32 %v974, %v1350
      %v1355 = vadd.f32 %v529, %v1353
      %v1356 = vadd.f32 %v530, %v1354
      %v1357 = vld [vmem:[%s8] sm:$0x1]
      %v1358 = vld [vmem:[%s9] sm:$0x1]
      %v1359 = vsel %vm535, %v1355, 0.0
      %1360 = vadd.xlane.f32.xlu0 %v1359
      %v1361 = vpop.xlane.xlu0 %1360
      %v1362 = vsel %vm535, %v1356, 0.0
      %1363 = vadd.xlane.f32.xlu0 %v1362
      %v1364 = vpop.xlane.xlu0 %1363
      %v1365 = vmul.f32 %v1361, %v542
      %v1366 = vmul.f32 %v1364, %v542
      %v1367 = vsub.f32 %v1355, %v1365
      %v1368 = vsub.f32 %v1356, %v1366
      %v1369 = vmul.f32 %v1367, %v1367
      %v1370 = vmul.f32 %v1368, %v1368
      %v1371 = vsel %vm535, %v1369, 0.0
      %1372 = vadd.xlane.f32.xlu0 %v1371
      %v1373 = vpop.xlane.xlu0 %1372
      %v1374 = vsel %vm535, %v1370, 0.0
      %1375 = vadd.xlane.f32.xlu0 %v1374
      %v1376 = vpop.xlane.xlu0 %1375
      %v1377 = vmul.f32 %v1373, %v542
      %v1378 = vmul.f32 %v1376, %v542
      %v1379 = vadd.f32 %v1377, 1e-05
      %v1380 = vadd.f32 %v1378, 1e-05
      %v1381 = vrsqrt.pop %v1379
      %v1382 = vrsqrt.pop %v1380
      %v1383 = vmul.f32 %v1367, %v1381
      %v1384 = vmul.f32 %v1368, %v1382
      %v1386 = vlaneseq
      %v1387 = vshrl.u32 %v1386, 7
      %v1388 = vsub.s32 0, %v1387
      %v1389 = vrot.slane %v1357, %v1388
      %v1391 = vmul.f32 %v1383, %v1389
      %v1392 = vmul.f32 %v1384, %v1389
      %v1394 = vlaneseq
      %v1395 = vshrl.u32 %v1394, 7
      %v1396 = vsub.s32 0, %v1395
      %v1397 = vrot.slane %v1358, %v1396
      %v1399 = vadd.f32 %v1391, %v1397
      %v1400 = vadd.f32 %v1392, %v1397
      %v1401 = vpack.c.bf16 %v1400, %v1399
      %v1402 = vld [vmem:[%s10] sm:$0xf]
      %v1403 = vld [vmem:[%s10 + $0x4] sm:$0xf]
      %v1404 = vld [vmem:[%s10 + $0x8] sm:$0xf]
      %v1405 = vld [vmem:[%s10 + $0xc] sm:$0xf]
      %v1406 = vld [vmem:[%s11] sm:$0x1]
      %v1408 = vlaneseq
      %v1409 = vshrl.u32 %v1408, 7
      %v1410 = vsub.s32 0, %v1409
      %v1411 = vrot.slane %v1406, %v1410
      %v1417 = vunpack.c.l.b16 %v1402
      %v1418 = vunpack.c.l.b16 %v1403
      %v1419 = vunpack.c.l.b16 %v1404
      %v1420 = vunpack.c.l.b16 %v1405
      %v1421 = vpack.c.b16 %v1418, %v1417
      %v1422 = vpack.c.b16 %v1420, %v1419
      %v1426 = vsel %vm535, %v1401, 0
      %1428 = vmatprep.subr.bf16.mxu0 0
      %1429 = vmatpush1.bf16.msra.mxu0 0
      %1430 = vmatprep.subr.bf16.mxu0 0
      %1431 = vmatpush1.bf16.msra.mxu0 0
      %1432 = vmatprep.subr.bf16.mxu0 0
      %1433 = vmatpush1.bf16.msra.mxu0 0
      %1434 = vmatprep.subr.bf16.mxu0 0
      %1435 = vmatpush1.bf16.msra.mxu0 0
      %1436 = vmatprep.subr.bf16.mxu0 0
      %1437 = vmatpush1.bf16.msra.mxu0 0
      %1438 = vmatprep.subr.bf16.mxu0 0
      %1439 = vmatpush1.bf16.msra.mxu0 0
      %1440 = vmatprep.subr.bf16.mxu0 0
      %1441 = vmatpush1.bf16.msra.mxu0 %v1422
      %1442 = vmatprep.subr.bf16.mxu0 0
      %1443 = vmatpush1.bf16.msra.mxu0 %v1421
      %1444 = vmatprep.subr.bf16.mxu0 0
      %1445 = vmatpush2.bf16.msra.mxu0 0
      %1446 = vmatprep.subr.bf16.mxu0 0
      %1447 = vmatpush2.bf16.msra.mxu0 0
      %1448 = vmatprep.subr.bf16.mxu0 0
      %1449 = vmatpush2.bf16.msra.mxu0 0
      %1450 = vmatprep.subr.bf16.mxu0 0
      %1451 = vmatpush2.bf16.msra.mxu0 0
      %1452 = vmatprep.subr.bf16.mxu0 0
      %1453 = vmatpush2.bf16.msra.mxu0 0
      %1454 = vmatprep.subr.bf16.mxu0 0
      %1455 = vmatpush2.bf16.msra.mxu0 0
      %1456 = vmatprep.subr.bf16.mxu0 0
      %1457 = vmatpush2.bf16.msra.mxu0 0
      %1458 = vmatprep.subr.bf16.mxu0 0
      %1459 = vmatpush2.bf16.msra.mxu0 0
      %1460 = vmatprep.mubr.bf16.mxu0 0
      %1461 = vmatmul.mubr.bf16.gmra.mxu0 %v1426
      %v1462 = vpop.f32.mrf.mxu0
      %v1463 = vadd.f32 %v1411, %v1462
      %v1464 = vpop.f32.mrf.mxu0
      %v1465 = vpop.f32.mrf.mxu0
      %v1466 = vadd.f32 %v1411, %v1465
      %v1467 = vpop.f32.mrf.mxu0
      %1468 = vdwg.mxu0
      %v1469 = vmul.f32 %v1463, 0.5
      %v1470 = vmul.f32 %v1466, 0.5
      %v1471 = vmul.f32 %v1463, 0.70710677
      %v1472 = vmul.f32 %v1466, 0.70710677
      %v1473 = verf.f32.pop %v1471
      %v1474 = verf.f32.pop %v1472
      %v1475 = vadd.f32 %v1473, 1.0
      %v1476 = vadd.f32 %v1474, 1.0
      %v1477 = vmul.f32 %v1469, %v1475
      %v1478 = vmul.f32 %v1470, %v1476
      %v1479 = vpack.c.bf16 %v1478, %v1477
      %v1480 = vld [vmem:[%s12] sm:$0xf]
      %v1481 = vld [vmem:[%s12 + $0x4] sm:$0xf]
      %v1482 = vld [vmem:[%s12 + $0x8] sm:$0xf]
      %v1483 = vld [vmem:[%s12 + $0xc] sm:$0xf]
      %v1484 = vld [vmem:[%s12 + $0x10] sm:$0xf]
      %v1485 = vld [vmem:[%s12 + $0x14] sm:$0xf]
      %v1486 = vld [vmem:[%s12 + $0x18] sm:$0xf]
      %v1487 = vld [vmem:[%s12 + $0x1c] sm:$0xf]
      %v1488 = vld [vmem:[%s12 + $0x20] sm:$0xf]
      %v1489 = vld [vmem:[%s12 + $0x24] sm:$0xf]
      %v1490 = vld [vmem:[%s12 + $0x28] sm:$0xf]
      %v1491 = vld [vmem:[%s12 + $0x2c] sm:$0xf]
      %v1492 = vld [vmem:[%s12 + $0x30] sm:$0xf]
      %v1493 = vld [vmem:[%s12 + $0x34] sm:$0xf]
      %v1494 = vld [vmem:[%s12 + $0x38] sm:$0xf]
      %v1495 = vld [vmem:[%s12 + $0x3c] sm:$0xf]
      %v1496 = vld [vmem:[%s13] sm:$0x1]
      %v1498 = vlaneseq
      %v1499 = vshrl.u32 %v1498, 7
      %v1500 = vsub.s32 0, %v1499
      %v1501 = vrot.slane %v1496, %v1500
      %v1519 = vunpack.c.l.b16 %v1480
      %v1520 = vunpack.c.l.b16 %v1481
      %v1521 = vunpack.c.l.b16 %v1482
      %v1522 = vunpack.c.l.b16 %v1483
      %v1523 = vunpack.c.l.b16 %v1484
      %v1524 = vunpack.c.l.b16 %v1485
      %v1525 = vunpack.c.l.b16 %v1486
      %v1526 = vunpack.c.l.b16 %v1487
      %v1527 = vunpack.c.l.b16 %v1488
      %v1528 = vunpack.c.l.b16 %v1489
      %v1529 = vunpack.c.l.b16 %v1490
      %v1530 = vunpack.c.l.b16 %v1491
      %v1531 = vunpack.c.l.b16 %v1492
      %v1532 = vunpack.c.l.b16 %v1493
      %v1533 = vunpack.c.l.b16 %v1494
      %v1534 = vunpack.c.l.b16 %v1495
      %v1535 = vpack.c.b16 %v1520, %v1519
      %v1536 = vpack.c.b16 %v1522, %v1521
      %v1537 = vpack.c.b16 %v1524, %v1523
      %v1538 = vpack.c.b16 %v1526, %v1525
      %v1539 = vpack.c.b16 %v1528, %v1527
      %v1540 = vpack.c.b16 %v1530, %v1529
      %v1541 = vpack.c.b16 %v1532, %v1531
      %v1542 = vpack.c.b16 %v1534, %v1533
      %1551 = vmatprep.subr.bf16.mxu0 0
      %1552 = vmatpush1.bf16.msra.mxu0 %v1542
      %1553 = vmatprep.subr.bf16.mxu0 0
      %1554 = vmatpush1.bf16.msra.mxu0 %v1541
      %1555 = vmatprep.subr.bf16.mxu0 0
      %1556 = vmatpush1.bf16.msra.mxu0 %v1540
      %1557 = vmatprep.subr.bf16.mxu0 0
      %1558 = vmatpush1.bf16.msra.mxu0 %v1539
      %1559 = vmatprep.subr.bf16.mxu0 0
      %1560 = vmatpush1.bf16.msra.mxu0 %v1538
      %1561 = vmatprep.subr.bf16.mxu0 0
      %1562 = vmatpush1.bf16.msra.mxu0 %v1537
      %1563 = vmatprep.subr.bf16.mxu0 0
      %1564 = vmatpush1.bf16.msra.mxu0 %v1536
      %1565 = vmatprep.subr.bf16.mxu0 0
      %1566 = vmatpush1.bf16.msra.mxu0 %v1535
      %1567 = vmatprep.subr.bf16.mxu0 0
      %1568 = vmatpush2.bf16.msra.mxu0 0
      %1569 = vmatprep.subr.bf16.mxu0 0
      %1570 = vmatpush2.bf16.msra.mxu0 0
      %1571 = vmatprep.subr.bf16.mxu0 0
      %1572 = vmatpush2.bf16.msra.mxu0 0
      %1573 = vmatprep.subr.bf16.mxu0 0
      %1574 = vmatpush2.bf16.msra.mxu0 0
      %1575 = vmatprep.subr.bf16.mxu0 0
      %1576 = vmatpush2.bf16.msra.mxu0 0
      %1577 = vmatprep.subr.bf16.mxu0 0
      %1578 = vmatpush2.bf16.msra.mxu0 0
      %1579 = vmatprep.subr.bf16.mxu0 0
      %1580 = vmatpush2.bf16.msra.mxu0 0
      %1581 = vmatprep.subr.bf16.mxu0 0
      %1582 = vmatpush2.bf16.msra.mxu0 0
      %1583 = vmatprep.mubr.bf16.mxu0 0
      %1584 = vmatmul.mubr.bf16.gmra.mxu0 %v1479
      %v1585 = vpop.f32.mrf.mxu0
      %v1586 = vadd.f32 %v1501, %v1585
      %v1587 = vpop.f32.mrf.mxu0
      %v1588 = vpop.f32.mrf.mxu0
      %v1589 = vadd.f32 %v1501, %v1588
      %v1590 = vpop.f32.mrf.mxu0
      %1591 = vdwg.mxu0
      %v1592 = vadd.f32 %v531, %v1586
      %v1593 = vadd.f32 %v532, %v1589
      %1594 = vst.msk [vmem:[%s522] sm:$0xff] %vm535, %v1355
      %1595 = vst.msk [vmem:[%s522 + $0x8] sm:$0xff] %vm535, %v1356
      %1596 = vst.msk [vmem:[%s527] sm:$0xff] %vm535, %v1592
      %1597 = vst.msk [vmem:[%s527 + $0x8] sm:$0xff] %vm535, %v1593
      %p1598 = scmp.lt.s32.totalorder %s27, 1
      %s1599 = scalar_select %p1598, %s27, 1
      %s1600 = smul.addr %s1599, 2
      %s1601 = smul.addr %s1600, 8
      %s1602 = scalar_lea.vmem %s14, %s1601
      %p1603 = scmp.lt.s32.totalorder %s27, 1
      %s1604 = scalar_select %p1603, %s27, 1
      %s1605 = smul.addr %s1604, 2
      %s1606 = smul.addr %s1605, 8
      %s1607 = scalar_lea.vmem %s15, %s1606
      // Predicated region
      $region77: #{covidetector_forward.9} parent=75 // pred_check
        %p1608 = pneg %p349
      $region78: #{covidetector_forward.9} parent=75 // pred_check_branch
        %1610 = sbr.rel (%p1608) target = $region80
      $region79: #{covidetector_forward.9} parent=75 // pred_region
        _
      $region80: #{covidetector_forward.9} parent=75 // pred_fallthru
        _
      // Predicated region
      $region81: #{covidetector_forward.9} parent=75 // pred_check
        %p1611 = pneg %p375
      $region82: #{covidetector_forward.9} parent=75 // pred_check_branch
        %1613 = sbr.rel (%p1611) target = $region84
      $region83: #{covidetector_forward.9} parent=75 // pred_region
        _
      $region84: #{covidetector_forward.9} parent=75 // pred_fallthru
        _
    $region76: #{covidetector_forward.9} parent=5 // pred_fallthru
      _
    %p1614 = scmp.le.s32.totalorder 2, %s22
    // Predicated region
    $region85: #{covidetector_forward.9} parent=5 // pred_check
      %p1615 = pneg %p1614
    $region86: #{covidetector_forward.9} parent=5 // pred_check_branch
      %1617 = sbr.rel (%p1615) target = $region88
    $region87: #{covidetector_forward.9} parent=5 // pred_region
      %s1618 = ssub.s32 %s22, 2
      // Predicated region
      $region89: #{covidetector_forward.9} parent=87 // pred_check
        %p1619 = pneg %p355
      $region90: #{covidetector_forward.9} parent=87 // pred_check_branch
        %1621 = sbr.rel (%p1619) target = $region92
      $region91: #{covidetector_forward.9} parent=87 // pred_region
        %p1622 = scmp.lt.s32.totalorder %s28, 1
        %s1623 = scalar_select %p1622, %s28, 1
        %s1624 = smul.addr %s1623, 2
        %s1625 = smul.addr %s1624, 8
        %s1626 = scalar_lea.vmem %s14, %s1625
      $region92: #{covidetector_forward.9} parent=87 // pred_fallthru
        _
      // Predicated region
      $region93: #{covidetector_forward.9} parent=87 // pred_check
        %p1627 = pneg %p381
      $region94: #{covidetector_forward.9} parent=87 // pred_check_branch
        %1629 = sbr.rel (%p1627) target = $region96
      $region95: #{covidetector_forward.9} parent=87 // pred_region
        %p1630 = scmp.lt.s32.totalorder %s28, 1
        %s1631 = scalar_select %p1630, %s28, 1
        %s1632 = smul.addr %s1631, 2
        %s1633 = smul.addr %s1632, 8
        %s1634 = scalar_lea.vmem %s15, %s1633
      $region96: #{covidetector_forward.9} parent=87 // pred_fallthru
        _
    $region88: #{covidetector_forward.9} parent=5 // pred_fallthru
      _
  $region6: #{covidetector_forward.9} parent=0 // loop_footer
    %s26 = sadd.s32 1, %s22
  $region7: #{covidetector_forward.9} parent=0 // loop_footer_branch
    %21 = sbr.rel target = $region3
  $region8: #{covidetector_forward.9} parent=0 // loop_exit
    _

// kernel: covidetector_forward.11
$region0: #{covidetector_forward.11}
  #allocation0 [shape = 'u32[]', space=smem, size = 0x4, offset = 0x4, fixed_abs, tag = 'smem constant byte address 0x4 - core index']
  #allocation1 [shape = 'u32[144,128]{1,0:T(1,128)}', space=vmem, size = 0x12000, scoped, tag = 'internal scratch']
  %s0 = inlined_call_operand.vmem [shape: bf16[1,16,2], index: 0, kind: input, shape index: {}]
  %s1 = inlined_call_operand.vmem [shape: bf16[4,16], index: 1, kind: input, shape index: {}]
  %s2 = inlined_call_operand.vmem [shape: f32[4,1], index: 2, kind: input, shape index: {}]
  %s3 = inlined_call_operand.vmem [shape: f32[4,2], index: 3, kind: output, shape index: {}]
  %s4 = sld [smem:[#allocation0]]
  $region22: #{covidetector_forward.11} parent=0
    _
  %s6 = ssub.s32 1, %s4
  %s7 = scalar_select 0, %s6, %s4
  // Predicated region
  $region2: #{covidetector_forward.11} parent=0 // pred_check
    _
  $region3: #{covidetector_forward.11} parent=0 // pred_check_branch
    %9 = sbr.rel (0) target = $region5
  $region4: #{covidetector_forward.11} parent=0 // pred_region
    _
  $region5: #{covidetector_forward.11} parent=0 // pred_fallthru
    _
  // Predicated region
  $region6: #{covidetector_forward.11} parent=0 // pred_check
    _
  $region7: #{covidetector_forward.11} parent=0 // pred_check_branch
    %11 = sbr.rel (0) target = $region9
  $region8: #{covidetector_forward.11} parent=0 // pred_region
    _
  $region9: #{covidetector_forward.11} parent=0 // pred_fallthru
    _
  // Predicated region
  $region10: #{covidetector_forward.11} parent=0 // pred_check
    _
  $region11: #{covidetector_forward.11} parent=0 // pred_check_branch
    %13 = sbr.rel (0) target = $region13
  $region12: #{covidetector_forward.11} parent=0 // pred_region
    _
  $region13: #{covidetector_forward.11} parent=0 // pred_fallthru
    _
  %v15 = vld [vmem:[%s1] sm:$0x3]
  %v16 = vld [vmem:[%s2] sm:$0xf]
  %v17 = vld [vmem:[%s0] sm:$0xf]
  %v18 = vld [vmem:[%s0 + $0x4] sm:$0xf]
  %20 = vset.pattern.permute.xlu0 0
  %21 = vperm.xlu0 %20, %v16
  %v22 = vpop.permute.xlu0 %21
  %v26 = vunpack.c.l.b16 %v17
  %v27 = vunpack.c.l.b16 %v18
  %v28 = vpack.c.b16 %v27, %v26
  %vm30 = vcmask 130048
  %v32 = vsel %vm30, %v15, 0
  %34 = vmatprep.subr.bf16.mxu0 0
  %35 = vmatpush1.bf16.msra.mxu0 0
  %36 = vmatprep.subr.bf16.mxu0 0
  %37 = vmatpush1.bf16.msra.mxu0 0
  %38 = vmatprep.subr.bf16.mxu0 0
  %39 = vmatpush1.bf16.msra.mxu0 0
  %40 = vmatprep.subr.bf16.mxu0 0
  %41 = vmatpush1.bf16.msra.mxu0 0
  %42 = vmatprep.subr.bf16.mxu0 0
  %43 = vmatpush1.bf16.msra.mxu0 0
  %44 = vmatprep.subr.bf16.mxu0 0
  %45 = vmatpush1.bf16.msra.mxu0 0
  %46 = vmatprep.subr.bf16.mxu0 0
  %47 = vmatpush1.bf16.msra.mxu0 0
  %48 = vmatprep.subr.bf16.mxu0 0
  %49 = vmatpush1.bf16.msra.mxu0 %v28
  %50 = vmatprep.subr.bf16.mxu0 0
  %51 = vmatpush2.bf16.msra.mxu0 0
  %52 = vmatprep.subr.bf16.mxu0 0
  %53 = vmatpush2.bf16.msra.mxu0 0
  %54 = vmatprep.subr.bf16.mxu0 0
  %55 = vmatpush2.bf16.msra.mxu0 0
  %56 = vmatprep.subr.bf16.mxu0 0
  %57 = vmatpush2.bf16.msra.mxu0 0
  %58 = vmatprep.subr.bf16.mxu0 0
  %59 = vmatpush2.bf16.msra.mxu0 0
  %60 = vmatprep.subr.bf16.mxu0 0
  %61 = vmatpush2.bf16.msra.mxu0 0
  %62 = vmatprep.subr.bf16.mxu0 0
  %63 = vmatpush2.bf16.msra.mxu0 0
  %64 = vmatprep.subr.bf16.mxu0 0
  %65 = vmatpush2.bf16.msra.mxu0 0
  %66 = vmatprep.mubr.bf16.mxu0 0
  %67 = vmatmul.mubr.bf16.gmra.mxu0 %v32
  %v68 = vpop.f32.mrf.mxu0
  %v69 = vadd.f32 %v22, %v68
  %v70 = vpop.f32.mrf.mxu0
  %v71 = vpop.f32.mrf.mxu0
  %v72 = vpop.f32.mrf.mxu0
  %73 = vdwg.mxu0
  %v74 = vmul.f32 %v69, 0.5
  %v75 = vmul.f32 %v69, 0.70710677
  %v76 = verf.f32.pop %v75
  %v77 = vadd.f32 %v76, 1.0
  %v78 = vmul.f32 %v74, %v77
  %vm79 = vcmask 11264
  %80 = vst.msk [vmem:[%s3] sm:$0xf] %vm79, %v78
  // Predicated region
  $region14: #{covidetector_forward.11} parent=0 // pred_check
    _
  $region15: #{covidetector_forward.11} parent=0 // pred_check_branch
    %82 = sbr.rel (0) target = $region17
  $region16: #{covidetector_forward.11} parent=0 // pred_region
    _
  $region17: #{covidetector_forward.11} parent=0 // pred_fallthru
    _
  // Predicated region
  $region18: #{covidetector_forward.11} parent=0 // pred_check
    _
  $region19: #{covidetector_forward.11} parent=0 // pred_check_branch
    %84 = sbr.rel (0) target = $region21
  $region20: #{covidetector_forward.11} parent=0 // pred_region
    _
  $region21: #{covidetector_forward.11} parent=0 // pred_fallthru
    _

// kernel: covidetector_forward.10
$region0: #{covidetector_forward.10}
  #allocation0 [shape = 'u32[]', space=smem, size = 0x4, offset = 0x4, fixed_abs, tag = 'smem constant byte address 0x4 - core index']
  #allocation1 [shape = 'u32[144,128]{1,0:T(1,128)}', space=vmem, size = 0x12000, scoped, tag = 'internal scratch']
  %s0 = inlined_call_operand.vmem [shape: bf16[4,288,2], index: 0, kind: input, shape index: {}]
  %s1 = inlined_call_operand.vmem [shape: bf16[16,288], index: 1, kind: input, shape index: {}]
  %s2 = inlined_call_operand.vmem [shape: f32[16,1], index: 2, kind: input, shape index: {}]
  %s3 = inlined_call_operand.vmem [shape: f32[16,2], index: 3, kind: output, shape index: {}]
  %s4 = sld [smem:[#allocation0]]
  $region22: #{covidetector_forward.10} parent=0
    _
  %s6 = ssub.s32 1, %s4
  %s7 = scalar_select 0, %s6, %s4
  // Predicated region
  $region2: #{covidetector_forward.10} parent=0 // pred_check
    _
  $region3: #{covidetector_forward.10} parent=0 // pred_check_branch
    %9 = sbr.rel (0) target = $region5
  $region4: #{covidetector_forward.10} parent=0 // pred_region
    _
  $region5: #{covidetector_forward.10} parent=0 // pred_fallthru
    _
  // Predicated region
  $region6: #{covidetector_forward.10} parent=0 // pred_check
    _
  $region7: #{covidetector_forward.10} parent=0 // pred_check_branch
    %11 = sbr.rel (0) target = $region9
  $region8: #{covidetector_forward.10} parent=0 // pred_region
    _
  $region9: #{covidetector_forward.10} parent=0 // pred_fallthru
    _
  // Predicated region
  $region10: #{covidetector_forward.10} parent=0 // pred_check
    _
  $region11: #{covidetector_forward.10} parent=0 // pred_check_branch
    %13 = sbr.rel (0) target = $region13
  $region12: #{covidetector_forward.10} parent=0 // pred_region
    _
  $region13: #{covidetector_forward.10} parent=0 // pred_fallthru
    _
  %v15 = vld [vmem:[%s1] sm:$0xff]
  %v16 = vld [vmem:[%s1 + $0x8] sm:$0xf]
  %v17 = vld [vmem:[%s1 + $0xc] sm:$0xff]
  %v18 = vld [vmem:[%s1 + $0x14] sm:$0xf]
  %v19 = vld [vmem:[%s2] sm:$0xff]
  %v20 = vld [vmem:[%s2 + $0x8] sm:$0xff]
  %v21 = vld [vmem:[%s0] sm:$0xf]
  %v22 = vld [vmem:[%s0 + $0x4] sm:$0xf]
  %v23 = vld [vmem:[%s0 + $0x8] sm:$0xf]
  %v24 = vld [vmem:[%s0 + $0xc] sm:$0xf]
  %v25 = vld [vmem:[%s0 + $0x10] sm:$0xf]
  %v26 = vld [vmem:[%s0 + $0x14] sm:$0xf]
  %v27 = vld [vmem:[%s0 + $0x18] sm:$0xf]
  %v28 = vld [vmem:[%s0 + $0x1c] sm:$0xf]
  %v29 = vld [vmem:[%s0 + $0x20] sm:$0xf]
  %v30 = vld [vmem:[%s0 + $0x24] sm:$0xf]
  %v31 = vld [vmem:[%s0 + $0x28] sm:$0xf]
  %v32 = vld [vmem:[%s0 + $0x2c] sm:$0xf]
  %v33 = vld [vmem:[%s0 + $0x30] sm:$0xf]
  %v34 = vld [vmem:[%s0 + $0x34] sm:$0xf]
  %v35 = vld [vmem:[%s0 + $0x38] sm:$0xf]
  %v36 = vld [vmem:[%s0 + $0x3c] sm:$0xf]
  %v37 = vld [vmem:[%s0 + $0x40] sm:$0xf]
  %v38 = vld [vmem:[%s0 + $0x44] sm:$0xf]
  %v39 = vld [vmem:[%s0 + $0x48] sm:$0xf]
  %v40 = vld [vmem:[%s0 + $0x4c] sm:$0xf]
  %v41 = vld [vmem:[%s0 + $0x50] sm:$0xf]
  %v42 = vld [vmem:[%s0 + $0x54] sm:$0xf]
  %v43 = vld [vmem:[%s0 + $0x58] sm:$0xf]
  %v44 = vld [vmem:[%s0 + $0x5c] sm:$0xf]
  %v45 = vld [vmem:[%s0 + $0x60] sm:$0xf]
  %v46 = vld [vmem:[%s0 + $0x64] sm:$0xf]
  %v47 = vld [vmem:[%s0 + $0x68] sm:$0xf]
  %v48 = vld [vmem:[%s0 + $0x6c] sm:$0xf]
  %v49 = vld [vmem:[%s0 + $0x70] sm:$0xf]
  %v50 = vld [vmem:[%s0 + $0x74] sm:$0xf]
  %v51 = vld [vmem:[%s0 + $0x78] sm:$0xf]
  %v52 = vld [vmem:[%s0 + $0x7c] sm:$0xf]
  %v53 = vld [vmem:[%s0 + $0x80] sm:$0xf]
  %v54 = vld [vmem:[%s0 + $0x84] sm:$0xf]
  %v55 = vld [vmem:[%s0 + $0x88] sm:$0xf]
  %v56 = vld [vmem:[%s0 + $0x8c] sm:$0xf]
  %58 = vset.pattern.permute.xlu0 0
  %59 = vperm.xlu0 %58, %v19
  %v60 = vpop.permute.xlu0 %59
  %63 = vset.pattern.permute.xlu0 0
  %64 = vperm.xlu0 %63, %v20
  %v65 = vpop.permute.xlu0 %64
  %v71 = vunpack.c.l.b16 %v15
  %v72 = vunpack.c.h.b16 %v15
  %v73 = vunpack.c.l.b16 %v16
  %v74 = vunpack.c.l.b16 %v17
  %v75 = vunpack.c.h.b16 %v17
  %v76 = vunpack.c.l.b16 %v18
  %v77 = vpack.c.b16 %v74, %v71
  %v78 = vpack.c.b16 %v75, %v72
  %v79 = vpack.c.b16 %v76, %v73
  %v118 = vunpack.c.l.b16 %v21
  %v119 = vunpack.c.l.b16 %v22
  %v120 = vunpack.c.l.b16 %v23
  %v121 = vunpack.c.l.b16 %v24
  %v122 = vunpack.c.l.b16 %v25
  %v123 = vunpack.c.l.b16 %v26
  %v124 = vunpack.c.l.b16 %v27
  %v125 = vunpack.c.l.b16 %v28
  %v126 = vunpack.c.l.b16 %v29
  %v127 = vunpack.c.l.b16 %v30
  %v128 = vunpack.c.l.b16 %v31
  %v129 = vunpack.c.l.b16 %v32
  %v130 = vunpack.c.l.b16 %v33
  %v131 = vunpack.c.l.b16 %v34
  %v132 = vunpack.c.l.b16 %v35
  %v133 = vunpack.c.l.b16 %v36
  %v134 = vunpack.c.l.b16 %v37
  %v135 = vunpack.c.l.b16 %v38
  %v136 = vunpack.c.l.b16 %v39
  %v137 = vunpack.c.l.b16 %v40
  %v138 = vunpack.c.l.b16 %v41
  %v139 = vunpack.c.l.b16 %v42
  %v140 = vunpack.c.l.b16 %v43
  %v141 = vunpack.c.l.b16 %v44
  %v142 = vunpack.c.l.b16 %v45
  %v143 = vunpack.c.l.b16 %v46
  %v144 = vunpack.c.l.b16 %v47
  %v145 = vunpack.c.l.b16 %v48
  %v146 = vunpack.c.l.b16 %v49
  %v147 = vunpack.c.l.b16 %v50
  %v148 = vunpack.c.l.b16 %v51
  %v149 = vunpack.c.l.b16 %v52
  %v150 = vunpack.c.l.b16 %v53
  %v151 = vunpack.c.l.b16 %v54
  %v152 = vunpack.c.l.b16 %v55
  %v153 = vunpack.c.l.b16 %v56
  %v154 = vpack.c.b16 %v119, %v118
  %v155 = vpack.c.b16 %v121, %v120
  %v156 = vpack.c.b16 %v123, %v122
  %v157 = vpack.c.b16 %v125, %v124
  %v158 = vpack.c.b16 %v127, %v126
  %v159 = vpack.c.b16 %v129, %v128
  %v160 = vpack.c.b16 %v131, %v130
  %v161 = vpack.c.b16 %v133, %v132
  %v162 = vpack.c.b16 %v135, %v134
  %v163 = vpack.c.b16 %v137, %v136
  %v164 = vpack.c.b16 %v139, %v138
  %v165 = vpack.c.b16 %v141, %v140
  %v166 = vpack.c.b16 %v143, %v142
  %v167 = vpack.c.b16 %v145, %v144
  %v168 = vpack.c.b16 %v147, %v146
  %v169 = vpack.c.b16 %v149, %v148
  %v170 = vpack.c.b16 %v151, %v150
  %v171 = vpack.c.b16 %v153, %v152
  %vm190 = vcmask 261120
  %v192 = vsel %vm190, %v79, 0
  %194 = vmatprep.subr.bf16.mxu0 0
  %195 = vmatpush1.bf16.msra.mxu0 %v161
  %196 = vmatprep.subr.bf16.mxu0 0
  %197 = vmatpush1.bf16.msra.mxu0 %v160
  %198 = vmatprep.subr.bf16.mxu0 0
  %199 = vmatpush1.bf16.msra.mxu0 %v159
  %200 = vmatprep.subr.bf16.mxu0 0
  %201 = vmatpush1.bf16.msra.mxu0 %v158
  %202 = vmatprep.subr.bf16.mxu0 0
  %203 = vmatpush1.bf16.msra.mxu0 %v157
  %204 = vmatprep.subr.bf16.mxu0 0
  %205 = vmatpush1.bf16.msra.mxu0 %v156
  %206 = vmatprep.subr.bf16.mxu0 0
  %207 = vmatpush1.bf16.msra.mxu0 %v155
  %208 = vmatprep.subr.bf16.mxu0 0
  %209 = vmatpush1.bf16.msra.mxu0 %v154
  %210 = vmatprep.subr.bf16.mxu0 0
  %211 = vmatpush2.bf16.msra.mxu0 %v169
  %212 = vmatprep.subr.bf16.mxu0 0
  %213 = vmatpush2.bf16.msra.mxu0 %v168
  %214 = vmatprep.subr.bf16.mxu0 0
  %215 = vmatpush2.bf16.msra.mxu0 %v167
  %216 = vmatprep.subr.bf16.mxu0 0
  %217 = vmatpush2.bf16.msra.mxu0 %v166
  %218 = vmatprep.subr.bf16.mxu0 0
  %219 = vmatpush2.bf16.msra.mxu0 %v165
  %220 = vmatprep.subr.bf16.mxu0 0
  %221 = vmatpush2.bf16.msra.mxu0 %v164
  %222 = vmatprep.subr.bf16.mxu0 0
  %223 = vmatpush2.bf16.msra.mxu0 %v163
  %224 = vmatprep.subr.bf16.mxu0 0
  %225 = vmatpush2.bf16.msra.mxu0 %v162
  %226 = vmatprep.mubr.bf16.mxu0 %v78
  %227 = vmatmul.mubr.bf16.gmra.mxu0 %v77
  %v228 = vpop.f32.mrf.mxu0
  %v229 = vadd.f32 %v60, %v228
  %v230 = vpop.f32.mrf.mxu0
  %v231 = vpop.f32.mrf.mxu0
  %v232 = vadd.f32 %v65, %v231
  %v233 = vpop.f32.mrf.mxu0
  %234 = vdwg.mxu0
  %235 = vmatprep.subr.bf16.mxu0 0
  %236 = vmatpush1.bf16.msra.mxu0 0
  %237 = vmatprep.subr.bf16.mxu0 0
  %238 = vmatpush1.bf16.msra.mxu0 0
  %239 = vmatprep.subr.bf16.mxu0 0
  %240 = vmatpush1.bf16.msra.mxu0 0
  %241 = vmatprep.subr.bf16.mxu0 0
  %242 = vmatpush1.bf16.msra.mxu0 0
  %243 = vmatprep.subr.bf16.mxu0 0
  %244 = vmatpush1.bf16.msra.mxu0 0
  %245 = vmatprep.subr.bf16.mxu0 0
  %246 = vmatpush1.bf16.msra.mxu0 0
  %247 = vmatprep.subr.bf16.mxu0 0
  %248 = vmatpush1.bf16.msra.mxu0 %v171
  %249 = vmatprep.subr.bf16.mxu0 0
  %250 = vmatpush1.bf16.msra.mxu0 %v170
  %251 = vmatprep.subr.bf16.mxu0 0
  %252 = vmatpush2.bf16.msra.mxu0 0
  %253 = vmatprep.subr.bf16.mxu0 0
  %254 = vmatpush2.bf16.msra.mxu0 0
  %255 = vmatprep.subr.bf16.mxu0 0
  %256 = vmatpush2.bf16.msra.mxu0 0
  %257 = vmatprep.subr.bf16.mxu0 0
  %258 = vmatpush2.bf16.msra.mxu0 0
  %259 = vmatprep.subr.bf16.mxu0 0
  %260 = vmatpush2.bf16.msra.mxu0 0
  %261 = vmatprep.subr.bf16.mxu0 0
  %262 = vmatpush2.bf16.msra.mxu0 0
  %263 = vmatprep.subr.bf16.mxu0 0
  %264 = vmatpush2.bf16.msra.mxu0 0
  %265 = vmatprep.subr.bf16.mxu0 0
  %266 = vmatpush2.bf16.msra.mxu0 0
  %267 = vmatprep.mubr.bf16.mxu0 0
  %268 = vmatmul.mubr.bf16.gmra.mxu0 %v192
  %v269 = vpop.f32.mrf.mxu0
  %v270 = vadd.f32 %v229, %v269
  %v271 = vpop.f32.mrf.mxu0
  %v272 = vpop.f32.mrf.mxu0
  %v273 = vadd.f32 %v232, %v272
  %v274 = vpop.f32.mrf.mxu0
  %275 = vdwg.mxu0
  %v276 = vmul.f32 %v270, 0.5
  %v277 = vmul.f32 %v273, 0.5
  %v278 = vmul.f32 %v270, 0.70710677
  %v279 = vmul.f32 %v273, 0.70710677
  %v280 = verf.f32.pop %v278
  %v281 = verf.f32.pop %v279
  %v282 = vadd.f32 %v280, 1.0
  %v283 = vadd.f32 %v281, 1.0
  %v284 = vmul.f32 %v276, %v282
  %v285 = vmul.f32 %v277, %v283
  %s286 = scalar_lea.vmem %s0, 144
  %v287 = vld [vmem:[%s286] sm:$0xf]
  %v288 = vld [vmem:[%s286 + $0x4] sm:$0xf]
  %v289 = vld [vmem:[%s286 + $0x8] sm:$0xf]
  %v290 = vld [vmem:[%s286 + $0xc] sm:$0xf]
  %v291 = vld [vmem:[%s286 + $0x10] sm:$0xf]
  %v292 = vld [vmem:[%s286 + $0x14] sm:$0xf]
  %v293 = vld [vmem:[%s286 + $0x18] sm:$0xf]
  %v294 = vld [vmem:[%s286 + $0x1c] sm:$0xf]
  %v295 = vld [vmem:[%s286 + $0x20] sm:$0xf]
  %v296 = vld [vmem:[%s286 + $0x24] sm:$0xf]
  %v297 = vld [vmem:[%s286 + $0x28] sm:$0xf]
  %v298 = vld [vmem:[%s286 + $0x2c] sm:$0xf]
  %v299 = vld [vmem:[%s286 + $0x30] sm:$0xf]
  %v300 = vld [vmem:[%s286 + $0x34] sm:$0xf]
  %v301 = vld [vmem:[%s286 + $0x38] sm:$0xf]
  %v302 = vld [vmem:[%s286 + $0x3c] sm:$0xf]
  %v303 = vld [vmem:[%s286 + $0x40] sm:$0xf]
  %v304 = vld [vmem:[%s286 + $0x44] sm:$0xf]
  %v305 = vld [vmem:[%s286 + $0x48] sm:$0xf]
  %v306 = vld [vmem:[%s286 + $0x4c] sm:$0xf]
  %v307 = vld [vmem:[%s286 + $0x50] sm:$0xf]
  %v308 = vld [vmem:[%s286 + $0x54] sm:$0xf]
  %v309 = vld [vmem:[%s286 + $0x58] sm:$0xf]
  %v310 = vld [vmem:[%s286 + $0x5c] sm:$0xf]
  %v311 = vld [vmem:[%s286 + $0x60] sm:$0xf]
  %v312 = vld [vmem:[%s286 + $0x64] sm:$0xf]
  %v313 = vld [vmem:[%s286 + $0x68] sm:$0xf]
  %v314 = vld [vmem:[%s286 + $0x6c] sm:$0xf]
  %v315 = vld [vmem:[%s286 + $0x70] sm:$0xf]
  %v316 = vld [vmem:[%s286 + $0x74] sm:$0xf]
  %v317 = vld [vmem:[%s286 + $0x78] sm:$0xf]
  %v318 = vld [vmem:[%s286 + $0x7c] sm:$0xf]
  %v319 = vld [vmem:[%s286 + $0x80] sm:$0xf]
  %v320 = vld [vmem:[%s286 + $0x84] sm:$0xf]
  %v321 = vld [vmem:[%s286 + $0x88] sm:$0xf]
  %v322 = vld [vmem:[%s286 + $0x8c] sm:$0xf]
  %v359 = vunpack.c.l.b16 %v287
  %v360 = vunpack.c.l.b16 %v288
  %v361 = vunpack.c.l.b16 %v289
  %v362 = vunpack.c.l.b16 %v290
  %v363 = vunpack.c.l.b16 %v291
  %v364 = vunpack.c.l.b16 %v292
  %v365 = vunpack.c.l.b16 %v293
  %v366 = vunpack.c.l.b16 %v294
  %v367 = vunpack.c.l.b16 %v295
  %v368 = vunpack.c.l.b16 %v296
  %v369 = vunpack.c.l.b16 %v297
  %v370 = vunpack.c.l.b16 %v298
  %v371 = vunpack.c.l.b16 %v299
  %v372 = vunpack.c.l.b16 %v300
  %v373 = vunpack.c.l.b16 %v301
  %v374 = vunpack.c.l.b16 %v302
  %v375 = vunpack.c.l.b16 %v303
  %v376 = vunpack.c.l.b16 %v304
  %v377 = vunpack.c.l.b16 %v305
  %v378 = vunpack.c.l.b16 %v306
  %v379 = vunpack.c.l.b16 %v307
  %v380 = vunpack.c.l.b16 %v308
  %v381 = vunpack.c.l.b16 %v309
  %v382 = vunpack.c.l.b16 %v310
  %v383 = vunpack.c.l.b16 %v311
  %v384 = vunpack.c.l.b16 %v312
  %v385 = vunpack.c.l.b16 %v313
  %v386 = vunpack.c.l.b16 %v314
  %v387 = vunpack.c.l.b16 %v315
  %v388 = vunpack.c.l.b16 %v316
  %v389 = vunpack.c.l.b16 %v317
  %v390 = vunpack.c.l.b16 %v318
  %v391 = vunpack.c.l.b16 %v319
  %v392 = vunpack.c.l.b16 %v320
  %v393 = vunpack.c.l.b16 %v321
  %v394 = vunpack.c.l.b16 %v322
  %v395 = vpack.c.b16 %v360, %v359
  %v396 = vpack.c.b16 %v362, %v361
  %v397 = vpack.c.b16 %v364, %v363
  %v398 = vpack.c.b16 %v366, %v365
  %v399 = vpack.c.b16 %v368, %v367
  %v400 = vpack.c.b16 %v370, %v369
  %v401 = vpack.c.b16 %v372, %v371
  %v402 = vpack.c.b16 %v374, %v373
  %v403 = vpack.c.b16 %v376, %v375
  %v404 = vpack.c.b16 %v378, %v377
  %v405 = vpack.c.b16 %v380, %v379
  %v406 = vpack.c.b16 %v382, %v381
  %v407 = vpack.c.b16 %v384, %v383
  %v408 = vpack.c.b16 %v386, %v385
  %v409 = vpack.c.b16 %v388, %v387
  %v410 = vpack.c.b16 %v390, %v389
  %v411 = vpack.c.b16 %v392, %v391
  %v412 = vpack.c.b16 %v394, %v393
  %431 = vmatprep.subr.bf16.mxu0 0
  %432 = vmatpush1.bf16.msra.mxu0 %v402
  %433 = vmatprep.subr.bf16.mxu0 0
  %434 = vmatpush1.bf16.msra.mxu0 %v401
  %435 = vmatprep.subr.bf16.mxu0 0
  %436 = vmatpush1.bf16.msra.mxu0 %v400
  %437 = vmatprep.subr.bf16.mxu0 0
  %438 = vmatpush1.bf16.msra.mxu0 %v399
  %439 = vmatprep.subr.bf16.mxu0 0
  %440 = vmatpush1.bf16.msra.mxu0 %v398
  %441 = vmatprep.subr.bf16.mxu0 0
  %442 = vmatpush1.bf16.msra.mxu0 %v397
  %443 = vmatprep.subr.bf16.mxu0 0
  %444 = vmatpush1.bf16.msra.mxu0 %v396
  %445 = vmatprep.subr.bf16.mxu0 0
  %446 = vmatpush1.bf16.msra.mxu0 %v395
  %447 = vmatprep.subr.bf16.mxu0 0
  %448 = vmatpush2.bf16.msra.mxu0 %v410
  %449 = vmatprep.subr.bf16.mxu0 0
  %450 = vmatpush2.bf16.msra.mxu0 %v409
  %451 = vmatprep.subr.bf16.mxu0 0
  %452 = vmatpush2.bf16.msra.mxu0 %v408
  %453 = vmatprep.subr.bf16.mxu0 0
  %454 = vmatpush2.bf16.msra.mxu0 %v407
  %455 = vmatprep.subr.bf16.mxu0 0
  %456 = vmatpush2.bf16.msra.mxu0 %v406
  %457 = vmatprep.subr.bf16.mxu0 0
  %458 = vmatpush2.bf16.msra.mxu0 %v405
  %459 = vmatprep.subr.bf16.mxu0 0
  %460 = vmatpush2.bf16.msra.mxu0 %v404
  %461 = vmatprep.subr.bf16.mxu0 0
  %462 = vmatpush2.bf16.msra.mxu0 %v403
  %463 = vmatprep.mubr.bf16.mxu0 %v78
  %464 = vmatmul.mubr.bf16.gmra.mxu0 %v77
  %v465 = vpop.f32.mrf.mxu0
  %v466 = vadd.f32 %v60, %v465
  %v467 = vpop.f32.mrf.mxu0
  %v468 = vpop.f32.mrf.mxu0
  %v469 = vadd.f32 %v65, %v468
  %v470 = vpop.f32.mrf.mxu0
  %471 = vdwg.mxu0
  %472 = vmatprep.subr.bf16.mxu0 0
  %473 = vmatpush1.bf16.msra.mxu0 0
  %474 = vmatprep.subr.bf16.mxu0 0
  %475 = vmatpush1.bf16.msra.mxu0 0
  %476 = vmatprep.subr.bf16.mxu0 0
  %477 = vmatpush1.bf16.msra.mxu0 0
  %478 = vmatprep.subr.bf16.mxu0 0
  %479 = vmatpush1.bf16.msra.mxu0 0
  %480 = vmatprep.subr.bf16.mxu0 0
  %481 = vmatpush1.bf16.msra.mxu0 0
  %482 = vmatprep.subr.bf16.mxu0 0
  %483 = vmatpush1.bf16.msra.mxu0 0
  %484 = vmatprep.subr.bf16.mxu0 0
  %485 = vmatpush1.bf16.msra.mxu0 %v412
  %486 = vmatprep.subr.bf16.mxu0 0
  %487 = vmatpush1.bf16.msra.mxu0 %v411
  %488 = vmatprep.subr.bf16.mxu0 0
  %489 = vmatpush2.bf16.msra.mxu0 0
  %490 = vmatprep.subr.bf16.mxu0 0
  %491 = vmatpush2.bf16.msra.mxu0 0
  %492 = vmatprep.subr.bf16.mxu0 0
  %493 = vmatpush2.bf16.msra.mxu0 0
  %494 = vmatprep.subr.bf16.mxu0 0
  %495 = vmatpush2.bf16.msra.mxu0 0
  %496 = vmatprep.subr.bf16.mxu0 0
  %497 = vmatpush2.bf16.msra.mxu0 0
  %498 = vmatprep.subr.bf16.mxu0 0
  %499 = vmatpush2.bf16.msra.mxu0 0
  %500 = vmatprep.subr.bf16.mxu0 0
  %501 = vmatpush2.bf16.msra.mxu0 0
  %502 = vmatprep.subr.bf16.mxu0 0
  %503 = vmatpush2.bf16.msra.mxu0 0
  %504 = vmatprep.mubr.bf16.mxu0 0
  %505 = vmatmul.mubr.bf16.gmra.mxu0 %v192
  %v506 = vpop.f32.mrf.mxu0
  %v507 = vadd.f32 %v466, %v506
  %v508 = vpop.f32.mrf.mxu0
  %v509 = vpop.f32.mrf.mxu0
  %v510 = vadd.f32 %v469, %v509
  %v511 = vpop.f32.mrf.mxu0
  %512 = vdwg.mxu0
  %v513 = vmul.f32 %v507, 0.5
  %v514 = vmul.f32 %v510, 0.5
  %v515 = vmul.f32 %v507, 0.70710677
  %v516 = vmul.f32 %v510, 0.70710677
  %v517 = verf.f32.pop %v515
  %v518 = verf.f32.pop %v516
  %v519 = vadd.f32 %v517, 1.0
  %v520 = vadd.f32 %v518, 1.0
  %v521 = vmul.f32 %v513, %v519
  %v522 = vmul.f32 %v514, %v520
  %v523 = vmax.f32 %v284, %v521
  %v524 = vmax.f32 %v285, %v522
  %s525 = scalar_lea.vmem %s0, 288
  %v526 = vld [vmem:[%s525] sm:$0xf]
  %v527 = vld [vmem:[%s525 + $0x4] sm:$0xf]
  %v528 = vld [vmem:[%s525 + $0x8] sm:$0xf]
  %v529 = vld [vmem:[%s525 + $0xc] sm:$0xf]
  %v530 = vld [vmem:[%s525 + $0x10] sm:$0xf]
  %v531 = vld [vmem:[%s525 + $0x14] sm:$0xf]
  %v532 = vld [vmem:[%s525 + $0x18] sm:$0xf]
  %v533 = vld [vmem:[%s525 + $0x1c] sm:$0xf]
  %v534 = vld [vmem:[%s525 + $0x20] sm:$0xf]
  %v535 = vld [vmem:[%s525 + $0x24] sm:$0xf]
  %v536 = vld [vmem:[%s525 + $0x28] sm:$0xf]
  %v537 = vld [vmem:[%s525 + $0x2c] sm:$0xf]
  %v538 = vld [vmem:[%s525 + $0x30] sm:$0xf]
  %v539 = vld [vmem:[%s525 + $0x34] sm:$0xf]
  %v540 = vld [vmem:[%s525 + $0x38] sm:$0xf]
  %v541 = vld [vmem:[%s525 + $0x3c] sm:$0xf]
  %v542 = vld [vmem:[%s525 + $0x40] sm:$0xf]
  %v543 = vld [vmem:[%s525 + $0x44] sm:$0xf]
  %v544 = vld [vmem:[%s525 + $0x48] sm:$0xf]
  %v545 = vld [vmem:[%s525 + $0x4c] sm:$0xf]
  %v546 = vld [vmem:[%s525 + $0x50] sm:$0xf]
  %v547 = vld [vmem:[%s525 + $0x54] sm:$0xf]
  %v548 = vld [vmem:[%s525 + $0x58] sm:$0xf]
  %v549 = vld [vmem:[%s525 + $0x5c] sm:$0xf]
  %v550 = vld [vmem:[%s525 + $0x60] sm:$0xf]
  %v551 = vld [vmem:[%s525 + $0x64] sm:$0xf]
  %v552 = vld [vmem:[%s525 + $0x68] sm:$0xf]
  %v553 = vld [vmem:[%s525 + $0x6c] sm:$0xf]
  %v554 = vld [vmem:[%s525 + $0x70] sm:$0xf]
  %v555 = vld [vmem:[%s525 + $0x74] sm:$0xf]
  %v556 = vld [vmem:[%s525 + $0x78] sm:$0xf]
  %v557 = vld [vmem:[%s525 + $0x7c] sm:$0xf]
  %v558 = vld [vmem:[%s525 + $0x80] sm:$0xf]
  %v559 = vld [vmem:[%s525 + $0x84] sm:$0xf]
  %v560 = vld [vmem:[%s525 + $0x88] sm:$0xf]
  %v561 = vld [vmem:[%s525 + $0x8c] sm:$0xf]
  %v598 = vunpack.c.l.b16 %v526
  %v599 = vunpack.c.l.b16 %v527
  %v600 = vunpack.c.l.b16 %v528
  %v601 = vunpack.c.l.b16 %v529
  %v602 = vunpack.c.l.b16 %v530
  %v603 = vunpack.c.l.b16 %v531
  %v604 = vunpack.c.l.b16 %v532
  %v605 = vunpack.c.l.b16 %v533
  %v606 = vunpack.c.l.b16 %v534
  %v607 = vunpack.c.l.b16 %v535
  %v608 = vunpack.c.l.b16 %v536
  %v609 = vunpack.c.l.b16 %v537
  %v610 = vunpack.c.l.b16 %v538
  %v611 = vunpack.c.l.b16 %v539
  %v612 = vunpack.c.l.b16 %v540
  %v613 = vunpack.c.l.b16 %v541
  %v614 = vunpack.c.l.b16 %v542
  %v615 = vunpack.c.l.b16 %v543
  %v616 = vunpack.c.l.b16 %v544
  %v617 = vunpack.c.l.b16 %v545
  %v618 = vunpack.c.l.b16 %v546
  %v619 = vunpack.c.l.b16 %v547
  %v620 = vunpack.c.l.b16 %v548
  %v621 = vunpack.c.l.b16 %v549
  %v622 = vunpack.c.l.b16 %v550
  %v623 = vunpack.c.l.b16 %v551
  %v624 = vunpack.c.l.b16 %v552
  %v625 = vunpack.c.l.b16 %v553
  %v626 = vunpack.c.l.b16 %v554
  %v627 = vunpack.c.l.b16 %v555
  %v628 = vunpack.c.l.b16 %v556
  %v629 = vunpack.c.l.b16 %v557
  %v630 = vunpack.c.l.b16 %v558
  %v631 = vunpack.c.l.b16 %v559
  %v632 = vunpack.c.l.b16 %v560
  %v633 = vunpack.c.l.b16 %v561
  %v634 = vpack.c.b16 %v599, %v598
  %v635 = vpack.c.b16 %v601, %v600
  %v636 = vpack.c.b16 %v603, %v602
  %v637 = vpack.c.b16 %v605, %v604
  %v638 = vpack.c.b16 %v607, %v606
  %v639 = vpack.c.b16 %v609, %v608
  %v640 = vpack.c.b16 %v611, %v610
  %v641 = vpack.c.b16 %v613, %v612
  %v642 = vpack.c.b16 %v615, %v614
  %v643 = vpack.c.b16 %v617, %v616
  %v644 = vpack.c.b16 %v619, %v618
  %v645 = vpack.c.b16 %v621, %v620
  %v646 = vpack.c.b16 %v623, %v622
  %v647 = vpack.c.b16 %v625, %v624
  %v648 = vpack.c.b16 %v627, %v626
  %v649 = vpack.c.b16 %v629, %v628
  %v650 = vpack.c.b16 %v631, %v630
  %v651 = vpack.c.b16 %v633, %v632
  %670 = vmatprep.subr.bf16.mxu0 0
  %671 = vmatpush1.bf16.msra.mxu0 %v641
  %672 = vmatprep.subr.bf16.mxu0 0
  %673 = vmatpush1.bf16.msra.mxu0 %v640
  %674 = vmatprep.subr.bf16.mxu0 0
  %675 = vmatpush1.bf16.msra.mxu0 %v639
  %676 = vmatprep.subr.bf16.mxu0 0
  %677 = vmatpush1.bf16.msra.mxu0 %v638
  %678 = vmatprep.subr.bf16.mxu0 0
  %679 = vmatpush1.bf16.msra.mxu0 %v637
  %680 = vmatprep.subr.bf16.mxu0 0
  %681 = vmatpush1.bf16.msra.mxu0 %v636
  %682 = vmatprep.subr.bf16.mxu0 0
  %683 = vmatpush1.bf16.msra.mxu0 %v635
  %684 = vmatprep.subr.bf16.mxu0 0
  %685 = vmatpush1.bf16.msra.mxu0 %v634
  %686 = vmatprep.subr.bf16.mxu0 0
  %687 = vmatpush2.bf16.msra.mxu0 %v649
  %688 = vmatprep.subr.bf16.mxu0 0
  %689 = vmatpush2.bf16.msra.mxu0 %v648
  %690 = vmatprep.subr.bf16.mxu0 0
  %691 = vmatpush2.bf16.msra.mxu0 %v647
  %692 = vmatprep.subr.bf16.mxu0 0
  %693 = vmatpush2.bf16.msra.mxu0 %v646
  %694 = vmatprep.subr.bf16.mxu0 0
  %695 = vmatpush2.bf16.msra.mxu0 %v645
  %696 = vmatprep.subr.bf16.mxu0 0
  %697 = vmatpush2.bf16.msra.mxu0 %v644
  %698 = vmatprep.subr.bf16.mxu0 0
  %699 = vmatpush2.bf16.msra.mxu0 %v643
  %700 = vmatprep.subr.bf16.mxu0 0
  %701 = vmatpush2.bf16.msra.mxu0 %v642
  %702 = vmatprep.mubr.bf16.mxu0 %v78
  %703 = vmatmul.mubr.bf16.gmra.mxu0 %v77
  %v704 = vpop.f32.mrf.mxu0
  %v705 = vadd.f32 %v60, %v704
  %v706 = vpop.f32.mrf.mxu0
  %v707 = vpop.f32.mrf.mxu0
  %v708 = vadd.f32 %v65, %v707
  %v709 = vpop.f32.mrf.mxu0
  %710 = vdwg.mxu0
  %711 = vmatprep.subr.bf16.mxu0 0
  %712 = vmatpush1.bf16.msra.mxu0 0
  %713 = vmatprep.subr.bf16.mxu0 0
  %714 = vmatpush1.bf16.msra.mxu0 0
  %715 = vmatprep.subr.bf16.mxu0 0
  %716 = vmatpush1.bf16.msra.mxu0 0
  %717 = vmatprep.subr.bf16.mxu0 0
  %718 = vmatpush1.bf16.msra.mxu0 0
  %719 = vmatprep.subr.bf16.mxu0 0
  %720 = vmatpush1.bf16.msra.mxu0 0
  %721 = vmatprep.subr.bf16.mxu0 0
  %722 = vmatpush1.bf16.msra.mxu0 0
  %723 = vmatprep.subr.bf16.mxu0 0
  %724 = vmatpush1.bf16.msra.mxu0 %v651
  %725 = vmatprep.subr.bf16.mxu0 0
  %726 = vmatpush1.bf16.msra.mxu0 %v650
  %727 = vmatprep.subr.bf16.mxu0 0
  %728 = vmatpush2.bf16.msra.mxu0 0
  %729 = vmatprep.subr.bf16.mxu0 0
  %730 = vmatpush2.bf16.msra.mxu0 0
  %731 = vmatprep.subr.bf16.mxu0 0
  %732 = vmatpush2.bf16.msra.mxu0 0
  %733 = vmatprep.subr.bf16.mxu0 0
  %734 = vmatpush2.bf16.msra.mxu0 0
  %735 = vmatprep.subr.bf16.mxu0 0
  %736 = vmatpush2.bf16.msra.mxu0 0
  %737 = vmatprep.subr.bf16.mxu0 0
  %738 = vmatpush2.bf16.msra.mxu0 0
  %739 = vmatprep.subr.bf16.mxu0 0
  %740 = vmatpush2.bf16.msra.mxu0 0
  %741 = vmatprep.subr.bf16.mxu0 0
  %742 = vmatpush2.bf16.msra.mxu0 0
  %743 = vmatprep.mubr.bf16.mxu0 0
  %744 = vmatmul.mubr.bf16.gmra.mxu0 %v192
  %v745 = vpop.f32.mrf.mxu0
  %v746 = vadd.f32 %v705, %v745
  %v747 = vpop.f32.mrf.mxu0
  %v748 = vpop.f32.mrf.mxu0
  %v749 = vadd.f32 %v708, %v748
  %v750 = vpop.f32.mrf.mxu0
  %751 = vdwg.mxu0
  %v752 = vmul.f32 %v746, 0.5
  %v753 = vmul.f32 %v749, 0.5
  %v754 = vmul.f32 %v746, 0.70710677
  %v755 = vmul.f32 %v749, 0.70710677
  %v756 = verf.f32.pop %v754
  %v757 = verf.f32.pop %v755
  %v758 = vadd.f32 %v756, 1.0
  %v759 = vadd.f32 %v757, 1.0
  %v760 = vmul.f32 %v752, %v758
  %v761 = vmul.f32 %v753, %v759
  %v762 = vmax.f32 %v523, %v760
  %v763 = vmax.f32 %v524, %v761
  %s764 = scalar_lea.vmem %s0, 432
  %v765 = vld [vmem:[%s764] sm:$0xf]
  %v766 = vld [vmem:[%s764 + $0x4] sm:$0xf]
  %v767 = vld [vmem:[%s764 + $0x8] sm:$0xf]
  %v768 = vld [vmem:[%s764 + $0xc] sm:$0xf]
  %v769 = vld [vmem:[%s764 + $0x10] sm:$0xf]
  %v770 = vld [vmem:[%s764 + $0x14] sm:$0xf]
  %v771 = vld [vmem:[%s764 + $0x18] sm:$0xf]
  %v772 = vld [vmem:[%s764 + $0x1c] sm:$0xf]
  %v773 = vld [vmem:[%s764 + $0x20] sm:$0xf]
  %v774 = vld [vmem:[%s764 + $0x24] sm:$0xf]
  %v775 = vld [vmem:[%s764 + $0x28] sm:$0xf]
  %v776 = vld [vmem:[%s764 + $0x2c] sm:$0xf]
  %v777 = vld [vmem:[%s764 + $0x30] sm:$0xf]
  %v778 = vld [vmem:[%s764 + $0x34] sm:$0xf]
  %v779 = vld [vmem:[%s764 + $0x38] sm:$0xf]
  %v780 = vld [vmem:[%s764 + $0x3c] sm:$0xf]
  %v781 = vld [vmem:[%s764 + $0x40] sm:$0xf]
  %v782 = vld [vmem:[%s764 + $0x44] sm:$0xf]
  %v783 = vld [vmem:[%s764 + $0x48] sm:$0xf]
  %v784 = vld [vmem:[%s764 + $0x4c] sm:$0xf]
  %v785 = vld [vmem:[%s764 + $0x50] sm:$0xf]
  %v786 = vld [vmem:[%s764 + $0x54] sm:$0xf]
  %v787 = vld [vmem:[%s764 + $0x58] sm:$0xf]
  %v788 = vld [vmem:[%s764 + $0x5c] sm:$0xf]
  %v789 = vld [vmem:[%s764 + $0x60] sm:$0xf]
  %v790 = vld [vmem:[%s764 + $0x64] sm:$0xf]
  %v791 = vld [vmem:[%s764 + $0x68] sm:$0xf]
  %v792 = vld [vmem:[%s764 + $0x6c] sm:$0xf]
  %v793 = vld [vmem:[%s764 + $0x70] sm:$0xf]
  %v794 = vld [vmem:[%s764 + $0x74] sm:$0xf]
  %v795 = vld [vmem:[%s764 + $0x78] sm:$0xf]
  %v796 = vld [vmem:[%s764 + $0x7c] sm:$0xf]
  %v797 = vld [vmem:[%s764 + $0x80] sm:$0xf]
  %v798 = vld [vmem:[%s764 + $0x84] sm:$0xf]
  %v799 = vld [vmem:[%s764 + $0x88] sm:$0xf]
  %v800 = vld [vmem:[%s764 + $0x8c] sm:$0xf]
  %v837 = vunpack.c.l.b16 %v765
  %v838 = vunpack.c.l.b16 %v766
  %v839 = vunpack.c.l.b16 %v767
  %v840 = vunpack.c.l.b16 %v768
  %v841 = vunpack.c.l.b16 %v769
  %v842 = vunpack.c.l.b16 %v770
  %v843 = vunpack.c.l.b16 %v771
  %v844 = vunpack.c.l.b16 %v772
  %v845 = vunpack.c.l.b16 %v773
  %v846 = vunpack.c.l.b16 %v774
  %v847 = vunpack.c.l.b16 %v775
  %v848 = vunpack.c.l.b16 %v776
  %v849 = vunpack.c.l.b16 %v777
  %v850 = vunpack.c.l.b16 %v778
  %v851 = vunpack.c.l.b16 %v779
  %v852 = vunpack.c.l.b16 %v780
  %v853 = vunpack.c.l.b16 %v781
  %v854 = vunpack.c.l.b16 %v782
  %v855 = vunpack.c.l.b16 %v783
  %v856 = vunpack.c.l.b16 %v784
  %v857 = vunpack.c.l.b16 %v785
  %v858 = vunpack.c.l.b16 %v786
  %v859 = vunpack.c.l.b16 %v787
  %v860 = vunpack.c.l.b16 %v788
  %v861 = vunpack.c.l.b16 %v789
  %v862 = vunpack.c.l.b16 %v790
  %v863 = vunpack.c.l.b16 %v791
  %v864 = vunpack.c.l.b16 %v792
  %v865 = vunpack.c.l.b16 %v793
  %v866 = vunpack.c.l.b16 %v794
  %v867 = vunpack.c.l.b16 %v795
  %v868 = vunpack.c.l.b16 %v796
  %v869 = vunpack.c.l.b16 %v797
  %v870 = vunpack.c.l.b16 %v798
  %v871 = vunpack.c.l.b16 %v799
  %v872 = vunpack.c.l.b16 %v800
  %v873 = vpack.c.b16 %v838, %v837
  %v874 = vpack.c.b16 %v840, %v839
  %v875 = vpack.c.b16 %v842, %v841
  %v876 = vpack.c.b16 %v844, %v843
  %v877 = vpack.c.b16 %v846, %v845
  %v878 = vpack.c.b16 %v848, %v847
  %v879 = vpack.c.b16 %v850, %v849
  %v880 = vpack.c.b16 %v852, %v851
  %v881 = vpack.c.b16 %v854, %v853
  %v882 = vpack.c.b16 %v856, %v855
  %v883 = vpack.c.b16 %v858, %v857
  %v884 = vpack.c.b16 %v860, %v859
  %v885 = vpack.c.b16 %v862, %v861
  %v886 = vpack.c.b16 %v864, %v863
  %v887 = vpack.c.b16 %v866, %v865
  %v888 = vpack.c.b16 %v868, %v867
  %v889 = vpack.c.b16 %v870, %v869
  %v890 = vpack.c.b16 %v872, %v871
  %909 = vmatprep.subr.bf16.mxu0 0
  %910 = vmatpush1.bf16.msra.mxu0 %v880
  %911 = vmatprep.subr.bf16.mxu0 0
  %912 = vmatpush1.bf16.msra.mxu0 %v879
  %913 = vmatprep.subr.bf16.mxu0 0
  %914 = vmatpush1.bf16.msra.mxu0 %v878
  %915 = vmatprep.subr.bf16.mxu0 0
  %916 = vmatpush1.bf16.msra.mxu0 %v877
  %917 = vmatprep.subr.bf16.mxu0 0
  %918 = vmatpush1.bf16.msra.mxu0 %v876
  %919 = vmatprep.subr.bf16.mxu0 0
  %920 = vmatpush1.bf16.msra.mxu0 %v875
  %921 = vmatprep.subr.bf16.mxu0 0
  %922 = vmatpush1.bf16.msra.mxu0 %v874
  %923 = vmatprep.subr.bf16.mxu0 0
  %924 = vmatpush1.bf16.msra.mxu0 %v873
  %925 = vmatprep.subr.bf16.mxu0 0
  %926 = vmatpush2.bf16.msra.mxu0 %v888
  %927 = vmatprep.subr.bf16.mxu0 0
  %928 = vmatpush2.bf16.msra.mxu0 %v887
  %929 = vmatprep.subr.bf16.mxu0 0
  %930 = vmatpush2.bf16.msra.mxu0 %v886
  %931 = vmatprep.subr.bf16.mxu0 0
  %932 = vmatpush2.bf16.msra.mxu0 %v885
  %933 = vmatprep.subr.bf16.mxu0 0
  %934 = vmatpush2.bf16.msra.mxu0 %v884
  %935 = vmatprep.subr.bf16.mxu0 0
  %936 = vmatpush2.bf16.msra.mxu0 %v883
  %937 = vmatprep.subr.bf16.mxu0 0
  %938 = vmatpush2.bf16.msra.mxu0 %v882
  %939 = vmatprep.subr.bf16.mxu0 0
  %940 = vmatpush2.bf16.msra.mxu0 %v881
  %941 = vmatprep.mubr.bf16.mxu0 %v78
  %942 = vmatmul.mubr.bf16.gmra.mxu0 %v77
  %v943 = vpop.f32.mrf.mxu0
  %v944 = vadd.f32 %v60, %v943
  %v945 = vpop.f32.mrf.mxu0
  %v946 = vpop.f32.mrf.mxu0
  %v947 = vadd.f32 %v65, %v946
  %v948 = vpop.f32.mrf.mxu0
  %949 = vdwg.mxu0
  %950 = vmatprep.subr.bf16.mxu0 0
  %951 = vmatpush1.bf16.msra.mxu0 0
  %952 = vmatprep.subr.bf16.mxu0 0
  %953 = vmatpush1.bf16.msra.mxu0 0
  %954 = vmatprep.subr.bf16.mxu0 0
  %955 = vmatpush1.bf16.msra.mxu0 0
  %956 = vmatprep.subr.bf16.mxu0 0
  %957 = vmatpush1.bf16.msra.mxu0 0
  %958 = vmatprep.subr.bf16.mxu0 0
  %959 = vmatpush1.bf16.msra.mxu0 0
  %960 = vmatprep.subr.bf16.mxu0 0
  %961 = vmatpush1.bf16.msra.mxu0 0
  %962 = vmatprep.subr.bf16.mxu0 0
  %963 = vmatpush1.bf16.msra.mxu0 %v890
  %964 = vmatprep.subr.bf16.mxu0 0
  %965 = vmatpush1.bf16.msra.mxu0 %v889
  %966 = vmatprep.subr.bf16.mxu0 0
  %967 = vmatpush2.bf16.msra.mxu0 0
  %968 = vmatprep.subr.bf16.mxu0 0
  %969 = vmatpush2.bf16.msra.mxu0 0
  %970 = vmatprep.subr.bf16.mxu0 0
  %971 = vmatpush2.bf16.msra.mxu0 0
  %972 = vmatprep.subr.bf16.mxu0 0
  %973 = vmatpush2.bf16.msra.mxu0 0
  %974 = vmatprep.subr.bf16.mxu0 0
  %975 = vmatpush2.bf16.msra.mxu0 0
  %976 = vmatprep.subr.bf16.mxu0 0
  %977 = vmatpush2.bf16.msra.mxu0 0
  %978 = vmatprep.subr.bf16.mxu0 0
  %979 = vmatpush2.bf16.msra.mxu0 0
  %980 = vmatprep.subr.bf16.mxu0 0
  %981 = vmatpush2.bf16.msra.mxu0 0
  %982 = vmatprep.mubr.bf16.mxu0 0
  %983 = vmatmul.mubr.bf16.gmra.mxu0 %v192
  %v984 = vpop.f32.mrf.mxu0
  %v985 = vadd.f32 %v944, %v984
  %v986 = vpop.f32.mrf.mxu0
  %v987 = vpop.f32.mrf.mxu0
  %v988 = vadd.f32 %v947, %v987
  %v989 = vpop.f32.mrf.mxu0
  %990 = vdwg.mxu0
  %v991 = vmul.f32 %v985, 0.5
  %v992 = vmul.f32 %v988, 0.5
  %v993 = vmul.f32 %v985, 0.70710677
  %v994 = vmul.f32 %v988, 0.70710677
  %v995 = verf.f32.pop %v993
  %v996 = verf.f32.pop %v994
  %v997 = vadd.f32 %v995, 1.0
  %v998 = vadd.f32 %v996, 1.0
  %v999 = vmul.f32 %v991, %v997
  %v1000 = vmul.f32 %v992, %v998
  %v1001 = vmax.f32 %v762, %v999
  %v1002 = vmax.f32 %v763, %v1000
  %vm1003 = vcmask 15360
  %1004 = vst.msk [vmem:[%s3] sm:$0xff] %vm1003, %v1001
  %1005 = vst.msk [vmem:[%s3 + $0x8] sm:$0xff] %vm1003, %v1002
  // Predicated region
  $region14: #{covidetector_forward.10} parent=0 // pred_check
    _
  $region15: #{covidetector_forward.10} parent=0 // pred_check_branch
    %1007 = sbr.rel (0) target = $region17
  $region16: #{covidetector_forward.10} parent=0 // pred_region
    _
  $region17: #{covidetector_forward.10} parent=0 // pred_fallthru
    _
  // Predicated region
  $region18: #{covidetector_forward.10} parent=0 // pred_check
    _
  $region19: #{covidetector_forward.10} parent=0 // pred_check_branch
    %1009 = sbr.rel (0) target = $region21
  $region20: #{covidetector_forward.10} parent=0 // pred_region
    _
  $region21: #{covidetector_forward.10} parent=0 // pred_fallthru
    _

</llo_original>
